<compile_context>
chip_gen: v7x
topology: tpu7x:2x2x1
jax: 0.10.0
libtpu: 0.0.40
codegen_flags: <defaults>
</compile_context>

<pallas_src>
import math
import functools

import jax
import jax.numpy as jnp
from jax.experimental import pallas as pl
from jax.experimental.pallas import tpu as pltpu


# ----------------------------- shared math helpers ---------------------------

def _layer_norm(x, w, b, eps=1e-5):
    mu = jnp.mean(x, axis=-1, keepdims=True)
    var = jnp.mean((x - mu) ** 2, axis=-1, keepdims=True)
    return (x - mu) * jax.lax.rsqrt(var + eps) * w + b


def _gelu_exact(x):
    # exact-erf GELU (matches torch.nn.GELU default)
    return 0.5 * x * (1.0 + jax.lax.erf(x * (1.0 / math.sqrt(2.0))))


# --------------------------------- kernel ------------------------------------

def encoder_stack_kernel(x_ref, wqkv_ref, bqkv_ref, wo_ref, bo_ref,
                         ln1w_ref, ln1b_ref,
                         w1_ref, fb1_ref, w2_ref, fb2_ref,
                         ln2w_ref, ln2b_ref,
                         fnw_ref, fnb_ref,
                         o_ref, acc_ref, *, num_heads):
    """Grid = (B, L).  One grid step applies layer `l` to batch element `b`.

    The activation for batch element `b` lives in `acc_ref` (f32 VMEM scratch)
    across the whole "arbitrary" L axis; the output block is only written on the
    last layer, after the final LayerNorm.
    """
    l = pl.program_id(1)

    @pl.when(l == 0)
    def _():
        acc_ref[...] = x_ref[0].astype(jnp.float32)

    x = acc_ref[...]                                   # (N, D) f32
    N, D = x.shape
    H = num_heads
    dh = D // H

    # --- multi-head self-attention (fused QKV, 1/sqrt(dh) folded into Q weights) ---
    qkv = jnp.dot(x.astype(jnp.bfloat16), wqkv_ref[0],
                  preferred_element_type=jnp.float32) + bqkv_ref[0, 0]   # (N, 3D)
    q = qkv[:, :D].reshape(N, H, dh)
    k = qkv[:, D:2 * D].reshape(N, H, dh)
    v = qkv[:, 2 * D:].reshape(N, H, dh)

    # batched-over-heads attention (head is a dot_general batch dim)
    s = jnp.einsum("nhd,mhd->hnm",
                   q.astype(jnp.bfloat16), k.astype(jnp.bfloat16),
                   preferred_element_type=jnp.float32)                   # (H, N, N)
    s = s - jnp.max(s, axis=-1, keepdims=True)
    p = jnp.exp(s)
    # exact division kept for parity with the reference softmax;
    # pl.reciprocal(..., approx=True) would move this to the EUP slot.
    p = p / jnp.sum(p, axis=-1, keepdims=True)
    ctx = jnp.einsum("hnm,mhd->nhd",
                     p.astype(jnp.bfloat16), v.astype(jnp.bfloat16),
                     preferred_element_type=jnp.float32).reshape(N, D)

    attn_out = jnp.dot(ctx.astype(jnp.bfloat16), wo_ref[0],
                       preferred_element_type=jnp.float32) + bo_ref[0, 0]

    # residual + norm1 (post-norm)
    x = _layer_norm(x + attn_out, ln1w_ref[0, 0], ln1b_ref[0, 0])

    # --- MLP: Linear -> GELU(exact) -> Linear ---
    h1 = jnp.dot(x.astype(jnp.bfloat16), w1_ref[0],
                 preferred_element_type=jnp.float32) + fb1_ref[0, 0]     # (N, Hm)
    h1 = _gelu_exact(h1)
    ffn = jnp.dot(h1.astype(jnp.bfloat16), w2_ref[0],
                  preferred_element_type=jnp.float32) + fb2_ref[0, 0]    # (N, D)

    # residual + norm2 (post-norm)
    x = _layer_norm(x + ffn, ln2w_ref[0, 0], ln2b_ref[0, 0])

    acc_ref[...] = x

    @pl.when(l == pl.num_programs(1) - 1)
    def _():
        o_ref[0] = _layer_norm(x, fnw_ref[0], fnb_ref[0]).astype(o_ref.dtype)


# ------------------------------ wrapper ---------------------------------------

def run_encoder(x, params, final_w, final_b, num_heads):
    B, N, D = x.shape
    L = params["wqkv"].shape[0]
    Hm = params["w1"].shape[-1]

    def w_spec(shape):
        # per-layer parameter: stacked on leading L axis, selected by grid index l
        return pl.BlockSpec((1,) + shape, lambda b, l: (l,) + (0,) * len(shape))

    def const_spec(shape):
        return pl.BlockSpec(shape, lambda b, l: (0,) * len(shape))

    in_specs = [
        pl.BlockSpec((1, N, D), lambda b, l: (b, 0, 0)),   # x (only read at l == 0)
        w_spec((D, 3 * D)),                                # wqkv (bf16, Q-scaled)
        w_spec((1, 3 * D)),                                # bqkv
        w_spec((D, D)),                                    # wo (bf16)
        w_spec((1, D)),                                    # bo
        w_spec((1, D)),                                    # ln1 weight
        w_spec((1, D)),                                    # ln1 bias
        w_spec((D, Hm)),                                   # w1 (bf16)
        w_spec((1, Hm)),                                   # fb1
        w_spec((Hm, D)),                                   # w2 (bf16)
        w_spec((1, D)),                                    # fb2
        w_spec((1, D)),                                    # ln2 weight
        w_spec((1, D)),                                    # ln2 bias
        const_spec((1, D)),                                # final norm weight
        const_spec((1, D)),                                # final norm bias
    ]

    # Explicit VMEM budget: double-buffered input blocks + output block + scratch
    # + headroom, clamped to a fits-everywhere range (v7x has 64 MiB VMEM).
    w_itemsize = jnp.dtype(params["wqkv"].dtype).itemsize
    per_layer_w = w_itemsize * (D * 3 * D + D * D + D * Hm + Hm * D)
    per_layer_small = 4 * (3 * D + 6 * D + Hm)             # biases + LN params (f32)
    act = 4 * N * D
    vmem_bytes = (2 * (act + per_layer_w + per_layer_small + 2 * 4 * D)
                  + 2 * act + act + (4 << 20))
    vmem_bytes = int(min(max(vmem_bytes, 8 << 20), 64 << 20))

    kernel = functools.partial(encoder_stack_kernel, num_heads=num_heads)
    return pl.pallas_call(
        kernel,
        out_shape=jax.ShapeDtypeStruct((B, N, D), x.dtype),
        grid=(B, L),
        in_specs=in_specs,
        out_specs=pl.BlockSpec((1, N, D), lambda b, l: (b, 0, 0)),
        scratch_shapes=[pltpu.VMEM((N, D), jnp.float32)],
        compiler_params=pltpu.CompilerParams(
            dimension_semantics=("parallel", "arbitrary"),
            vmem_limit_bytes=vmem_bytes),
    )(x, params["wqkv"], params["bqkv"], params["wo"], params["bo"],
      params["ln1_w"], params["ln1_b"], params["w1"], params["fb1"],
      params["w2"], params["fb2"], params["ln2_w"], params["ln2_b"],
      final_w, final_b)


def multimodal_encoder_forward(x, params, final_w, final_b, num_heads):
    return run_encoder(x, params, final_w, final_b, num_heads)


# ------------------------- deterministic parameters ---------------------------

def init_params(key, embed_dim, depth, mlp_ratio, num_heads,
                weight_dtype=jnp.bfloat16):
    D = embed_dim
    Hm = int(embed_dim * mlp_ratio)
    dh = D // num_heads
    scale = 1.0 / math.sqrt(dh)

    def one_layer(k):
        ks = jax.random.split(k, 8)
        wqkv = jax.random.normal(ks[0], (D, 3 * D), jnp.float32) * 0.02
        bqkv = jax.random.normal(ks[1], (1, 3 * D), jnp.float32) * 0.02
        # fold the 1/sqrt(dh) attention scale into the Q projection
        wqkv = wqkv.at[:, :D].multiply(scale)
        bqkv = bqkv.at[:, :D].multiply(scale)
        return dict(
            wqkv=wqkv.astype(weight_dtype),
            bqkv=bqkv,
            wo=(jax.random.normal(ks[2], (D, D), jnp.float32) * 0.02
                ).astype(weight_dtype),
            bo=jax.random.normal(ks[3], (1, D), jnp.float32) * 0.02,
            ln1_w=jnp.ones((1, D), jnp.float32),
            ln1_b=jnp.zeros((1, D), jnp.float32),
            w1=(jax.random.normal(ks[4], (D, Hm), jnp.float32) * 0.02
                ).astype(weight_dtype),
            fb1=jax.random.normal(ks[5], (1, Hm), jnp.float32) * 0.02,
            w2=(jax.random.normal(ks[6], (Hm, D), jnp.float32) * 0.02
                ).astype(weight_dtype),
            fb2=jax.random.normal(ks[7], (1, D), jnp.float32) * 0.02,
            ln2_w=jnp.ones((1, D), jnp.float32),
            ln2_b=jnp.zeros((1, D), jnp.float32),
        )

    layers = [one_layer(jax.random.fold_in(key, i)) for i in range(depth)]
    stacked = {name: jnp.stack([lp[name] for lp in layers], axis=0)
               for name in layers[0]}
    final_w = jnp.ones((1, D), jnp.float32)
    final_b = jnp.zeros((1, D), jnp.float32)
    return stacked, final_w, final_b


# --------------------------- pure-JAX reference -------------------------------
# Same bf16-weight / f32-accumulate mixed precision as the kernel.

def _ref_layer(x, p, num_heads):
    B, N, D = x.shape
    H = num_heads
    dh = D // H
    qkv = jnp.einsum("bnd,df->bnf", x.astype(jnp.bfloat16), p["wqkv"],
                     preferred_element_type=jnp.float32) + p["bqkv"][0]
    q = qkv[..., :D].reshape(B, N, H, dh)
    k = qkv[..., D:2 * D].reshape(B, N, H, dh)
    v = qkv[..., 2 * D:].reshape(B, N, H, dh)
    s = jnp.einsum("bnhd,bmhd->bhnm",
                   q.astype(jnp.bfloat16), k.astype(jnp.bfloat16),
                   preferred_element_type=jnp.float32)
    s = s - jnp.max(s, axis=-1, keepdims=True)
    pr = jnp.exp(s)
    pr = pr / jnp.sum(pr, axis=-1, keepdims=True)
    ctx = jnp.einsum("bhnm,bmhd->bnhd",
                     pr.astype(jnp.bfloat16), v.astype(jnp.bfloat16),
                     preferred_element_type=jnp.float32).reshape(B, N, D)
    attn = jnp.einsum("bnd,de->bne", ctx.astype(jnp.bfloat16), p["wo"],
                      preferred_element_type=jnp.float32) + p["bo"][0]
    x = _layer_norm(x + attn, p["ln1_w"][0], p["ln1_b"][0])
    h1 = jnp.einsum("bnd,dh->bnh", x.astype(jnp.bfloat16), p["w1"],
                    preferred_element_type=jnp.float32) + p["fb1"][0]
    h1 = _gelu_exact(h1)
    ffn = jnp.einsum("bnh,hd->bnd", h1.astype(jnp.bfloat16), p["w2"],
                     preferred_element_type=jnp.float32) + p["fb2"][0]
    x = _layer_norm(x + ffn, p["ln2_w"][0], p["ln2_b"][0])
    return x


def _ref_forward(x, params, final_w, final_b, num_heads):
    L = params["wqkv"].shape[0]
    for l in range(L):
        x = _ref_layer(x, {name: arr[l] for name, arr in params.items()}, num_heads)
    return _layer_norm(x, final_w[0], final_b[0])


# ------------------------------------ main ------------------------------------

if __name__ == "__main__":
    B, N = 2, 8
    # embed_dim=128 -> lane-dense tiles; num_heads=4 -> head_dim=32
    embed_dim, depth, num_heads, mlp_ratio = 128, 2, 4, 4.0

    key = jax.random.PRNGKey(0)
    kx, kp = jax.random.split(key)
    x = jax.random.normal(kx, (B, N, embed_dim), jnp.float32)

    params, final_w, final_b = init_params(kp, embed_dim, depth, mlp_ratio,
                                           num_heads)

    out = multimodal_encoder_forward(x, params, final_w, final_b, num_heads)
    out = jax.block_until_ready(out)

    ref = _ref_forward(x, params, final_w, final_b, num_heads)
    assert out.shape == (B, N, embed_dim)
    assert jnp.allclose(out, ref, atol=1e-3, rtol=1e-3), "mismatch vs reference"

    print("KERNEL_OK")
</pallas_src>

<mosaic_0001>
module attributes {stable_mosaic.version = 11 : i64} {
  func.func @encoder_stack_kernel(%arg0: i32, %arg1: i32, %arg2: memref<1x8x128xf32, #tpu.memory_space<vmem>>, %arg3: memref<1x128x384xbf16, #tpu.memory_space<vmem>>, %arg4: memref<1x1x384xf32, #tpu.memory_space<vmem>>, %arg5: memref<1x128x128xbf16, #tpu.memory_space<vmem>>, %arg6: memref<1x1x128xf32, #tpu.memory_space<vmem>>, %arg7: memref<1x1x128xf32, #tpu.memory_space<vmem>>, %arg8: memref<1x1x128xf32, #tpu.memory_space<vmem>>, %arg9: memref<1x128x512xbf16, #tpu.memory_space<vmem>>, %arg10: memref<1x1x512xf32, #tpu.memory_space<vmem>>, %arg11: memref<1x512x128xbf16, #tpu.memory_space<vmem>>, %arg12: memref<1x1x128xf32, #tpu.memory_space<vmem>>, %arg13: memref<1x1x128xf32, #tpu.memory_space<vmem>>, %arg14: memref<1x1x128xf32, #tpu.memory_space<vmem>>, %arg15: memref<1x128xf32, #tpu.memory_space<vmem>>, %arg16: memref<1x128xf32, #tpu.memory_space<vmem>>, %arg17: memref<1x8x128xf32, #tpu.memory_space<vmem>>, %arg18: memref<8x128xf32, #tpu.memory_space<vmem>>) attributes {dimension_semantics = [#tpu.dimension_semantics<parallel>, #tpu.dimension_semantics<arbitrary>], iteration_bounds = array<i64: 2, 2>, scalar_prefetch = 0 : i64, scratch_operands = 1 : i64, tpu.core_type = #tpu.core_type<tc>, window_params = [{transform_indices = @transform_0, window_bounds = array<i64: 1, 8, 128>}, {transform_indices = @transform_1, window_bounds = array<i64: 1, 128, 384>}, {transform_indices = @transform_2, window_bounds = array<i64: 1, 1, 384>}, {transform_indices = @transform_3, window_bounds = array<i64: 1, 128, 128>}, {transform_indices = @transform_4, window_bounds = array<i64: 1, 1, 128>}, {transform_indices = @transform_5, window_bounds = array<i64: 1, 1, 128>}, {transform_indices = @transform_6, window_bounds = array<i64: 1, 1, 128>}, {transform_indices = @transform_7, window_bounds = array<i64: 1, 128, 512>}, {transform_indices = @transform_8, window_bounds = array<i64: 1, 1, 512>}, {transform_indices = @transform_9, window_bounds = array<i64: 1, 512, 128>}, {transform_indices = @transform_10, window_bounds = array<i64: 1, 1, 128>}, {transform_indices = @transform_11, window_bounds = array<i64: 1, 1, 128>}, {transform_indices = @transform_12, window_bounds = array<i64: 1, 1, 128>}, {pipeline_mode = #tpu.pipeline_mode<synchronous>, transform_indices = @transform_13, window_bounds = array<i64: 1, 128>}, {pipeline_mode = #tpu.pipeline_mode<synchronous>, transform_indices = @transform_14, window_bounds = array<i64: 1, 128>}, {transform_indices = @transform_15, window_bounds = array<i64: 1, 8, 128>}]} {
    %c0_i32 = arith.constant 0 : i32
    %0 = arith.cmpi eq, %arg1, %c0_i32 : i32
    %1 = arith.extui %0 : i1 to i32
    %c0_i32_0 = arith.constant 0 : i32
    %2 = arith.cmpi ne, %1, %c0_i32_0 : i32
    scf.if %2 {
      %c0_61 = arith.constant 0 : index
      %c0_62 = arith.constant 0 : index
      %c0_63 = arith.constant 0 : index
      %133 = vector.load %arg2[%c0_61, %c0_62, %c0_63] : memref<1x8x128xf32, #tpu.memory_space<vmem>>, vector<1x8x128xf32>
      %134 = vector.shape_cast %133 : vector<1x8x128xf32> to vector<8x128xf32>
      %c0_64 = arith.constant 0 : index
      %c0_65 = arith.constant 0 : index
      %135 = vector.load %arg18[%c0_64, %c0_65] : memref<8x128xf32, #tpu.memory_space<vmem>>, vector<8x128xf32>
      tpu.vector_store %arg18[%c0_64, %c0_65], %134 {strides = array<i32>} : memref<8x128xf32, #tpu.memory_space<vmem>>, vector<8x128xf32>,
    } else {
    }
    %c0 = arith.constant 0 : index
    %c0_1 = arith.constant 0 : index
    %3 = vector.load %arg18[%c0, %c0_1] : memref<8x128xf32, #tpu.memory_space<vmem>>, vector<8x128xf32>
    %4 = arith.truncf %3 : vector<8x128xf32> to vector<8x128xbf16>
    %c0_2 = arith.constant 0 : index
    %c0_3 = arith.constant 0 : index
    %c0_4 = arith.constant 0 : index
    %5 = vector.load %arg3[%c0_2, %c0_3, %c0_4] : memref<1x128x384xbf16, #tpu.memory_space<vmem>>, vector<1x128x384xbf16>
    %6 = vector.shape_cast %5 : vector<1x128x384xbf16> to vector<128x384xbf16>
    %cst = arith.constant dense<0.000000e+00> : vector<8x384xf32>
    %7 = tpu.matmul %4, %6, %cst {dimension_numbers = #tpu.dot_dimension_numbers<[1], [0], [0], [1], [0, 0, 1, 1], [], []>} : vector<8x128xbf16>, vector<128x384xbf16>, vector<8x384xf32> -> vector<8x384xf32>
    %c0_5 = arith.constant 0 : index
    %c0_6 = arith.constant 0 : index
    %c0_7 = arith.constant 0 : index
    %8 = vector.load %arg4[%c0_5, %c0_6, %c0_7] : memref<1x1x384xf32, #tpu.memory_space<vmem>>, vector<1x1x384xf32>
    %9 = vector.shape_cast %8 : vector<1x1x384xf32> to vector<384xf32>
    %10 = vector.shape_cast %9 : vector<384xf32> to vector<1x384xf32>
    %11 = vector.broadcast %10 : vector<1x384xf32> to vector<8x384xf32>
    %12 = arith.addf %7, %11 : vector<8x384xf32>
    %13 = vector.extract_strided_slice %12 {offsets = [0, 0], sizes = [8, 128], strides = [1, 1]} : vector<8x384xf32> to vector<8x128xf32>
    %14 = vector.shape_cast %13 : vector<8x128xf32> to vector<8x4x32xf32>
    %15 = vector.extract_strided_slice %12 {offsets = [0, 128], sizes = [8, 128], strides = [1, 1]} : vector<8x384xf32> to vector<8x128xf32>
    %16 = vector.shape_cast %15 : vector<8x128xf32> to vector<8x4x32xf32>
    %17 = vector.extract_strided_slice %12 {offsets = [0, 256], sizes = [8, 128], strides = [1, 1]} : vector<8x384xf32> to vector<8x128xf32>
    %18 = vector.shape_cast %17 : vector<8x128xf32> to vector<8x4x32xf32>
    %19 = arith.truncf %14 : vector<8x4x32xf32> to vector<8x4x32xbf16>
    %20 = arith.truncf %16 : vector<8x4x32xf32> to vector<8x4x32xbf16>
    "tpu.trace_start"() <{level = 10 : i32, message = "nhd,mhd->hnm"}> : () -> ()
    %cst_8 = arith.constant dense<0.000000e+00> : vector<4x8x8xf32>
    %21 = tpu.matmul %19, %20, %cst_8 {dimension_numbers = #tpu.dot_dimension_numbers<[2], [2], [0], [0], [0, 1, 0, 0, 1, 0], [1], [1]>} : vector<8x4x32xbf16>, vector<8x4x32xbf16>, vector<4x8x8xf32> -> vector<4x8x8xf32>
    "tpu.trace_stop"() : () -> ()
    %cst_9 = arith.constant dense<0xFF800000> : vector<4x8xf32>
    %22 = vector.multi_reduction <maximumf>, %21, %cst_9 [2] : vector<4x8x8xf32> to vector<4x8xf32>
    %23 = vector.shape_cast %22 : vector<4x8xf32> to vector<4x8x1xf32>
    %24 = vector.broadcast %23 : vector<4x8x1xf32> to vector<4x8x8xf32>
    %25 = arith.subf %21, %24 : vector<4x8x8xf32>
    %26 = math.exp %25 : vector<4x8x8xf32>
    %cst_10 = arith.constant dense<0.000000e+00> : vector<4x8xf32>
    %27 = vector.multi_reduction <add>, %26, %cst_10 [2] : vector<4x8x8xf32> to vector<4x8xf32>
    %28 = vector.shape_cast %27 : vector<4x8xf32> to vector<4x8x1xf32>
    %29 = vector.broadcast %28 : vector<4x8x1xf32> to vector<4x8x8xf32>
    %30 = arith.divf %26, %29 : vector<4x8x8xf32>
    %31 = arith.truncf %30 : vector<4x8x8xf32> to vector<4x8x8xbf16>
    %32 = arith.truncf %18 : vector<8x4x32xf32> to vector<8x4x32xbf16>
    "tpu.trace_start"() <{level = 10 : i32, message = "hnm,mhd->nhd"}> : () -> ()
    %cst_11 = arith.constant dense<0.000000e+00> : vector<4x32x8xf32>
    %33 = tpu.matmul %32, %31, %cst_11 {dimension_numbers = #tpu.dot_dimension_numbers<[0], [2], [2], [1], [0, 1, 0, 2, 1, 1], [1], [0]>} : vector<8x4x32xbf16>, vector<4x8x8xbf16>, vector<4x32x8xf32> -> vector<4x32x8xf32>
    %34 = tpu.transpose %33, [2, 0, 1] : vector<4x32x8xf32> -> vector<8x4x32xf32>
    "tpu.trace_stop"() : () -> ()
    %35 = vector.shape_cast %34 : vector<8x4x32xf32> to vector<8x128xf32>
    %36 = arith.truncf %35 : vector<8x128xf32> to vector<8x128xbf16>
    %c0_12 = arith.constant 0 : index
    %c0_13 = arith.constant 0 : index
    %c0_14 = arith.constant 0 : index
    %37 = vector.load %arg5[%c0_12, %c0_13, %c0_14] : memref<1x128x128xbf16, #tpu.memory_space<vmem>>, vector<1x128x128xbf16>
    %38 = vector.shape_cast %37 : vector<1x128x128xbf16> to vector<128x128xbf16>
    %cst_15 = arith.constant dense<0.000000e+00> : vector<8x128xf32>
    %39 = tpu.matmul %36, %38, %cst_15 {dimension_numbers = #tpu.dot_dimension_numbers<[1], [0], [0], [1], [0, 0, 1, 1], [], []>} : vector<8x128xbf16>, vector<128x128xbf16>, vector<8x128xf32> -> vector<8x128xf32>
    %c0_16 = arith.constant 0 : index
    %c0_17 = arith.constant 0 : index
    %c0_18 = arith.constant 0 : index
    %40 = vector.load %arg6[%c0_16, %c0_17, %c0_18] : memref<1x1x128xf32, #tpu.memory_space<vmem>>, vector<1x1x128xf32>
    %41 = vector.shape_cast %40 : vector<1x1x128xf32> to vector<128xf32>
    %42 = vector.shape_cast %41 : vector<128xf32> to vector<1x128xf32>
    %43 = vector.broadcast %42 : vector<1x128xf32> to vector<8x128xf32>
    %44 = arith.addf %39, %43 : vector<8x128xf32>
    %45 = arith.addf %3, %44 : vector<8x128xf32>
    %c0_19 = arith.constant 0 : index
    %c0_20 = arith.constant 0 : index
    %c0_21 = arith.constant 0 : index
    %46 = vector.load %arg7[%c0_19, %c0_20, %c0_21] : memref<1x1x128xf32, #tpu.memory_space<vmem>>, vector<1x1x128xf32>
    %47 = vector.shape_cast %46 : vector<1x1x128xf32> to vector<128xf32>
    %c0_22 = arith.constant 0 : index
    %c0_23 = arith.constant 0 : index
    %c0_24 = arith.constant 0 : index
    %48 = vector.load %arg8[%c0_22, %c0_23, %c0_24] : memref<1x1x128xf32, #tpu.memory_space<vmem>>, vector<1x1x128xf32>
    %49 = vector.shape_cast %48 : vector<1x1x128xf32> to vector<128xf32>
    %cst_25 = arith.constant dense<0.000000e+00> : vector<8xf32>
    %50 = vector.multi_reduction <add>, %45, %cst_25 [1] : vector<8x128xf32> to vector<8xf32>
    %51 = vector.shape_cast %50 : vector<8xf32> to vector<8x1xf32>
    %cst_26 = arith.constant 1.280000e+02 : f32
    %52 = vector.broadcast %cst_26 : f32 to vector<8x1xf32>
    %53 = arith.divf %51, %52 : vector<8x1xf32>
    %54 = vector.broadcast %53 : vector<8x1xf32> to vector<8x128xf32>
    %55 = arith.subf %45, %54 : vector<8x128xf32>
    %56 = arith.mulf %55, %55 : vector<8x128xf32>
    %cst_27 = arith.constant dense<0.000000e+00> : vector<8xf32>
    %57 = vector.multi_reduction <add>, %56, %cst_27 [1] : vector<8x128xf32> to vector<8xf32>
    %58 = vector.shape_cast %57 : vector<8xf32> to vector<8x1xf32>
    %cst_28 = arith.constant 1.280000e+02 : f32
    %59 = vector.broadcast %cst_28 : f32 to vector<8x1xf32>
    %60 = arith.divf %58, %59 : vector<8x1xf32>
    %61 = vector.broadcast %53 : vector<8x1xf32> to vector<8x128xf32>
    %62 = arith.subf %45, %61 : vector<8x128xf32>
    %cst_29 = arith.constant 9.99999974E-6 : f32
    %63 = vector.broadcast %cst_29 : f32 to vector<8x1xf32>
    %64 = arith.addf %60, %63 : vector<8x1xf32>
    %65 = math.rsqrt %64 : vector<8x1xf32>
    %66 = vector.broadcast %65 : vector<8x1xf32> to vector<8x128xf32>
    %67 = arith.mulf %62, %66 : vector<8x128xf32>
    %68 = vector.shape_cast %47 : vector<128xf32> to vector<1x128xf32>
    %69 = vector.broadcast %68 : vector<1x128xf32> to vector<8x128xf32>
    %70 = arith.mulf %67, %69 : vector<8x128xf32>
    %71 = vector.shape_cast %49 : vector<128xf32> to vector<1x128xf32>
    %72 = vector.broadcast %71 : vector<1x128xf32> to vector<8x128xf32>
    %73 = arith.addf %70, %72 : vector<8x128xf32>
    %74 = arith.truncf %73 : vector<8x128xf32> to vector<8x128xbf16>
    %c0_30 = arith.constant 0 : index
    %c0_31 = arith.constant 0 : index
    %c0_32 = arith.constant 0 : index
    %75 = vector.load %arg9[%c0_30, %c0_31, %c0_32] : memref<1x128x512xbf16, #tpu.memory_space<vmem>>, vector<1x128x512xbf16>
    %76 = vector.shape_cast %75 : vector<1x128x512xbf16> to vector<128x512xbf16>
    %cst_33 = arith.constant dense<0.000000e+00> : vector<8x512xf32>
    %77 = tpu.matmul %74, %76, %cst_33 {dimension_numbers = #tpu.dot_dimension_numbers<[1], [0], [0], [1], [0, 0, 1, 1], [], []>} : vector<8x128xbf16>, vector<128x512xbf16>, vector<8x512xf32> -> vector<8x512xf32>
    %c0_34 = arith.constant 0 : index
    %c0_35 = arith.constant 0 : index
    %c0_36 = arith.constant 0 : index
    %78 = vector.load %arg10[%c0_34, %c0_35, %c0_36] : memref<1x1x512xf32, #tpu.memory_space<vmem>>, vector<1x1x512xf32>
    %79 = vector.shape_cast %78 : vector<1x1x512xf32> to vector<512xf32>
    %80 = vector.shape_cast %79 : vector<512xf32> to vector<1x512xf32>
    %81 = vector.broadcast %80 : vector<1x512xf32> to vector<8x512xf32>
    %82 = arith.addf %77, %81 : vector<8x512xf32>
    %cst_37 = arith.constant 5.000000e-01 : f32
    %83 = vector.broadcast %cst_37 : f32 to vector<8x512xf32>
    %84 = arith.mulf %83, %82 : vector<8x512xf32>
    %cst_38 = arith.constant 0.707106769 : f32
    %85 = vector.broadcast %cst_38 : f32 to vector<8x512xf32>
    %86 = arith.mulf %82, %85 : vector<8x512xf32>
    %87 = math.erf %86 : vector<8x512xf32>
    %cst_39 = arith.constant 1.000000e+00 : f32
    %88 = vector.broadcast %cst_39 : f32 to vector<8x512xf32>
    %89 = arith.addf %88, %87 : vector<8x512xf32>
    %90 = arith.mulf %84, %89 : vector<8x512xf32>
    %91 = arith.truncf %90 : vector<8x512xf32> to vector<8x512xbf16>
    %c0_40 = arith.constant 0 : index
    %c0_41 = arith.constant 0 : index
    %c0_42 = arith.constant 0 : index
    %92 = vector.load %arg11[%c0_40, %c0_41, %c0_42] : memref<1x512x128xbf16, #tpu.memory_space<vmem>>, vector<1x512x128xbf16>
    %93 = vector.shape_cast %92 : vector<1x512x128xbf16> to vector<512x128xbf16>
    %cst_43 = arith.constant dense<0.000000e+00> : vector<8x128xf32>
    %94 = tpu.matmul %91, %93, %cst_43 {dimension_numbers = #tpu.dot_dimension_numbers<[1], [0], [0], [1], [0, 0, 1, 1], [], []>} : vector<8x512xbf16>, vector<512x128xbf16>, vector<8x128xf32> -> vector<8x128xf32>
    %c0_44 = arith.constant 0 : index
    %c0_45 = arith.constant 0 : index
    %c0_46 = arith.constant 0 : index
    %95 = vector.load %arg12[%c0_44, %c0_45, %c0_46] : memref<1x1x128xf32, #tpu.memory_space<vmem>>, vector<1x1x128xf32>
    %96 = vector.shape_cast %95 : vector<1x1x128xf32> to vector<128xf32>
    %97 = vector.shape_cast %96 : vector<128xf32> to vector<1x128xf32>
    %98 = vector.broadcast %97 : vector<1x128xf32> to vector<8x128xf32>
    %99 = arith.addf %94, %98 : vector<8x128xf32>
    %100 = arith.addf %73, %99 : vector<8x128xf32>
    %c0_47 = arith.constant 0 : index
    %c0_48 = arith.constant 0 : index
    %c0_49 = arith.constant 0 : index
    %101 = vector.load %arg13[%c0_47, %c0_48, %c0_49] : memref<1x1x128xf32, #tpu.memory_space<vmem>>, vector<1x1x128xf32>
    %102 = vector.shape_cast %101 : vector<1x1x128xf32> to vector<128xf32>
    %c0_50 = arith.constant 0 : index
    %c0_51 = arith.constant 0 : index
    %c0_52 = arith.constant 0 : index
    %103 = vector.load %arg14[%c0_50, %c0_51, %c0_52] : memref<1x1x128xf32, #tpu.memory_space<vmem>>, vector<1x1x128xf32>
    %104 = vector.shape_cast %103 : vector<1x1x128xf32> to vector<128xf32>
    %cst_53 = arith.constant dense<0.000000e+00> : vector<8xf32>
    %105 = vector.multi_reduction <add>, %100, %cst_53 [1] : vector<8x128xf32> to vector<8xf32>
    %106 = vector.shape_cast %105 : vector<8xf32> to vector<8x1xf32>
    %cst_54 = arith.constant 1.280000e+02 : f32
    %107 = vector.broadcast %cst_54 : f32 to vector<8x1xf32>
    %108 = arith.divf %106, %107 : vector<8x1xf32>
    %109 = vector.broadcast %108 : vector<8x1xf32> to vector<8x128xf32>
    %110 = arith.subf %100, %109 : vector<8x128xf32>
    %111 = arith.mulf %110, %110 : vector<8x128xf32>
    %cst_55 = arith.constant dense<0.000000e+00> : vector<8xf32>
    %112 = vector.multi_reduction <add>, %111, %cst_55 [1] : vector<8x128xf32> to vector<8xf32>
    %113 = vector.shape_cast %112 : vector<8xf32> to vector<8x1xf32>
    %cst_56 = arith.constant 1.280000e+02 : f32
    %114 = vector.broadcast %cst_56 : f32 to vector<8x1xf32>
    %115 = arith.divf %113, %114 : vector<8x1xf32>
    %116 = vector.broadcast %108 : vector<8x1xf32> to vector<8x128xf32>
    %117 = arith.subf %100, %116 : vector<8x128xf32>
    %cst_57 = arith.constant 9.99999974E-6 : f32
    %118 = vector.broadcast %cst_57 : f32 to vector<8x1xf32>
    %119 = arith.addf %115, %118 : vector<8x1xf32>
    %120 = math.rsqrt %119 : vector<8x1xf32>
    %121 = vector.broadcast %120 : vector<8x1xf32> to vector<8x128xf32>
    %122 = arith.mulf %117, %121 : vector<8x128xf32>
    %123 = vector.shape_cast %102 : vector<128xf32> to vector<1x128xf32>
    %124 = vector.broadcast %123 : vector<1x128xf32> to vector<8x128xf32>
    %125 = arith.mulf %122, %124 : vector<8x128xf32>
    %126 = vector.shape_cast %104 : vector<128xf32> to vector<1x128xf32>
    %127 = vector.broadcast %126 : vector<1x128xf32> to vector<8x128xf32>
    %128 = arith.addf %125, %127 : vector<8x128xf32>
    %c0_58 = arith.constant 0 : index
    %c0_59 = arith.constant 0 : index
    %129 = vector.load %arg18[%c0_58, %c0_59] : memref<8x128xf32, #tpu.memory_space<vmem>>, vector<8x128xf32>
    tpu.vector_store %arg18[%c0_58, %c0_59], %128 {strides = array<i32>} : memref<8x128xf32, #tpu.memory_space<vmem>>, vector<8x128xf32>,
    %c1_i32 = arith.constant 1 : i32
    %130 = arith.cmpi eq, %arg1, %c1_i32 : i32
    %131 = arith.extui %130 : i1 to i32
    %c0_i32_60 = arith.constant 0 : i32
    %132 = arith.cmpi ne, %131, %c0_i32_60 : i32
    scf.if %132 {
      %c0_61 = arith.constant 0 : index
      %c0_62 = arith.constant 0 : index
      %133 = vector.load %arg15[%c0_61, %c0_62] : memref<1x128xf32, #tpu.memory_space<vmem>>, vector<1x128xf32>
      %134 = vector.shape_cast %133 : vector<1x128xf32> to vector<128xf32>
      %c0_63 = arith.constant 0 : index
      %c0_64 = arith.constant 0 : index
      %135 = vector.load %arg16[%c0_63, %c0_64] : memref<1x128xf32, #tpu.memory_space<vmem>>, vector<1x128xf32>
      %136 = vector.shape_cast %135 : vector<1x128xf32> to vector<128xf32>
      %cst_65 = arith.constant dense<0.000000e+00> : vector<8xf32>
      %137 = vector.multi_reduction <add>, %128, %cst_65 [1] : vector<8x128xf32> to vector<8xf32>
      %138 = vector.shape_cast %137 : vector<8xf32> to vector<8x1xf32>
      %cst_66 = arith.constant 1.280000e+02 : f32
      %139 = vector.broadcast %cst_66 : f32 to vector<8x1xf32>
      %140 = arith.divf %138, %139 : vector<8x1xf32>
      %141 = vector.broadcast %140 : vector<8x1xf32> to vector<8x128xf32>
      %142 = arith.subf %128, %141 : vector<8x128xf32>
      %143 = arith.mulf %142, %142 : vector<8x128xf32>
      %cst_67 = arith.constant dense<0.000000e+00> : vector<8xf32>
      %144 = vector.multi_reduction <add>, %143, %cst_67 [1] : vector<8x128xf32> to vector<8xf32>
      %145 = vector.shape_cast %144 : vector<8xf32> to vector<8x1xf32>
      %cst_68 = arith.constant 1.280000e+02 : f32
      %146 = vector.broadcast %cst_68 : f32 to vector<8x1xf32>
      %147 = arith.divf %145, %146 : vector<8x1xf32>
      %148 = vector.broadcast %140 : vector<8x1xf32> to vector<8x128xf32>
      %149 = arith.subf %128, %148 : vector<8x128xf32>
      %cst_69 = arith.constant 9.99999974E-6 : f32
      %150 = vector.broadcast %cst_69 : f32 to vector<8x1xf32>
      %151 = arith.addf %147, %150 : vector<8x1xf32>
      %152 = math.rsqrt %151 : vector<8x1xf32>
      %153 = vector.broadcast %152 : vector<8x1xf32> to vector<8x128xf32>
      %154 = arith.mulf %149, %153 : vector<8x128xf32>
      %155 = vector.shape_cast %134 : vector<128xf32> to vector<1x128xf32>
      %156 = vector.broadcast %155 : vector<1x128xf32> to vector<8x128xf32>
      %157 = arith.mulf %154, %156 : vector<8x128xf32>
      %158 = vector.shape_cast %136 : vector<128xf32> to vector<1x128xf32>
      %159 = vector.broadcast %158 : vector<1x128xf32> to vector<8x128xf32>
      %160 = arith.addf %157, %159 : vector<8x128xf32>
      %c0_70 = arith.constant 0 : index
      %c0_71 = arith.constant 0 : index
      %c0_72 = arith.constant 0 : index
      %161 = vector.load %arg17[%c0_70, %c0_71, %c0_72] : memref<1x8x128xf32, #tpu.memory_space<vmem>>, vector<1x8x128xf32>
      %162 = vector.shape_cast %161 : vector<1x8x128xf32> to vector<8x128xf32>
      %163 = vector.shape_cast %160 : vector<8x128xf32> to vector<1x8x128xf32>
      tpu.vector_store %arg17[%c0_70, %c0_71, %c0_72], %163 {strides = array<i32>} : memref<1x8x128xf32, #tpu.memory_space<vmem>>, vector<1x8x128xf32>,
    } else {
    }
    return
  }
  func.func @transform_0(%arg0: i32, %arg1: i32) -> (i32, i32, i32) {
    %c0_i32 = arith.constant 0 : i32
    %c0_i32_0 = arith.constant 0 : i32
    %c0_i32_1 = arith.constant 0 : i32
    return %arg0, %c0_i32, %c0_i32_0 : i32, i32, i32
  }
  func.func @transform_1(%arg0: i32, %arg1: i32) -> (i32, i32, i32) {
    %c0_i32 = arith.constant 0 : i32
    %c0_i32_0 = arith.constant 0 : i32
    %c0_i32_1 = arith.constant 0 : i32
    return %arg1, %c0_i32, %c0_i32_0 : i32, i32, i32
  }
  func.func @transform_2(%arg0: i32, %arg1: i32) -> (i32, i32, i32) {
    %c0_i32 = arith.constant 0 : i32
    %c0_i32_0 = arith.constant 0 : i32
    %c0_i32_1 = arith.constant 0 : i32
    return %arg1, %c0_i32, %c0_i32_0 : i32, i32, i32
  }
  func.func @transform_3(%arg0: i32, %arg1: i32) -> (i32, i32, i32) {
    %c0_i32 = arith.constant 0 : i32
    %c0_i32_0 = arith.constant 0 : i32
    %c0_i32_1 = arith.constant 0 : i32
    return %arg1, %c0_i32, %c0_i32_0 : i32, i32, i32
  }
  func.func @transform_4(%arg0: i32, %arg1: i32) -> (i32, i32, i32) {
    %c0_i32 = arith.constant 0 : i32
    %c0_i32_0 = arith.constant 0 : i32
    %c0_i32_1 = arith.constant 0 : i32
    return %arg1, %c0_i32, %c0_i32_0 : i32, i32, i32
  }
  func.func @transform_5(%arg0: i32, %arg1: i32) -> (i32, i32, i32) {
    %c0_i32 = arith.constant 0 : i32
    %c0_i32_0 = arith.constant 0 : i32
    %c0_i32_1 = arith.constant 0 : i32
    return %arg1, %c0_i32, %c0_i32_0 : i32, i32, i32
  }
  func.func @transform_6(%arg0: i32, %arg1: i32) -> (i32, i32, i32) {
    %c0_i32 = arith.constant 0 : i32
    %c0_i32_0 = arith.constant 0 : i32
    %c0_i32_1 = arith.constant 0 : i32
    return %arg1, %c0_i32, %c0_i32_0 : i32, i32, i32
  }
  func.func @transform_7(%arg0: i32, %arg1: i32) -> (i32, i32, i32) {
    %c0_i32 = arith.constant 0 : i32
    %c0_i32_0 = arith.constant 0 : i32
    %c0_i32_1 = arith.constant 0 : i32
    return %arg1, %c0_i32, %c0_i32_0 : i32, i32, i32
  }
  func.func @transform_8(%arg0: i32, %arg1: i32) -> (i32, i32, i32) {
    %c0_i32 = arith.constant 0 : i32
    %c0_i32_0 = arith.constant 0 : i32
    %c0_i32_1 = arith.constant 0 : i32
    return %arg1, %c0_i32, %c0_i32_0 : i32, i32, i32
  }
  func.func @transform_9(%arg0: i32, %arg1: i32) -> (i32, i32, i32) {
    %c0_i32 = arith.constant 0 : i32
    %c0_i32_0 = arith.constant 0 : i32
    %c0_i32_1 = arith.constant 0 : i32
    return %arg1, %c0_i32, %c0_i32_0 : i32, i32, i32
  }
  func.func @transform_10(%arg0: i32, %arg1: i32) -> (i32, i32, i32) {
    %c0_i32 = arith.constant 0 : i32
    %c0_i32_0 = arith.constant 0 : i32
    %c0_i32_1 = arith.constant 0 : i32
    return %arg1, %c0_i32, %c0_i32_0 : i32, i32, i32
  }
  func.func @transform_11(%arg0: i32, %arg1: i32) -> (i32, i32, i32) {
    %c0_i32 = arith.constant 0 : i32
    %c0_i32_0 = arith.constant 0 : i32
    %c0_i32_1 = arith.constant 0 : i32
    return %arg1, %c0_i32, %c0_i32_0 : i32, i32, i32
  }
  func.func @transform_12(%arg0: i32, %arg1: i32) -> (i32, i32, i32) {
    %c0_i32 = arith.constant 0 : i32
    %c0_i32_0 = arith.constant 0 : i32
    %c0_i32_1 = arith.constant 0 : i32
    return %arg1, %c0_i32, %c0_i32_0 : i32, i32, i32
  }
  func.func @transform_13(%arg0: i32, %arg1: i32) -> (i32, i32) {
    %c0_i32 = arith.constant 0 : i32
    %c0_i32_0 = arith.constant 0 : i32
    %c0_i32_1 = arith.constant 0 : i32
    return %c0_i32, %c0_i32_0 : i32, i32
  }
  func.func @transform_14(%arg0: i32, %arg1: i32) -> (i32, i32) {
    %c0_i32 = arith.constant 0 : i32
    %c0_i32_0 = arith.constant 0 : i32
    %c0_i32_1 = arith.constant 0 : i32
    return %c0_i32, %c0_i32_0 : i32, i32
  }
  func.func @transform_15(%arg0: i32, %arg1: i32) -> (i32, i32, i32) {
    %c0_i32 = arith.constant 0 : i32
    %c0_i32_0 = arith.constant 0 : i32
    %c0_i32_1 = arith.constant 0 : i32
    return %arg0, %c0_i32, %c0_i32_0 : i32, i32, i32
  }
}

</mosaic_0001>

<llo_original>
// kernel: tpu_custom_call.1
$region0: #{tpu_custom_call.1}
  #allocation0 [shape = 'u32[]', space=smem, size = 0x4, offset = 0x4, fixed_abs, tag = 'smem constant byte address 0x4 - core index']
  #allocation1 [shape = 'u32[144,128]{1,0:T(1,128)}', space=vmem, size = 0x12000, scoped, tag = 'internal scratch']
  #allocation2 [shape = 'f32[8,128]{1,0:T(8,128)}', space=vmem, size = 0x1000, scoped, tag = 'scratch operand']
  %s0 = inlined_call_operand.hbm [shape: f32[2,8,128], index: 0, kind: input, shape index: {}]
  %s1 = inlined_call_operand.hbm [shape: bf16[2,128,384], index: 1, kind: input, shape index: {}]
  %s2 = inlined_call_operand.vmem [shape: f32[2,1,384], index: 2, kind: input, shape index: {}]
  %s3 = inlined_call_operand.hbm [shape: bf16[2,128,128], index: 3, kind: input, shape index: {}]
  %s4 = inlined_call_operand.hbm [shape: f32[2,1,128], index: 4, kind: input, shape index: {}]
  %s5 = inlined_call_operand.vmem [shape: f32[2,1,128], index: 5, kind: input, shape index: {}]
  %s6 = inlined_call_operand.vmem [shape: f32[2,1,128], index: 6, kind: input, shape index: {}]
  %s7 = inlined_call_operand.hbm [shape: bf16[2,128,512], index: 7, kind: input, shape index: {}]
  %s8 = inlined_call_operand.vmem [shape: f32[2,1,512], index: 8, kind: input, shape index: {}]
  %s9 = inlined_call_operand.hbm [shape: bf16[2,512,128], index: 9, kind: input, shape index: {}]
  %s10 = inlined_call_operand.vmem [shape: f32[2,1,128], index: 10, kind: input, shape index: {}]
  %s11 = inlined_call_operand.vmem [shape: f32[2,1,128], index: 11, kind: input, shape index: {}]
  %s12 = inlined_call_operand.vmem [shape: f32[2,1,128], index: 12, kind: input, shape index: {}]
  %s13 = inlined_call_operand.vmem [shape: f32[1,128], index: 13, kind: input, shape index: {}]
  %s14 = inlined_call_operand.vmem [shape: f32[1,128], index: 14, kind: input, shape index: {}]
  %s15 = inlined_call_operand.hbm [shape: f32[2,8,128], index: 15, kind: output, shape index: {}]
  %s16 = sld [smem:[#allocation0]]
  $region125: #{tpu_custom_call.1} parent=0
    _
  %s18 = ssub.s32 1, %s16
  %s19 = scalar_select 0, %s18, %s16
  $region1: #{tpu_custom_call.1} parent=0
    #allocation3 [shape = 'u8[8192]{0}', space=vmem, size = 0x2000, scoped, tag = 'input window, operand 0']
    #allocation4 [shape = 's32[2]{0}', space=sflag, size = 0x8, scoped, tag = 'scoped memory for tpu_custom_call.1']
    #allocation5 [shape = 's32[2]{0}', space=sflag, size = 0x8, scoped, tag = 'scoped memory for tpu_custom_call.1']
    #allocation6 [shape = 'u8[196608]{0}', space=vmem, size = 0x30000, scoped, tag = 'input window, operand 1']
    #allocation7 [shape = 's32[2]{0}', space=sflag, size = 0x8, scoped, tag = 'scoped memory for tpu_custom_call.1']
    #allocation8 [shape = 'u8[65536]{0}', space=vmem, size = 0x10000, scoped, tag = 'input window, operand 3']
    #allocation9 [shape = 'u8[1024]{0}', space=vmem, size = 0x400, scoped, tag = 'input window, operand 4']
    #allocation10 [shape = 's32[2]{0}', space=sflag, size = 0x8, scoped, tag = 'scoped memory for tpu_custom_call.1']
    #allocation11 [shape = 'u8[262144]{0}', space=vmem, size = 0x40000, scoped, tag = 'input window, operand 7']
    #allocation12 [shape = 'u8[262144]{0}', space=vmem, size = 0x40000, scoped, tag = 'input window, operand 9']
    #allocation13 [shape = 's32[2]{0}', space=sflag, size = 0x8, scoped, tag = 'scoped memory for tpu_custom_call.1']
    #allocation14 [shape = 'u8[8192]{0}', space=vmem, size = 0x2000, scoped, tag = 'output window, operand 0']
    %20 = vsyncpa [#allocation4], 0
    %s21 = scalar_lea.sflag [#allocation4], 1
    %22 = vsyncpa %s21, 0
    %23 = vsyncpa [#allocation7], 0
    %s24 = scalar_lea.sflag [#allocation7], 1
    %25 = vsyncpa %s24, 0
    %26 = vsyncpa [#allocation10], 0
    %s27 = scalar_lea.sflag [#allocation10], 1
    %28 = vsyncpa %s27, 0
    %29 = vsyncpa [#allocation13], 0
    %s30 = scalar_lea.sflag [#allocation13], 1
    %31 = vsyncpa %s30, 0
    %32 = vsyncpa [#allocation5], 0
    %s33 = scalar_lea.sflag [#allocation5], 1
    %34 = vsyncpa %s33, 0
    loop: start=0, step=1, limit=6
    $region2: #{tpu_custom_call.1} parent=1 // loop_pre_header
      _
    $region3: #{tpu_custom_call.1} parent=1 // loop_header
      %s36 = sphi 0, %s40
      %p37 = scmp.ge.s32.totalorder %s36, 6
      %s43 = sphi 0, %s55
      %s44 = sphi 0, %s51
      %s45 = sphi 0, %s43
      %s46 = sphi 0, %s44
      %s47 = sphi 0, %s45
      %s48 = sphi 0, %s46
      %s58 = sphi 0, %s60
      %s61 = sphi 0, %s58
      %s62 = sphi 0, %s61
      %s78 = sphi 0, %s62
      %s84 = sphi 0, %s86
      %s87 = sphi 0, %s84
      %s88 = sphi 0, %s87
      %s104 = sphi 0, %s88
      %s110 = sphi 0, %s112
      %s113 = sphi 0, %s110
      %s114 = sphi 0, %s113
      %s130 = sphi 0, %s114
      %s136 = sphi 0, %s138
      %s139 = sphi 0, %s136
      %s140 = sphi 0, %s139
      %s156 = sphi 0, %s140
      %s162 = sphi 0, %s164
      %s165 = sphi 0, %s162
      %s166 = sphi 0, %s165
      %s182 = sphi 0, %s166
      %s188 = sphi 0, %s190
      %s191 = sphi 0, %s188
      %s192 = sphi 0, %s191
      %s208 = sphi 0, %s192
      %s214 = sphi 0, %s216
      %s217 = sphi 0, %s214
      %s218 = sphi 0, %s217
      %s234 = sphi 0, %s218
      %s240 = sphi 0, %s242
      %s243 = sphi 0, %s240
      %s244 = sphi 0, %s243
      %s260 = sphi 0, %s244
      %s266 = sphi 0, %s268
      %s269 = sphi 0, %s266
      %s270 = sphi 0, %s269
      %s286 = sphi 0, %s270
      %s292 = sphi 0, %s294
      %s295 = sphi 0, %s292
      %s296 = sphi 0, %s295
      %s312 = sphi 0, %s296
      %s318 = sphi 0, %s320
      %s321 = sphi 0, %s318
      %s322 = sphi 0, %s321
      %s338 = sphi 0, %s322
      %s344 = sphi 0, %s346
      %s347 = sphi 0, %s344
      %s348 = sphi 0, %s347
      %s364 = sphi 0, %s348
      %s370 = sphi 0, %s372
      %s373 = sphi 0, %s370
      %s374 = sphi 0, %s373
      %s390 = sphi 0, %s374
      %s394 = sphi 0, %s394
      %s396 = sphi 0, %s394
      %s397 = sphi 0, %s396
      %s411 = sphi 0, %s397
      %s415 = sphi 0, %s415
      %s417 = sphi 0, %s415
      %s418 = sphi 0, %s417
      %s432 = sphi 0, %s418
      %s438 = sphi 0, %s440
      %s441 = sphi 0, %s438
      %s442 = sphi 0, %s441
      %s458 = sphi 0, %s442
    $region4: #{tpu_custom_call.1} parent=1 // loop_header_branch
      %39 = sbr.rel (%p37) target = $region8
    $region5: #{tpu_custom_call.1} parent=1 // loop_body
      %s41 = ssub.s32 %s36, 1
      %s42 = ssub.s32 %s36, 2
      %s49 = sadd.s32 1, %s44
      %p50 = scmp.ge.s32.totalorder %s49, 2
      %s51 = scalar_select %p50, 0, %s49
      %s52 = sadd.s32 1, %s43
      %s53 = scalar_select %p50, %s52, %s43
      %p54 = scmp.ge.s32.totalorder %s53, 2
      %s55 = scalar_select %p54, 0, %s53
      %s56 = ssub.s32 %s43, %s55
      %p57 = scmp.eq.s32.totalorder %s56, 0
      %s59 = sadd.s32 %s58, 1
      %s60 = scalar_select %p57, %s58, %s59
      %p63 = pneg %p57
      %p64 = scmp.eq.s32.totalorder %s36, 3
      %p65 = por %p63, %p64
      %p66 = scmp.ne.s32.totalorder %s58, %s61
      %p67 = scmp.eq.s32.totalorder %s36, 0
      %p68 = por %p66, %p67
      %p69 = scmp.ne.s32.totalorder %s58, %s61
      %p70 = scmp.eq.s32.totalorder %s41, 3
      %p71 = por %p69, %p70
      %p72 = scmp.ne.s32.totalorder %s61, %s62
      %p73 = scmp.eq.s32.totalorder %s41, 0
      %p74 = por %p72, %p73
      %p75 = scmp.ne.s32.totalorder %s61, %s62
      %p76 = scmp.eq.s32.totalorder %s42, 3
      %p77 = por %p75, %p76
      %p79 = scmp.ne.s32.totalorder %s62, %s78
      %p80 = scmp.eq.s32.totalorder %s42, 0
      %p81 = por %p79, %p80
      %s82 = ssub.s32 %s44, %s51
      %p83 = scmp.eq.s32.totalorder %s82, 0
      %s85 = sadd.s32 %s84, 1
      %s86 = scalar_select %p83, %s84, %s85
      %p89 = pneg %p83
      %p90 = scmp.eq.s32.totalorder %s36, 3
      %p91 = por %p89, %p90
      %p92 = scmp.ne.s32.totalorder %s84, %s87
      %p93 = scmp.eq.s32.totalorder %s36, 0
      %p94 = por %p92, %p93
      %p95 = scmp.ne.s32.totalorder %s84, %s87
      %p96 = scmp.eq.s32.totalorder %s41, 3
      %p97 = por %p95, %p96
      %p98 = scmp.ne.s32.totalorder %s87, %s88
      %p99 = scmp.eq.s32.totalorder %s41, 0
      %p100 = por %p98, %p99
      %p101 = scmp.ne.s32.totalorder %s87, %s88
      %p102 = scmp.eq.s32.totalorder %s42, 3
      %p103 = por %p101, %p102
      %p105 = scmp.ne.s32.totalorder %s88, %s104
      %p106 = scmp.eq.s32.totalorder %s42, 0
      %p107 = por %p105, %p106
      %s108 = ssub.s32 %s44, %s51
      %p109 = scmp.eq.s32.totalorder %s108, 0
      %s111 = sadd.s32 %s110, 1
      %s112 = scalar_select %p109, %s110, %s111
      %p115 = pneg %p109
      %p116 = scmp.eq.s32.totalorder %s36, 3
      %p117 = por %p115, %p116
      %p118 = scmp.ne.s32.totalorder %s110, %s113
      %p119 = scmp.eq.s32.totalorder %s36, 0
      %p120 = por %p118, %p119
      %p121 = scmp.ne.s32.totalorder %s110, %s113
      %p122 = scmp.eq.s32.totalorder %s41, 3
      %p123 = por %p121, %p122
      %p124 = scmp.ne.s32.totalorder %s113, %s114
      %p125 = scmp.eq.s32.totalorder %s41, 0
      %p126 = por %p124, %p125
      %p127 = scmp.ne.s32.totalorder %s113, %s114
      %p128 = scmp.eq.s32.totalorder %s42, 3
      %p129 = por %p127, %p128
      %p131 = scmp.ne.s32.totalorder %s114, %s130
      %p132 = scmp.eq.s32.totalorder %s42, 0
      %p133 = por %p131, %p132
      %s134 = ssub.s32 %s44, %s51
      %p135 = scmp.eq.s32.totalorder %s134, 0
      %s137 = sadd.s32 %s136, 1
      %s138 = scalar_select %p135, %s136, %s137
      %p141 = pneg %p135
      %p142 = scmp.eq.s32.totalorder %s36, 3
      %p143 = por %p141, %p142
      %p144 = scmp.ne.s32.totalorder %s136, %s139
      %p145 = scmp.eq.s32.totalorder %s36, 0
      %p146 = por %p144, %p145
      %p147 = scmp.ne.s32.totalorder %s136, %s139
      %p148 = scmp.eq.s32.totalorder %s41, 3
      %p149 = por %p147, %p148
      %p150 = scmp.ne.s32.totalorder %s139, %s140
      %p151 = scmp.eq.s32.totalorder %s41, 0
      %p152 = por %p150, %p151
      %p153 = scmp.ne.s32.totalorder %s139, %s140
      %p154 = scmp.eq.s32.totalorder %s42, 3
      %p155 = por %p153, %p154
      %p157 = scmp.ne.s32.totalorder %s140, %s156
      %p158 = scmp.eq.s32.totalorder %s42, 0
      %p159 = por %p157, %p158
      %s160 = ssub.s32 %s44, %s51
      %p161 = scmp.eq.s32.totalorder %s160, 0
      %s163 = sadd.s32 %s162, 1
      %s164 = scalar_select %p161, %s162, %s163
      %p167 = pneg %p161
      %p168 = scmp.eq.s32.totalorder %s36, 3
      %p169 = por %p167, %p168
      %p170 = scmp.ne.s32.totalorder %s162, %s165
      %p171 = scmp.eq.s32.totalorder %s36, 0
      %p172 = por %p170, %p171
      %p173 = scmp.ne.s32.totalorder %s162, %s165
      %p174 = scmp.eq.s32.totalorder %s41, 3
      %p175 = por %p173, %p174
      %p176 = scmp.ne.s32.totalorder %s165, %s166
      %p177 = scmp.eq.s32.totalorder %s41, 0
      %p178 = por %p176, %p177
      %p179 = scmp.ne.s32.totalorder %s165, %s166
      %p180 = scmp.eq.s32.totalorder %s42, 3
      %p181 = por %p179, %p180
      %p183 = scmp.ne.s32.totalorder %s166, %s182
      %p184 = scmp.eq.s32.totalorder %s42, 0
      %p185 = por %p183, %p184
      %s186 = ssub.s32 %s44, %s51
      %p187 = scmp.eq.s32.totalorder %s186, 0
      %s189 = sadd.s32 %s188, 1
      %s190 = scalar_select %p187, %s188, %s189
      %p193 = pneg %p187
      %p194 = scmp.eq.s32.totalorder %s36, 3
      %p195 = por %p193, %p194
      %p196 = scmp.ne.s32.totalorder %s188, %s191
      %p197 = scmp.eq.s32.totalorder %s36, 0
      %p198 = por %p196, %p197
      %p199 = scmp.ne.s32.totalorder %s188, %s191
      %p200 = scmp.eq.s32.totalorder %s41, 3
      %p201 = por %p199, %p200
      %p202 = scmp.ne.s32.totalorder %s191, %s192
      %p203 = scmp.eq.s32.totalorder %s41, 0
      %p204 = por %p202, %p203
      %p205 = scmp.ne.s32.totalorder %s191, %s192
      %p206 = scmp.eq.s32.totalorder %s42, 3
      %p207 = por %p205, %p206
      %p209 = scmp.ne.s32.totalorder %s192, %s208
      %p210 = scmp.eq.s32.totalorder %s42, 0
      %p211 = por %p209, %p210
      %s212 = ssub.s32 %s44, %s51
      %p213 = scmp.eq.s32.totalorder %s212, 0
      %s215 = sadd.s32 %s214, 1
      %s216 = scalar_select %p213, %s214, %s215
      %p219 = pneg %p213
      %p220 = scmp.eq.s32.totalorder %s36, 3
      %p221 = por %p219, %p220
      %p222 = scmp.ne.s32.totalorder %s214, %s217
      %p223 = scmp.eq.s32.totalorder %s36, 0
      %p224 = por %p222, %p223
      %p225 = scmp.ne.s32.totalorder %s214, %s217
      %p226 = scmp.eq.s32.totalorder %s41, 3
      %p227 = por %p225, %p226
      %p228 = scmp.ne.s32.totalorder %s217, %s218
      %p229 = scmp.eq.s32.totalorder %s41, 0
      %p230 = por %p228, %p229
      %p231 = scmp.ne.s32.totalorder %s217, %s218
      %p232 = scmp.eq.s32.totalorder %s42, 3
      %p233 = por %p231, %p232
      %p235 = scmp.ne.s32.totalorder %s218, %s234
      %p236 = scmp.eq.s32.totalorder %s42, 0
      %p237 = por %p235, %p236
      %s238 = ssub.s32 %s44, %s51
      %p239 = scmp.eq.s32.totalorder %s238, 0
      %s241 = sadd.s32 %s240, 1
      %s242 = scalar_select %p239, %s240, %s241
      %p245 = pneg %p239
      %p246 = scmp.eq.s32.totalorder %s36, 3
      %p247 = por %p245, %p246
      %p248 = scmp.ne.s32.totalorder %s240, %s243
      %p249 = scmp.eq.s32.totalorder %s36, 0
      %p250 = por %p248, %p249
      %p251 = scmp.ne.s32.totalorder %s240, %s243
      %p252 = scmp.eq.s32.totalorder %s41, 3
      %p253 = por %p251, %p252
      %p254 = scmp.ne.s32.totalorder %s243, %s244
      %p255 = scmp.eq.s32.totalorder %s41, 0
      %p256 = por %p254, %p255
      %p257 = scmp.ne.s32.totalorder %s243, %s244
      %p258 = scmp.eq.s32.totalorder %s42, 3
      %p259 = por %p257, %p258
      %p261 = scmp.ne.s32.totalorder %s244, %s260
      %p262 = scmp.eq.s32.totalorder %s42, 0
      %p263 = por %p261, %p262
      %s264 = ssub.s32 %s44, %s51
      %p265 = scmp.eq.s32.totalorder %s264, 0
      %s267 = sadd.s32 %s266, 1
      %s268 = scalar_select %p265, %s266, %s267
      %p271 = pneg %p265
      %p272 = scmp.eq.s32.totalorder %s36, 3
      %p273 = por %p271, %p272
      %p274 = scmp.ne.s32.totalorder %s266, %s269
      %p275 = scmp.eq.s32.totalorder %s36, 0
      %p276 = por %p274, %p275
      %p277 = scmp.ne.s32.totalorder %s266, %s269
      %p278 = scmp.eq.s32.totalorder %s41, 3
      %p279 = por %p277, %p278
      %p280 = scmp.ne.s32.totalorder %s269, %s270
      %p281 = scmp.eq.s32.totalorder %s41, 0
      %p282 = por %p280, %p281
      %p283 = scmp.ne.s32.totalorder %s269, %s270
      %p284 = scmp.eq.s32.totalorder %s42, 3
      %p285 = por %p283, %p284
      %p287 = scmp.ne.s32.totalorder %s270, %s286
      %p288 = scmp.eq.s32.totalorder %s42, 0
      %p289 = por %p287, %p288
      %s290 = ssub.s32 %s44, %s51
      %p291 = scmp.eq.s32.totalorder %s290, 0
      %s293 = sadd.s32 %s292, 1
      %s294 = scalar_select %p291, %s292, %s293
      %p297 = pneg %p291
      %p298 = scmp.eq.s32.totalorder %s36, 3
      %p299 = por %p297, %p298
      %p300 = scmp.ne.s32.totalorder %s292, %s295
      %p301 = scmp.eq.s32.totalorder %s36, 0
      %p302 = por %p300, %p301
      %p303 = scmp.ne.s32.totalorder %s292, %s295
      %p304 = scmp.eq.s32.totalorder %s41, 3
      %p305 = por %p303, %p304
      %p306 = scmp.ne.s32.totalorder %s295, %s296
      %p307 = scmp.eq.s32.totalorder %s41, 0
      %p308 = por %p306, %p307
      %p309 = scmp.ne.s32.totalorder %s295, %s296
      %p310 = scmp.eq.s32.totalorder %s42, 3
      %p311 = por %p309, %p310
      %p313 = scmp.ne.s32.totalorder %s296, %s312
      %p314 = scmp.eq.s32.totalorder %s42, 0
      %p315 = por %p313, %p314
      %s316 = ssub.s32 %s44, %s51
      %p317 = scmp.eq.s32.totalorder %s316, 0
      %s319 = sadd.s32 %s318, 1
      %s320 = scalar_select %p317, %s318, %s319
      %p323 = pneg %p317
      %p324 = scmp.eq.s32.totalorder %s36, 3
      %p325 = por %p323, %p324
      %p326 = scmp.ne.s32.totalorder %s318, %s321
      %p327 = scmp.eq.s32.totalorder %s36, 0
      %p328 = por %p326, %p327
      %p329 = scmp.ne.s32.totalorder %s318, %s321
      %p330 = scmp.eq.s32.totalorder %s41, 3
      %p331 = por %p329, %p330
      %p332 = scmp.ne.s32.totalorder %s321, %s322
      %p333 = scmp.eq.s32.totalorder %s41, 0
      %p334 = por %p332, %p333
      %p335 = scmp.ne.s32.totalorder %s321, %s322
      %p336 = scmp.eq.s32.totalorder %s42, 3
      %p337 = por %p335, %p336
      %p339 = scmp.ne.s32.totalorder %s322, %s338
      %p340 = scmp.eq.s32.totalorder %s42, 0
      %p341 = por %p339, %p340
      %s342 = ssub.s32 %s44, %s51
      %p343 = scmp.eq.s32.totalorder %s342, 0
      %s345 = sadd.s32 %s344, 1
      %s346 = scalar_select %p343, %s344, %s345
      %p349 = pneg %p343
      %p350 = scmp.eq.s32.totalorder %s36, 3
      %p351 = por %p349, %p350
      %p352 = scmp.ne.s32.totalorder %s344, %s347
      %p353 = scmp.eq.s32.totalorder %s36, 0
      %p354 = por %p352, %p353
      %p355 = scmp.ne.s32.totalorder %s344, %s347
      %p356 = scmp.eq.s32.totalorder %s41, 3
      %p357 = por %p355, %p356
      %p358 = scmp.ne.s32.totalorder %s347, %s348
      %p359 = scmp.eq.s32.totalorder %s41, 0
      %p360 = por %p358, %p359
      %p361 = scmp.ne.s32.totalorder %s347, %s348
      %p362 = scmp.eq.s32.totalorder %s42, 3
      %p363 = por %p361, %p362
      %p365 = scmp.ne.s32.totalorder %s348, %s364
      %p366 = scmp.eq.s32.totalorder %s42, 0
      %p367 = por %p365, %p366
      %s368 = ssub.s32 %s44, %s51
      %p369 = scmp.eq.s32.totalorder %s368, 0
      %s371 = sadd.s32 %s370, 1
      %s372 = scalar_select %p369, %s370, %s371
      %p375 = pneg %p369
      %p376 = scmp.eq.s32.totalorder %s36, 3
      %p377 = por %p375, %p376
      %p378 = scmp.ne.s32.totalorder %s370, %s373
      %p379 = scmp.eq.s32.totalorder %s36, 0
      %p380 = por %p378, %p379
      %p381 = scmp.ne.s32.totalorder %s370, %s373
      %p382 = scmp.eq.s32.totalorder %s41, 3
      %p383 = por %p381, %p382
      %p384 = scmp.ne.s32.totalorder %s373, %s374
      %p385 = scmp.eq.s32.totalorder %s41, 0
      %p386 = por %p384, %p385
      %p387 = scmp.ne.s32.totalorder %s373, %s374
      %p388 = scmp.eq.s32.totalorder %s42, 3
      %p389 = por %p387, %p388
      %p391 = scmp.ne.s32.totalorder %s374, %s390
      %p392 = scmp.eq.s32.totalorder %s42, 0
      %p393 = por %p391, %p392
      %s395 = sadd.s32 %s394, 1
      %p398 = scmp.eq.s32.totalorder %s36, 3
      %p399 = scmp.ne.s32.totalorder %s394, %s396
      %p400 = scmp.eq.s32.totalorder %s36, 0
      %p401 = por %p399, %p400
      %p402 = scmp.ne.s32.totalorder %s394, %s396
      %p403 = scmp.eq.s32.totalorder %s41, 3
      %p404 = por %p402, %p403
      %p405 = scmp.ne.s32.totalorder %s396, %s397
      %p406 = scmp.eq.s32.totalorder %s41, 0
      %p407 = por %p405, %p406
      %p408 = scmp.ne.s32.totalorder %s396, %s397
      %p409 = scmp.eq.s32.totalorder %s42, 3
      %p410 = por %p408, %p409
      %p412 = scmp.ne.s32.totalorder %s397, %s411
      %p413 = scmp.eq.s32.totalorder %s42, 0
      %p414 = por %p412, %p413
      %s416 = sadd.s32 %s415, 1
      %p419 = scmp.eq.s32.totalorder %s36, 3
      %p420 = scmp.ne.s32.totalorder %s415, %s417
      %p421 = scmp.eq.s32.totalorder %s36, 0
      %p422 = por %p420, %p421
      %p423 = scmp.ne.s32.totalorder %s415, %s417
      %p424 = scmp.eq.s32.totalorder %s41, 3
      %p425 = por %p423, %p424
      %p426 = scmp.ne.s32.totalorder %s417, %s418
      %p427 = scmp.eq.s32.totalorder %s41, 0
      %p428 = por %p426, %p427
      %p429 = scmp.ne.s32.totalorder %s417, %s418
      %p430 = scmp.eq.s32.totalorder %s42, 3
      %p431 = por %p429, %p430
      %p433 = scmp.ne.s32.totalorder %s418, %s432
      %p434 = scmp.eq.s32.totalorder %s42, 0
      %p435 = por %p433, %p434
      %s436 = ssub.s32 %s43, %s55
      %p437 = scmp.eq.s32.totalorder %s436, 0
      %s439 = sadd.s32 %s438, 1
      %s440 = scalar_select %p437, %s438, %s439
      %p443 = pneg %p437
      %p444 = scmp.eq.s32.totalorder %s36, 3
      %p445 = por %p443, %p444
      %p446 = scmp.ne.s32.totalorder %s438, %s441
      %p447 = scmp.eq.s32.totalorder %s36, 0
      %p448 = por %p446, %p447
      %p449 = scmp.ne.s32.totalorder %s438, %s441
      %p450 = scmp.eq.s32.totalorder %s41, 3
      %p451 = por %p449, %p450
      %p452 = scmp.ne.s32.totalorder %s441, %s442
      %p453 = scmp.eq.s32.totalorder %s41, 0
      %p454 = por %p452, %p453
      %p455 = scmp.ne.s32.totalorder %s441, %s442
      %p456 = scmp.eq.s32.totalorder %s42, 3
      %p457 = por %p455, %p456
      %p459 = scmp.ne.s32.totalorder %s442, %s458
      %p460 = scmp.eq.s32.totalorder %s42, 0
      %p461 = por %p459, %p460
      %p462 = scmp.le.s32.totalorder 1, %s36
      %p463 = scmp.lt.s32.totalorder %s36, 5
      %p464 = pnand %p462, %p463
      %p465 = pneg %p464
      // Predicated region
      $region9: #{tpu_custom_call.1} parent=5 // pred_check
        _
      $region10: #{tpu_custom_call.1} parent=5 // pred_check_branch
        %467 = sbr.rel (%p464) target = $region12
      $region11: #{tpu_custom_call.1} parent=5 // pred_region
        %s468 = ssub.s32 %s36, 1
        // Predicated region
        $region13: #{tpu_custom_call.1} parent=11 // pred_check
          %p469 = pneg %p407
        $region14: #{tpu_custom_call.1} parent=11 // pred_check_branch
          %471 = sbr.rel (%p469) target = $region16
        $region15: #{tpu_custom_call.1} parent=11 // pred_region
          _
        $region16: #{tpu_custom_call.1} parent=11 // pred_fallthru
          _
        // Predicated region
        $region17: #{tpu_custom_call.1} parent=11 // pred_check
          %p472 = pneg %p428
        $region18: #{tpu_custom_call.1} parent=11 // pred_check_branch
          %474 = sbr.rel (%p472) target = $region20
        $region19: #{tpu_custom_call.1} parent=11 // pred_region
          _
        $region20: #{tpu_custom_call.1} parent=11 // pred_fallthru
          _
      $region12: #{tpu_custom_call.1} parent=5 // pred_fallthru
        _
      %p475 = scmp.lt.s32.totalorder %s36, 4
      // Predicated region
      $region21: #{tpu_custom_call.1} parent=5 // pred_check
        %p476 = pneg %p475
      $region22: #{tpu_custom_call.1} parent=5 // pred_check_branch
        %478 = sbr.rel (%p476) target = $region24
      $region23: #{tpu_custom_call.1} parent=5 // pred_region
        // Predicated region
        $region25: #{tpu_custom_call.1} parent=23 // pred_check
          %p479 = pneg %p68
        $region26: #{tpu_custom_call.1} parent=23 // pred_check_branch
          %481 = sbr.rel (%p479) target = $region28
        $region27: #{tpu_custom_call.1} parent=23 // pred_region
          %s482 = sand.u32 %s58, 1
          %s483 = scalar_lea.sflag [#allocation4], %s482
          %s484 = sand.u32 %s58, 1
          %s485 = smul.addr %s484, 8
          %s486 = scalar_lea.vmem [#allocation3], %s485
          %s488 = ssub.s32 128, 128
          %489 = vsyncadd %s483, %s488
          %s490 = smul.addr %s43, 128
          %s491 = scalar_lea.hbm %s0, %s490
          %s493 = sshll.u32 %s486, 4
          %s494 = int_to_ptr.vmem [resolvable:$true] %s493
          %496 = dma.hbm_to_vmem [thread:$0]  %s491, 128, %s494, %s483
        $region28: #{tpu_custom_call.1} parent=23 // pred_fallthru
          _
        // Predicated region
        $region29: #{tpu_custom_call.1} parent=23 // pred_check
          %p497 = pneg %p94
        $region30: #{tpu_custom_call.1} parent=23 // pred_check_branch
          %499 = sbr.rel (%p497) target = $region32
        $region31: #{tpu_custom_call.1} parent=23 // pred_region
          %s500 = sand.u32 %s36, 1
          %s501 = scalar_lea.sflag [#allocation7], %s500
          %s502 = sand.u32 %s84, 1
          %s503 = smul.addr %s502, 192
          %s504 = scalar_lea.vmem [#allocation6], %s503
          %s506 = ssub.s32 3072, 3072
          %507 = vsyncadd %s501, %s506
          %s508 = smul.addr %s44, 48
          %s509 = smul.addr %s508, 64
          %s510 = scalar_lea.hbm %s1, %s509
          %s511 = sshll.u32 %s504, 4
          %s512 = int_to_ptr.vmem [resolvable:$true] %s511
          %517 = dma.hbm_to_vmem [thread:$0]  %s510, 3072, %s512, %s501, 192, 192, 12
        $region32: #{tpu_custom_call.1} parent=23 // pred_fallthru
          _
        // Predicated region
        $region33: #{tpu_custom_call.1} parent=23 // pred_check
          %p518 = pneg %p120
        $region34: #{tpu_custom_call.1} parent=23 // pred_check_branch
          %520 = sbr.rel (%p518) target = $region36
        $region35: #{tpu_custom_call.1} parent=23 // pred_region
          %p521 = scmp.lt.s32.totalorder %s44, 1
          %s522 = scalar_select %p521, %s44, 1
          %s523 = smul.addr %s522, 3
          %s524 = scalar_lea.vmem %s2, %s523
        $region36: #{tpu_custom_call.1} parent=23 // pred_fallthru
          _
        // Predicated region
        $region37: #{tpu_custom_call.1} parent=23 // pred_check
          %p525 = pneg %p146
        $region38: #{tpu_custom_call.1} parent=23 // pred_check_branch
          %527 = sbr.rel (%p525) target = $region40
        $region39: #{tpu_custom_call.1} parent=23 // pred_region
          %s528 = sand.u32 %s36, 1
          %s529 = scalar_lea.sflag [#allocation7], %s528
          %s530 = sand.u32 %s136, 1
          %s531 = smul.addr %s530, 64
          %s532 = scalar_lea.vmem [#allocation8], %s531
          %s534 = ssub.s32 1024, 1024
          %535 = vsyncadd %s529, %s534
          %s536 = smul.addr %s44, 16
          %s537 = smul.addr %s536, 64
          %s538 = scalar_lea.hbm %s3, %s537
          %s539 = sshll.u32 %s532, 4
          %s540 = int_to_ptr.vmem [resolvable:$true] %s539
          %545 = dma.hbm_to_vmem [thread:$0]  %s538, 1024, %s540, %s529, 64, 64, 4
        $region40: #{tpu_custom_call.1} parent=23 // pred_fallthru
          _
        // Predicated region
        $region41: #{tpu_custom_call.1} parent=23 // pred_check
          %p546 = pneg %p172
        $region42: #{tpu_custom_call.1} parent=23 // pred_check_branch
          %548 = sbr.rel (%p546) target = $region44
        $region43: #{tpu_custom_call.1} parent=23 // pred_region
          %s549 = sand.u32 %s36, 1
          %s550 = scalar_lea.sflag [#allocation10], %s549
          %s551 = sand.u32 %s162, 1
          %s552 = scalar_lea.vmem [#allocation9], %s551
          %s554 = ssub.s32 16, 16
          %555 = vsyncadd %s550, %s554
          %s556 = smul.addr %s44, 16
          %s557 = scalar_lea.hbm %s4, %s556
          %s559 = sshll.u32 %s552, 4
          %s560 = int_to_ptr.vmem [resolvable:$true] %s559
          %562 = dma.hbm_to_vmem [thread:$0]  %s557, 16, %s560, %s550
        $region44: #{tpu_custom_call.1} parent=23 // pred_fallthru
          _
        // Predicated region
        $region45: #{tpu_custom_call.1} parent=23 // pred_check
          %p563 = pneg %p198
        $region46: #{tpu_custom_call.1} parent=23 // pred_check_branch
          %565 = sbr.rel (%p563) target = $region48
        $region47: #{tpu_custom_call.1} parent=23 // pred_region
          %p566 = scmp.lt.s32.totalorder %s44, 1
          %s567 = scalar_select %p566, %s44, 1
          %s568 = scalar_lea.vmem %s5, %s567
        $region48: #{tpu_custom_call.1} parent=23 // pred_fallthru
          _
        // Predicated region
        $region49: #{tpu_custom_call.1} parent=23 // pred_check
          %p569 = pneg %p224
        $region50: #{tpu_custom_call.1} parent=23 // pred_check_branch
          %571 = sbr.rel (%p569) target = $region52
        $region51: #{tpu_custom_call.1} parent=23 // pred_region
          %p572 = scmp.lt.s32.totalorder %s44, 1
          %s573 = scalar_select %p572, %s44, 1
          %s574 = scalar_lea.vmem %s6, %s573
        $region52: #{tpu_custom_call.1} parent=23 // pred_fallthru
          _
        // Predicated region
        $region53: #{tpu_custom_call.1} parent=23 // pred_check
          %p575 = pneg %p250
        $region54: #{tpu_custom_call.1} parent=23 // pred_check_branch
          %577 = sbr.rel (%p575) target = $region56
        $region55: #{tpu_custom_call.1} parent=23 // pred_region
          %s578 = sand.u32 %s36, 1
          %s579 = scalar_lea.sflag [#allocation10], %s578
          %s580 = sand.u32 %s240, 1
          %s581 = smul.addr %s580, 256
          %s582 = scalar_lea.vmem [#allocation11], %s581
          %s584 = ssub.s32 4096, 4096
          %585 = vsyncadd %s579, %s584
          %s586 = smul.addr %s44, 64
          %s587 = smul.addr %s586, 64
          %s588 = scalar_lea.hbm %s7, %s587
          %s589 = sshll.u32 %s582, 4
          %s590 = int_to_ptr.vmem [resolvable:$true] %s589
          %595 = dma.hbm_to_vmem [thread:$0]  %s588, 4096, %s590, %s579, 256, 256, 16
        $region56: #{tpu_custom_call.1} parent=23 // pred_fallthru
          _
        // Predicated region
        $region57: #{tpu_custom_call.1} parent=23 // pred_check
          %p596 = pneg %p276
        $region58: #{tpu_custom_call.1} parent=23 // pred_check_branch
          %598 = sbr.rel (%p596) target = $region60
        $region59: #{tpu_custom_call.1} parent=23 // pred_region
          %p599 = scmp.lt.s32.totalorder %s44, 1
          %s600 = scalar_select %p599, %s44, 1
          %s601 = smul.addr %s600, 4
          %s602 = scalar_lea.vmem %s8, %s601
        $region60: #{tpu_custom_call.1} parent=23 // pred_fallthru
          _
        // Predicated region
        $region61: #{tpu_custom_call.1} parent=23 // pred_check
          %p603 = pneg %p302
        $region62: #{tpu_custom_call.1} parent=23 // pred_check_branch
          %605 = sbr.rel (%p603) target = $region64
        $region63: #{tpu_custom_call.1} parent=23 // pred_region
          %s606 = sand.u32 %s292, 1
          %s607 = scalar_lea.sflag [#allocation13], %s606
          %s608 = sand.u32 %s292, 1
          %s609 = smul.addr %s608, 256
          %s610 = scalar_lea.vmem [#allocation12], %s609
          %s612 = ssub.s32 4096, 4096
          %613 = vsyncadd %s607, %s612
          %s614 = smul.addr %s44, 64
          %s615 = smul.addr %s614, 64
          %s616 = scalar_lea.hbm %s9, %s615
          %s617 = sshll.u32 %s610, 4
          %s618 = int_to_ptr.vmem [resolvable:$true] %s617
          %623 = dma.hbm_to_vmem [thread:$0]  %s616, 4096, %s618, %s607, 64, 64, 4
        $region64: #{tpu_custom_call.1} parent=23 // pred_fallthru
          _
        // Predicated region
        $region65: #{tpu_custom_call.1} parent=23 // pred_check
          %p624 = pneg %p328
        $region66: #{tpu_custom_call.1} parent=23 // pred_check_branch
          %626 = sbr.rel (%p624) target = $region68
        $region67: #{tpu_custom_call.1} parent=23 // pred_region
          %p627 = scmp.lt.s32.totalorder %s44, 1
          %s628 = scalar_select %p627, %s44, 1
          %s629 = scalar_lea.vmem %s10, %s628
        $region68: #{tpu_custom_call.1} parent=23 // pred_fallthru
          _
        // Predicated region
        $region69: #{tpu_custom_call.1} parent=23 // pred_check
          %p630 = pneg %p354
        $region70: #{tpu_custom_call.1} parent=23 // pred_check_branch
          %632 = sbr.rel (%p630) target = $region72
        $region71: #{tpu_custom_call.1} parent=23 // pred_region
          %p633 = scmp.lt.s32.totalorder %s44, 1
          %s634 = scalar_select %p633, %s44, 1
          %s635 = scalar_lea.vmem %s11, %s634
        $region72: #{tpu_custom_call.1} parent=23 // pred_fallthru
          _
        // Predicated region
        $region73: #{tpu_custom_call.1} parent=23 // pred_check
          %p636 = pneg %p380
        $region74: #{tpu_custom_call.1} parent=23 // pred_check_branch
          %638 = sbr.rel (%p636) target = $region76
        $region75: #{tpu_custom_call.1} parent=23 // pred_region
          %p639 = scmp.lt.s32.totalorder %s44, 1
          %s640 = scalar_select %p639, %s44, 1
          %s641 = scalar_lea.vmem %s12, %s640
        $region76: #{tpu_custom_call.1} parent=23 // pred_fallthru
          _
      $region24: #{tpu_custom_call.1} parent=5 // pred_fallthru
        _
      %p642 = scmp.le.s32.totalorder 1, %s36
      %p643 = scmp.lt.s32.totalorder %s36, 5
      %p644 = pnand %p642, %p643
      %p645 = pneg %p644
      // Predicated region
      $region77: #{tpu_custom_call.1} parent=5 // pred_check
        _
      $region78: #{tpu_custom_call.1} parent=5 // pred_check_branch
        %647 = sbr.rel (%p644) target = $region80
      $region79: #{tpu_custom_call.1} parent=5 // pred_region
        %s648 = ssub.s32 %s36, 1
        %s649 = sand.u32 %s61, 1
        %s650 = scalar_lea.sflag [#allocation4], %s649
        %s651 = sand.u32 %s61, 1
        %s652 = smul.addr %s651, 8
        %s653 = scalar_lea.vmem [#allocation3], %s652
        // Predicated region
        $region81: #{tpu_custom_call.1} parent=79 // pred_check
          %p654 = pneg %p74
        $region82: #{tpu_custom_call.1} parent=79 // pred_check_branch
          %656 = sbr.rel (%p654) target = $region84
        $region83: #{tpu_custom_call.1} parent=79 // pred_region
          %657 = dma.done %s650, 128
        $region84: #{tpu_custom_call.1} parent=79 // pred_fallthru
          _
        %s658 = sand.u32 %s41, 1
        %s659 = scalar_lea.sflag [#allocation7], %s658
        %s660 = sand.u32 %s87, 1
        %s661 = smul.addr %s660, 192
        %s662 = scalar_lea.vmem [#allocation6], %s661
        // Predicated region
        $region85: #{tpu_custom_call.1} parent=79 // pred_check
          %p663 = pneg %p100
        $region86: #{tpu_custom_call.1} parent=79 // pred_check_branch
          %665 = sbr.rel (%p663) target = $region88
        $region87: #{tpu_custom_call.1} parent=79 // pred_region
          %666 = dma.done %s659, 3072
        $region88: #{tpu_custom_call.1} parent=79 // pred_fallthru
          _
        %s667 = sand.u32 %s41, 1
        %s668 = scalar_lea.sflag [#allocation7], %s667
        %s669 = sand.u32 %s139, 1
        %s670 = smul.addr %s669, 64
        %s671 = scalar_lea.vmem [#allocation8], %s670
        // Predicated region
        $region89: #{tpu_custom_call.1} parent=79 // pred_check
          %p672 = pneg %p152
        $region90: #{tpu_custom_call.1} parent=79 // pred_check_branch
          %674 = sbr.rel (%p672) target = $region92
        $region91: #{tpu_custom_call.1} parent=79 // pred_region
          %675 = dma.done %s668, 1024
        $region92: #{tpu_custom_call.1} parent=79 // pred_fallthru
          _
        %s676 = sand.u32 %s41, 1
        %s677 = scalar_lea.sflag [#allocation10], %s676
        %s678 = sand.u32 %s165, 1
        %s679 = scalar_lea.vmem [#allocation9], %s678
        // Predicated region
        $region93: #{tpu_custom_call.1} parent=79 // pred_check
          %p680 = pneg %p178
        $region94: #{tpu_custom_call.1} parent=79 // pred_check_branch
          %682 = sbr.rel (%p680) target = $region96
        $region95: #{tpu_custom_call.1} parent=79 // pred_region
          %683 = dma.done %s677, 16
        $region96: #{tpu_custom_call.1} parent=79 // pred_fallthru
          _
        %s684 = sand.u32 %s41, 1
        %s685 = scalar_lea.sflag [#allocation10], %s684
        %s686 = sand.u32 %s243, 1
        %s687 = smul.addr %s686, 256
        %s688 = scalar_lea.vmem [#allocation11], %s687
        // Predicated region
        $region97: #{tpu_custom_call.1} parent=79 // pred_check
          %p689 = pneg %p256
        $region98: #{tpu_custom_call.1} parent=79 // pred_check_branch
          %691 = sbr.rel (%p689) target = $region100
        $region99: #{tpu_custom_call.1} parent=79 // pred_region
          %692 = dma.done %s685, 4096
        $region100: #{tpu_custom_call.1} parent=79 // pred_fallthru
          _
        %s693 = sand.u32 %s295, 1
        %s694 = scalar_lea.sflag [#allocation13], %s693
        %s695 = sand.u32 %s295, 1
        %s696 = smul.addr %s695, 256
        %s697 = scalar_lea.vmem [#allocation12], %s696
        // Predicated region
        $region101: #{tpu_custom_call.1} parent=79 // pred_check
          %p698 = pneg %p308
        $region102: #{tpu_custom_call.1} parent=79 // pred_check_branch
          %700 = sbr.rel (%p698) target = $region104
        $region103: #{tpu_custom_call.1} parent=79 // pred_region
          %701 = dma.done %s694, 4096
        $region104: #{tpu_custom_call.1} parent=79 // pred_fallthru
          _
        %s702 = sand.u32 %s61, 1
        %s703 = scalar_lea.sflag [#allocation4], %s702
        %s704 = sand.u32 %s61, 1
        %s705 = smul.addr %s704, 8
        %s706 = scalar_lea.vmem [#allocation3], %s705
        %p707 = pneg %p74
        %p708 = pneg %p71
        %s709 = sand.u32 %s41, 1
        %s710 = scalar_lea.sflag [#allocation7], %s709
        %s711 = sand.u32 %s87, 1
        %s712 = smul.addr %s711, 192
        %s713 = scalar_lea.vmem [#allocation6], %s712
        %p714 = pneg %p100
        %p715 = pneg %p97
        %p716 = scmp.lt.s32.totalorder %s46, 1
        %s717 = scalar_select %p716, %s46, 1
        %s718 = smul.addr %s717, 3
        %s719 = scalar_lea.vmem %s2, %s718
        %p720 = pneg %p126
        %p721 = pneg %p123
        %s722 = sand.u32 %s41, 1
        %s723 = scalar_lea.sflag [#allocation7], %s722
        %s724 = sand.u32 %s139, 1
        %s725 = smul.addr %s724, 64
        %s726 = scalar_lea.vmem [#allocation8], %s725
        %p727 = pneg %p152
        %p728 = pneg %p149
        %s729 = sand.u32 %s41, 1
        %s730 = scalar_lea.sflag [#allocation10], %s729
        %s731 = sand.u32 %s165, 1
        %s732 = scalar_lea.vmem [#allocation9], %s731
        %p733 = pneg %p178
        %p734 = pneg %p175
        %p735 = scmp.lt.s32.totalorder %s46, 1
        %s736 = scalar_select %p735, %s46, 1
        %s737 = scalar_lea.vmem %s5, %s736
        %p738 = pneg %p204
        %p739 = pneg %p201
        %p740 = scmp.lt.s32.totalorder %s46, 1
        %s741 = scalar_select %p740, %s46, 1
        %s742 = scalar_lea.vmem %s6, %s741
        %p743 = pneg %p230
        %p744 = pneg %p227
        %s745 = sand.u32 %s41, 1
        %s746 = scalar_lea.sflag [#allocation10], %s745
        %s747 = sand.u32 %s243, 1
        %s748 = smul.addr %s747, 256
        %s749 = scalar_lea.vmem [#allocation11], %s748
        %p750 = pneg %p256
        %p751 = pneg %p253
        %p752 = scmp.lt.s32.totalorder %s46, 1
        %s753 = scalar_select %p752, %s46, 1
        %s754 = smul.addr %s753, 4
        %s755 = scalar_lea.vmem %s8, %s754
        %p756 = pneg %p282
        %p757 = pneg %p279
        %s758 = sand.u32 %s295, 1
        %s759 = scalar_lea.sflag [#allocation13], %s758
        %s760 = sand.u32 %s295, 1
        %s761 = smul.addr %s760, 256
        %s762 = scalar_lea.vmem [#allocation12], %s761
        %p763 = pneg %p308
        %p764 = pneg %p305
        %p765 = scmp.lt.s32.totalorder %s46, 1
        %s766 = scalar_select %p765, %s46, 1
        %s767 = scalar_lea.vmem %s10, %s766
        %p768 = pneg %p334
        %p769 = pneg %p331
        %p770 = scmp.lt.s32.totalorder %s46, 1
        %s771 = scalar_select %p770, %s46, 1
        %s772 = scalar_lea.vmem %s11, %s771
        %p773 = pneg %p360
        %p774 = pneg %p357
        %p775 = scmp.lt.s32.totalorder %s46, 1
        %s776 = scalar_select %p775, %s46, 1
        %s777 = scalar_lea.vmem %s12, %s776
        %p778 = pneg %p386
        %p779 = pneg %p383
        %p780 = pneg %p407
        %p781 = pneg %p404
        %p782 = pneg %p428
        %p783 = pneg %p425
        %p784 = pneg %p454
        %p785 = pneg %p451
        %s786 = sand.u32 %s441, 1
        %s787 = scalar_lea.sflag [#allocation5], %s786
        %s788 = sand.u32 %s441, 1
        %s789 = smul.addr %s788, 8
        %s790 = scalar_lea.vmem [#allocation14], %s789
        %p791 = scmp.lt.s32.totalorder %s46, 1
        %s792 = scalar_select %p791, %s46, 1
        %s793 = smul.addr %s792, 3
        %s794 = scalar_lea.vmem %s2, %s793
        %p795 = scmp.lt.s32.totalorder %s46, 1
        %s796 = scalar_select %p795, %s46, 1
        %s797 = scalar_lea.vmem %s5, %s796
        %p798 = scmp.lt.s32.totalorder %s46, 1
        %s799 = scalar_select %p798, %s46, 1
        %s800 = scalar_lea.vmem %s6, %s799
        %p801 = scmp.lt.s32.totalorder %s46, 1
        %s802 = scalar_select %p801, %s46, 1
        %s803 = smul.addr %s802, 4
        %s804 = scalar_lea.vmem %s8, %s803
        %p805 = scmp.lt.s32.totalorder %s46, 1
        %s806 = scalar_select %p805, %s46, 1
        %s807 = scalar_lea.vmem %s10, %s806
        %p808 = scmp.lt.s32.totalorder %s46, 1
        %s809 = scalar_select %p808, %s46, 1
        %s810 = scalar_lea.vmem %s11, %s809
        %p811 = scmp.lt.s32.totalorder %s46, 1
        %s812 = scalar_select %p811, %s46, 1
        %s813 = scalar_lea.vmem %s12, %s812
        %p815 = scmp.eq.s32.totalorder %s46, 0
        // Predicated region
        $region105: #{tpu_custom_call.1} parent=79 // pred_check
          %p816 = pneg %p815
        $region106: #{tpu_custom_call.1} parent=79 // pred_check_branch
          %818 = sbr.rel (%p816) target = $region108
        $region107: #{tpu_custom_call.1} parent=79 // pred_region
          %v819 = vld [vmem:[%s653] sm:$0xff]
          %820 = vst [vmem:[#allocation2] sm:$0xff] %v819
        $region108: #{tpu_custom_call.1} parent=79 // pred_fallthru
          _
        %v821 = vld [vmem:[#allocation2] sm:$0xff]
        %v822 = vpack.c.bf16 %v821, %v821
        %v823 = vld [vmem:[%s662] sm:$0xff]
        %v824 = vld [vmem:[%s662 + $0x8] sm:$0xf]
        %v825 = vld [vmem:[%s662 + $0xc] sm:$0xff]
        %v826 = vld [vmem:[%s662 + $0x14] sm:$0xf]
        %v827 = vld [vmem:[%s662 + $0x18] sm:$0xff]
        %v828 = vld [vmem:[%s662 + $0x20] sm:$0xf]
        %v829 = vld [vmem:[%s662 + $0x24] sm:$0xff]
        %v830 = vld [vmem:[%s662 + $0x2c] sm:$0xf]
        %v831 = vld [vmem:[%s662 + $0x30] sm:$0xff]
        %v832 = vld [vmem:[%s662 + $0x38] sm:$0xf]
        %v833 = vld [vmem:[%s662 + $0x3c] sm:$0xff]
        %v834 = vld [vmem:[%s662 + $0x44] sm:$0xf]
        %v835 = vld [vmem:[%s662 + $0x48] sm:$0xff]
        %v836 = vld [vmem:[%s662 + $0x50] sm:$0xf]
        %v837 = vld [vmem:[%s662 + $0x54] sm:$0xff]
        %v838 = vld [vmem:[%s662 + $0x5c] sm:$0xf]
        %v839 = vld [vmem:[%s662 + $0x60] sm:$0xff]
        %v840 = vld [vmem:[%s662 + $0x68] sm:$0xf]
        %v841 = vld [vmem:[%s662 + $0x6c] sm:$0xff]
        %v842 = vld [vmem:[%s662 + $0x74] sm:$0xf]
        %v843 = vld [vmem:[%s662 + $0x78] sm:$0xff]
        %v844 = vld [vmem:[%s662 + $0x80] sm:$0xf]
        %v845 = vld [vmem:[%s662 + $0x84] sm:$0xff]
        %v846 = vld [vmem:[%s662 + $0x8c] sm:$0xf]
        %v847 = vld [vmem:[%s662 + $0x90] sm:$0xff]
        %v848 = vld [vmem:[%s662 + $0x98] sm:$0xf]
        %v849 = vld [vmem:[%s662 + $0x9c] sm:$0xff]
        %v850 = vld [vmem:[%s662 + $0xa4] sm:$0xf]
        %v851 = vld [vmem:[%s662 + $0xa8] sm:$0xff]
        %v852 = vld [vmem:[%s662 + $0xb0] sm:$0xf]
        %v853 = vld [vmem:[%s662 + $0xb4] sm:$0xff]
        %v854 = vld [vmem:[%s662 + $0xbc] sm:$0xf]
        %v855 = vld [vmem:[%s794] sm:$0x7]
        %v857 = vlaneseq
        %v858 = vshrl.u32 %v857, 7
        %v859 = vsub.s32 0, %v858
        %v860 = vrot.slane %v855, %v859
        %v861 = vlaneseq
        %v862 = vshrl.u32 %v861, 7
        %v863 = vsub.s32 1, %v862
        %v864 = vrot.slane %v855, %v863
        %v865 = vlaneseq
        %v866 = vshrl.u32 %v865, 7
        %v867 = vsub.s32 2, %v866
        %v868 = vrot.slane %v855, %v867
        %v904 = vunpack.c.l.b16 %v823
        %v905 = vunpack.c.h.b16 %v823
        %v906 = vunpack.c.l.b16 %v824
        %v907 = vunpack.c.l.b16 %v825
        %v908 = vunpack.c.h.b16 %v825
        %v909 = vunpack.c.l.b16 %v826
        %v910 = vunpack.c.l.b16 %v827
        %v911 = vunpack.c.h.b16 %v827
        %v912 = vunpack.c.l.b16 %v828
        %v913 = vunpack.c.l.b16 %v829
        %v914 = vunpack.c.h.b16 %v829
        %v915 = vunpack.c.l.b16 %v830
        %v916 = vunpack.c.l.b16 %v831
        %v917 = vunpack.c.h.b16 %v831
        %v918 = vunpack.c.l.b16 %v832
        %v919 = vunpack.c.l.b16 %v833
        %v920 = vunpack.c.h.b16 %v833
        %v921 = vunpack.c.l.b16 %v834
        %v922 = vunpack.c.l.b16 %v835
        %v923 = vunpack.c.h.b16 %v835
        %v924 = vunpack.c.l.b16 %v836
        %v925 = vunpack.c.l.b16 %v837
        %v926 = vunpack.c.h.b16 %v837
        %v927 = vunpack.c.l.b16 %v838
        %v928 = vunpack.c.l.b16 %v839
        %v929 = vunpack.c.h.b16 %v839
        %v930 = vunpack.c.l.b16 %v840
        %v931 = vunpack.c.l.b16 %v841
        %v932 = vunpack.c.h.b16 %v841
        %v933 = vunpack.c.l.b16 %v842
        %v934 = vunpack.c.l.b16 %v843
        %v935 = vunpack.c.h.b16 %v843
        %v936 = vunpack.c.l.b16 %v844
        %v937 = vunpack.c.l.b16 %v845
        %v938 = vunpack.c.h.b16 %v845
        %v939 = vunpack.c.l.b16 %v846
        %v940 = vunpack.c.l.b16 %v847
        %v941 = vunpack.c.h.b16 %v847
        %v942 = vunpack.c.l.b16 %v848
        %v943 = vunpack.c.l.b16 %v849
        %v944 = vunpack.c.h.b16 %v849
        %v945 = vunpack.c.l.b16 %v850
        %v946 = vunpack.c.l.b16 %v851
        %v947 = vunpack.c.h.b16 %v851
        %v948 = vunpack.c.l.b16 %v852
        %v949 = vunpack.c.l.b16 %v853
        %v950 = vunpack.c.h.b16 %v853
        %v951 = vunpack.c.l.b16 %v854
        %v952 = vpack.c.b16 %v907, %v904
        %v953 = vpack.c.b16 %v908, %v905
        %v954 = vpack.c.b16 %v909, %v906
        %v955 = vpack.c.b16 %v913, %v910
        %v956 = vpack.c.b16 %v914, %v911
        %v957 = vpack.c.b16 %v915, %v912
        %v958 = vpack.c.b16 %v919, %v916
        %v959 = vpack.c.b16 %v920, %v917
        %v960 = vpack.c.b16 %v921, %v918
        %v961 = vpack.c.b16 %v925, %v922
        %v962 = vpack.c.b16 %v926, %v923
        %v963 = vpack.c.b16 %v927, %v924
        %v964 = vpack.c.b16 %v931, %v928
        %v965 = vpack.c.b16 %v932, %v929
        %v966 = vpack.c.b16 %v933, %v930
        %v967 = vpack.c.b16 %v937, %v934
        %v968 = vpack.c.b16 %v938, %v935
        %v969 = vpack.c.b16 %v939, %v936
        %v970 = vpack.c.b16 %v943, %v940
        %v971 = vpack.c.b16 %v944, %v941
        %v972 = vpack.c.b16 %v945, %v942
        %v973 = vpack.c.b16 %v949, %v946
        %v974 = vpack.c.b16 %v950, %v947
        %v975 = vpack.c.b16 %v951, %v948
        %1000 = vmatprep.subr.bf16.mxu0 %v953
        %1001 = vmatpush1.bf16.msra.mxu0 %v952
        %1002 = vmatprep.subr.bf16.mxu0 %v956
        %1003 = vmatpush1.bf16.msra.mxu0 %v955
        %1004 = vmatprep.subr.bf16.mxu0 %v959
        %1005 = vmatpush1.bf16.msra.mxu0 %v958
        %1006 = vmatprep.subr.bf16.mxu0 %v962
        %1007 = vmatpush1.bf16.msra.mxu0 %v961
        %1008 = vmatprep.subr.bf16.mxu0 %v965
        %1009 = vmatpush1.bf16.msra.mxu0 %v964
        %1010 = vmatprep.subr.bf16.mxu0 %v968
        %1011 = vmatpush1.bf16.msra.mxu0 %v967
        %1012 = vmatprep.subr.bf16.mxu0 %v971
        %1013 = vmatpush1.bf16.msra.mxu0 %v970
        %1014 = vmatprep.subr.bf16.mxu0 %v974
        %1015 = vmatpush1.bf16.msra.mxu0 %v973
        %1016 = vmatprep.subr.bf16.mxu0 0
        %1017 = vmatpush1.bf16.msra.mxu0 0
        %1018 = vmatprep.subr.bf16.mxu0 0
        %1019 = vmatpush1.bf16.msra.mxu0 0
        %1020 = vmatprep.subr.bf16.mxu0 0
        %1021 = vmatpush1.bf16.msra.mxu0 0
        %1022 = vmatprep.subr.bf16.mxu0 0
        %1023 = vmatpush1.bf16.msra.mxu0 0
        %1024 = vmatprep.subr.bf16.mxu0 0
        %1025 = vmatpush1.bf16.msra.mxu0 0
        %1026 = vmatprep.subr.bf16.mxu0 0
        %1027 = vmatpush1.bf16.msra.mxu0 0
        %1028 = vmatprep.subr.bf16.mxu0 0
        %1029 = vmatpush1.bf16.msra.mxu0 0
        %1030 = vmatprep.subr.bf16.mxu0 0
        %1031 = vmatpush1.bf16.msra.mxu0 0
        %1032 = vmatprep.mubr.bf16.mxu0 0
        %1033 = vmatmul.mubr.bf16.gmra.mrb[0].mxu0 %v822
        %v1034 = vpop.f32.mrb[0].mxu0
        %v1035 = vadd.f32 %v860, %v1034
        %v1036 = vpop.f32.mrb[0].mxu0
        %v1037 = vadd.f32 %v864, %v1036
        %v1038 = vpop.f32.mrb[0].mxu0
        %v1039 = vpop.f32.mrb[0].mxu0
        %1040 = vdwg.mxu0
        %1041 = vmatprep.subr.bf16.mxu0 0
        %1042 = vmatpush1.bf16.msra.mxu0 %v954
        %1043 = vmatprep.subr.bf16.mxu0 0
        %1044 = vmatpush1.bf16.msra.mxu0 %v957
        %1045 = vmatprep.subr.bf16.mxu0 0
        %1046 = vmatpush1.bf16.msra.mxu0 %v960
        %1047 = vmatprep.subr.bf16.mxu0 0
        %1048 = vmatpush1.bf16.msra.mxu0 %v963
        %1049 = vmatprep.subr.bf16.mxu0 0
        %1050 = vmatpush1.bf16.msra.mxu0 %v966
        %1051 = vmatprep.subr.bf16.mxu0 0
        %1052 = vmatpush1.bf16.msra.mxu0 %v969
        %1053 = vmatprep.subr.bf16.mxu0 0
        %1054 = vmatpush1.bf16.msra.mxu0 %v972
        %1055 = vmatprep.subr.bf16.mxu0 0
        %1056 = vmatpush1.bf16.msra.mxu0 %v975
        %1057 = vmatprep.subr.bf16.mxu0 0
        %1058 = vmatpush1.bf16.msra.mxu0 0
        %1059 = vmatprep.subr.bf16.mxu0 0
        %1060 = vmatpush1.bf16.msra.mxu0 0
        %1061 = vmatprep.subr.bf16.mxu0 0
        %1062 = vmatpush1.bf16.msra.mxu0 0
        %1063 = vmatprep.subr.bf16.mxu0 0
        %1064 = vmatpush1.bf16.msra.mxu0 0
        %1065 = vmatprep.subr.bf16.mxu0 0
        %1066 = vmatpush1.bf16.msra.mxu0 0
        %1067 = vmatprep.subr.bf16.mxu0 0
        %1068 = vmatpush1.bf16.msra.mxu0 0
        %1069 = vmatprep.subr.bf16.mxu0 0
        %1070 = vmatpush1.bf16.msra.mxu0 0
        %1071 = vmatprep.subr.bf16.mxu0 0
        %1072 = vmatpush1.bf16.msra.mxu0 0
        %1073 = vmatprep.mubr.bf16.mxu0 0
        %1074 = vmatmul.mubr.bf16.gmra.mrb[0].mxu0 %v822
        %v1075 = vpop.f32.mrb[0].mxu0
        %v1076 = vadd.f32 %v868, %v1075
        %v1077 = vpop.f32.mrb[0].mxu0
        %v1078 = vpop.f32.mrb[0].mxu0
        %v1079 = vpop.f32.mrb[0].mxu0
        %1080 = vdwg.mxu0
        %1082 = vrot.lane.b32.xlu0 %v1035, 96
        %v1083 = vpop.permute.xlu0 %1082
        %1085 = vrot.lane.b32.xlu0 %v1035, 64
        %v1086 = vpop.permute.xlu0 %1085
        %1088 = vrot.lane.b32.xlu0 %v1035, 32
        %v1089 = vpop.permute.xlu0 %1088
        %v1091 = vcombine.low %v1035, %v1086
        %v1092 = vcombine.high %v1035, %v1086
        %v1094 = vunpack.c.l.s4 1983009808
        %v1095 = vunpack.c.0.s8 %v1094
        %v1096 = vlaneseq
        %v1097 = vshrl.u32 %v1096, 7
        %v1098 = vsub.s32 %v1095, %v1097
        %v1099 = vrot.slane %v1091, %v1098
        %v1101 = vunpack.c.l.s4 1983009808
        %v1102 = vunpack.c.0.s8 %v1101
        %v1103 = vlaneseq
        %v1104 = vshrl.u32 %v1103, 7
        %v1105 = vsub.s32 %v1102, %v1104
        %v1106 = vrot.slane %v1092, %v1105
        %v1107 = vcombine.low %v1083, %v1089
        %v1108 = vcombine.high %v1083, %v1089
        %v1110 = vunpack.c.l.s4 1983009808
        %v1111 = vunpack.c.0.s8 %v1110
        %v1112 = vlaneseq
        %v1113 = vshrl.u32 %v1112, 7
        %v1114 = vsub.s32 %v1111, %v1113
        %v1115 = vrot.slane %v1107, %v1114
        %v1117 = vunpack.c.l.s4 1983009808
        %v1118 = vunpack.c.0.s8 %v1117
        %v1119 = vlaneseq
        %v1120 = vshrl.u32 %v1119, 7
        %v1121 = vsub.s32 %v1118, %v1120
        %v1122 = vrot.slane %v1108, %v1121
        %v1123 = vcombine.low %v1099, %v1115
        %v1124 = vcombine.high %v1099, %v1115
        %v1126 = vunpack.c.l.s4 1934713408
        %v1127 = vunpack.c.0.s8 %v1126
        %v1128 = vlaneseq
        %v1129 = vshrl.u32 %v1128, 7
        %v1130 = vsub.s32 %v1127, %v1129
        %v1131 = vrot.slane %v1123, %v1130
        %v1133 = vunpack.c.l.s4 1934713408
        %v1134 = vunpack.c.0.s8 %v1133
        %v1135 = vlaneseq
        %v1136 = vshrl.u32 %v1135, 7
        %v1137 = vsub.s32 %v1134, %v1136
        %v1138 = vrot.slane %v1124, %v1137
        %v1139 = vcombine.low %v1106, %v1122
        %v1140 = vcombine.high %v1106, %v1122
        %v1142 = vunpack.c.l.s4 1934713408
        %v1143 = vunpack.c.0.s8 %v1142
        %v1144 = vlaneseq
        %v1145 = vshrl.u32 %v1144, 7
        %v1146 = vsub.s32 %v1143, %v1145
        %v1147 = vrot.slane %v1139, %v1146
        %v1149 = vunpack.c.l.s4 1934713408
        %v1150 = vunpack.c.0.s8 %v1149
        %v1151 = vlaneseq
        %v1152 = vshrl.u32 %v1151, 7
        %v1153 = vsub.s32 %v1150, %v1152
        %v1154 = vrot.slane %v1140, %v1153
        %v1155 = vcombine.high %v1131, 0.0
        %v1156 = vcombine.high %v1138, 0.0
        %v1157 = vcombine.high %v1147, 0.0
        %v1158 = vcombine.high %v1154, 0.0
        %1160 = vrot.lane.b32.xlu0 %v1037, 96
        %v1161 = vpop.permute.xlu0 %1160
        %1163 = vrot.lane.b32.xlu0 %v1037, 64
        %v1164 = vpop.permute.xlu0 %1163
        %1166 = vrot.lane.b32.xlu0 %v1037, 32
        %v1167 = vpop.permute.xlu0 %1166
        %v1169 = vcombine.low %v1037, %v1164
        %v1170 = vcombine.high %v1037, %v1164
        %v1172 = vunpack.c.l.s4 1983009808
        %v1173 = vunpack.c.0.s8 %v1172
        %v1174 = vlaneseq
        %v1175 = vshrl.u32 %v1174, 7
        %v1176 = vsub.s32 %v1173, %v1175
        %v1177 = vrot.slane %v1169, %v1176
        %v1179 = vunpack.c.l.s4 1983009808
        %v1180 = vunpack.c.0.s8 %v1179
        %v1181 = vlaneseq
        %v1182 = vshrl.u32 %v1181, 7
        %v1183 = vsub.s32 %v1180, %v1182
        %v1184 = vrot.slane %v1170, %v1183
        %v1185 = vcombine.low %v1161, %v1167
        %v1186 = vcombine.high %v1161, %v1167
        %v1188 = vunpack.c.l.s4 1983009808
        %v1189 = vunpack.c.0.s8 %v1188
        %v1190 = vlaneseq
        %v1191 = vshrl.u32 %v1190, 7
        %v1192 = vsub.s32 %v1189, %v1191
        %v1193 = vrot.slane %v1185, %v1192
        %v1195 = vunpack.c.l.s4 1983009808
        %v1196 = vunpack.c.0.s8 %v1195
        %v1197 = vlaneseq
        %v1198 = vshrl.u32 %v1197, 7
        %v1199 = vsub.s32 %v1196, %v1198
        %v1200 = vrot.slane %v1186, %v1199
        %v1201 = vcombine.low %v1177, %v1193
        %v1202 = vcombine.high %v1177, %v1193
        %v1204 = vunpack.c.l.s4 1934713408
        %v1205 = vunpack.c.0.s8 %v1204
        %v1206 = vlaneseq
        %v1207 = vshrl.u32 %v1206, 7
        %v1208 = vsub.s32 %v1205, %v1207
        %v1209 = vrot.slane %v1201, %v1208
        %v1211 = vunpack.c.l.s4 1934713408
        %v1212 = vunpack.c.0.s8 %v1211
        %v1213 = vlaneseq
        %v1214 = vshrl.u32 %v1213, 7
        %v1215 = vsub.s32 %v1212, %v1214
        %v1216 = vrot.slane %v1202, %v1215
        %v1217 = vcombine.low %v1184, %v1200
        %v1218 = vcombine.high %v1184, %v1200
        %v1220 = vunpack.c.l.s4 1934713408
        %v1221 = vunpack.c.0.s8 %v1220
        %v1222 = vlaneseq
        %v1223 = vshrl.u32 %v1222, 7
        %v1224 = vsub.s32 %v1221, %v1223
        %v1225 = vrot.slane %v1217, %v1224
        %v1227 = vunpack.c.l.s4 1934713408
        %v1228 = vunpack.c.0.s8 %v1227
        %v1229 = vlaneseq
        %v1230 = vshrl.u32 %v1229, 7
        %v1231 = vsub.s32 %v1228, %v1230
        %v1232 = vrot.slane %v1218, %v1231
        %v1233 = vcombine.high %v1209, 0.0
        %v1234 = vcombine.high %v1216, 0.0
        %v1235 = vcombine.high %v1225, 0.0
        %v1236 = vcombine.high %v1232, 0.0
        %1238 = vrot.lane.b32.xlu0 %v1076, 96
        %v1239 = vpop.permute.xlu0 %1238
        %1241 = vrot.lane.b32.xlu0 %v1076, 64
        %v1242 = vpop.permute.xlu0 %1241
        %1244 = vrot.lane.b32.xlu0 %v1076, 32
        %v1245 = vpop.permute.xlu0 %1244
        %v1247 = vcombine.low %v1076, %v1242
        %v1248 = vcombine.high %v1076, %v1242
        %v1250 = vunpack.c.l.s4 1983009808
        %v1251 = vunpack.c.0.s8 %v1250
        %v1252 = vlaneseq
        %v1253 = vshrl.u32 %v1252, 7
        %v1254 = vsub.s32 %v1251, %v1253
        %v1255 = vrot.slane %v1247, %v1254
        %v1257 = vunpack.c.l.s4 1983009808
        %v1258 = vunpack.c.0.s8 %v1257
        %v1259 = vlaneseq
        %v1260 = vshrl.u32 %v1259, 7
        %v1261 = vsub.s32 %v1258, %v1260
        %v1262 = vrot.slane %v1248, %v1261
        %v1263 = vcombine.low %v1239, %v1245
        %v1264 = vcombine.high %v1239, %v1245
        %v1266 = vunpack.c.l.s4 1983009808
        %v1267 = vunpack.c.0.s8 %v1266
        %v1268 = vlaneseq
        %v1269 = vshrl.u32 %v1268, 7
        %v1270 = vsub.s32 %v1267, %v1269
        %v1271 = vrot.slane %v1263, %v1270
        %v1273 = vunpack.c.l.s4 1983009808
        %v1274 = vunpack.c.0.s8 %v1273
        %v1275 = vlaneseq
        %v1276 = vshrl.u32 %v1275, 7
        %v1277 = vsub.s32 %v1274, %v1276
        %v1278 = vrot.slane %v1264, %v1277
        %v1279 = vcombine.low %v1255, %v1271
        %v1280 = vcombine.high %v1255, %v1271
        %v1282 = vunpack.c.l.s4 1934713408
        %v1283 = vunpack.c.0.s8 %v1282
        %v1284 = vlaneseq
        %v1285 = vshrl.u32 %v1284, 7
        %v1286 = vsub.s32 %v1283, %v1285
        %v1287 = vrot.slane %v1279, %v1286
        %v1289 = vunpack.c.l.s4 1934713408
        %v1290 = vunpack.c.0.s8 %v1289
        %v1291 = vlaneseq
        %v1292 = vshrl.u32 %v1291, 7
        %v1293 = vsub.s32 %v1290, %v1292
        %v1294 = vrot.slane %v1280, %v1293
        %v1295 = vcombine.low %v1262, %v1278
        %v1296 = vcombine.high %v1262, %v1278
        %v1298 = vunpack.c.l.s4 1934713408
        %v1299 = vunpack.c.0.s8 %v1298
        %v1300 = vlaneseq
        %v1301 = vshrl.u32 %v1300, 7
        %v1302 = vsub.s32 %v1299, %v1301
        %v1303 = vrot.slane %v1295, %v1302
        %v1305 = vunpack.c.l.s4 1934713408
        %v1306 = vunpack.c.0.s8 %v1305
        %v1307 = vlaneseq
        %v1308 = vshrl.u32 %v1307, 7
        %v1309 = vsub.s32 %v1306, %v1308
        %v1310 = vrot.slane %v1296, %v1309
        %v1311 = vcombine.high %v1287, 0.0
        %v1312 = vcombine.high %v1294, 0.0
        %v1313 = vcombine.high %v1303, 0.0
        %v1314 = vcombine.high %v1310, 0.0
        %v1315 = vpack.c.bf16 %v1131, %v1131
        %v1316 = vpack.c.bf16 %v1155, %v1155
        %v1317 = vpack.c.bf16 %v1138, %v1138
        %v1318 = vpack.c.bf16 %v1156, %v1156
        %v1319 = vpack.c.bf16 %v1147, %v1147
        %v1320 = vpack.c.bf16 %v1157, %v1157
        %v1321 = vpack.c.bf16 %v1154, %v1154
        %v1322 = vpack.c.bf16 %v1158, %v1158
        %v1323 = vpack.c.bf16 %v1209, %v1209
        %v1324 = vpack.c.bf16 %v1233, %v1233
        %v1325 = vpack.c.bf16 %v1216, %v1216
        %v1326 = vpack.c.bf16 %v1234, %v1234
        %v1327 = vpack.c.bf16 %v1225, %v1225
        %v1328 = vpack.c.bf16 %v1235, %v1235
        %v1329 = vpack.c.bf16 %v1232, %v1232
        %v1330 = vpack.c.bf16 %v1236, %v1236
        %v1331 = vcombine.low %v1315, %v1319
        %v1333 = vunpack.c.l.s4 1983009808
        %v1334 = vunpack.c.0.s8 %v1333
        %v1335 = vlaneseq
        %v1336 = vshrl.u32 %v1335, 7
        %v1337 = vsub.s32 %v1334, %v1336
        %v1338 = vrot.slane %v1331, %v1337
        %v1339 = vcombine.low %v1317, %v1321
        %v1341 = vunpack.c.l.s4 1983009808
        %v1342 = vunpack.c.0.s8 %v1341
        %v1343 = vlaneseq
        %v1344 = vshrl.u32 %v1343, 7
        %v1345 = vsub.s32 %v1342, %v1344
        %v1346 = vrot.slane %v1339, %v1345
        %v1347 = vcombine.low %v1338, %v1346
        %v1349 = vunpack.c.l.s4 1934713408
        %v1350 = vunpack.c.0.s8 %v1349
        %v1351 = vlaneseq
        %v1352 = vshrl.u32 %v1351, 7
        %v1353 = vsub.s32 %v1350, %v1352
        %v1354 = vrot.slane %v1347, %v1353
        %v1355 = vcombine.high %v1354, 0
        %v1356 = vcombine.low %v1316, %v1320
        %v1358 = vunpack.c.l.s4 1983009808
        %v1359 = vunpack.c.0.s8 %v1358
        %v1360 = vlaneseq
        %v1361 = vshrl.u32 %v1360, 7
        %v1362 = vsub.s32 %v1359, %v1361
        %v1363 = vrot.slane %v1356, %v1362
        %v1364 = vcombine.low %v1318, %v1322
        %v1366 = vunpack.c.l.s4 1983009808
        %v1367 = vunpack.c.0.s8 %v1366
        %v1368 = vlaneseq
        %v1369 = vshrl.u32 %v1368, 7
        %v1370 = vsub.s32 %v1367, %v1369
        %v1371 = vrot.slane %v1364, %v1370
        %v1372 = vcombine.low %v1363, %v1371
        %v1374 = vunpack.c.l.s4 1934713408
        %v1375 = vunpack.c.0.s8 %v1374
        %v1376 = vlaneseq
        %v1377 = vshrl.u32 %v1376, 7
        %v1378 = vsub.s32 %v1375, %v1377
        %v1379 = vrot.slane %v1372, %v1378
        %v1380 = vcombine.high %v1379, 0
        %v1383 = vpack.i.b16 %v1379, %v1354
        %v1384 = vshrl.u32 %v1354, 16
        %v1385 = vshrl.u32 %v1379, 16
        %v1386 = vpack.i.b16 %v1385, %v1384
        %v1389 = vpack.i.b16 %v1380, %v1355
        %v1390 = vshrl.u32 %v1355, 16
        %v1391 = vshrl.u32 %v1380, 16
        %v1392 = vpack.i.b16 %v1391, %v1390
        %1393 = vxpose.xlu0.c.b16.start [1/8] %v1323, 128
        %1394 = vxpose.xlu0.c.b16.cont [2/8] 0, 128
        %1395 = vxpose.xlu0.c.b16.cont [3/8] 0, 128
        %1396 = vxpose.xlu0.c.b16.cont [4/8] 0, 128
        %1397 = vxpose.xlu0.c.b16.cont [5/8] 0, 128
        %1398 = vxpose.xlu0.c.b16.cont [6/8] 0, 128
        %1399 = vxpose.xlu0.c.b16.cont [7/8] 0, 128
        %1400 = vxpose.xlu0.c.b16.end [8/8] 0, 128
        %v1401 = vpop.trf.xlu0
        %v1402 = vpop.trf.xlu0
        %v1403 = vpop.trf.xlu0
        %v1404 = vpop.trf.xlu0
        %v1405 = vpop.trf.xlu0
        %v1406 = vpop.trf.xlu0
        %v1407 = vpop.trf.xlu0
        %v1408 = vpop.trf.xlu0
        %1409 = vxpose.xlu0.c.b16.start [1/8] %v1324, 128
        %1410 = vxpose.xlu0.c.b16.cont [2/8] 0, 128
        %1411 = vxpose.xlu0.c.b16.cont [3/8] 0, 128
        %1412 = vxpose.xlu0.c.b16.cont [4/8] 0, 128
        %1413 = vxpose.xlu0.c.b16.cont [5/8] 0, 128
        %1414 = vxpose.xlu0.c.b16.cont [6/8] 0, 128
        %1415 = vxpose.xlu0.c.b16.cont [7/8] 0, 128
        %1416 = vxpose.xlu0.c.b16.end [8/8] 0, 128
        %v1417 = vpop.trf.xlu0
        %v1418 = vpop.trf.xlu0
        %v1419 = vpop.trf.xlu0
        %v1420 = vpop.trf.xlu0
        %v1421 = vpop.trf.xlu0
        %v1422 = vpop.trf.xlu0
        %v1423 = vpop.trf.xlu0
        %v1424 = vpop.trf.xlu0
        %1425 = vxpose.xlu0.c.b16.start [1/8] %v1325, 128
        %1426 = vxpose.xlu0.c.b16.cont [2/8] 0, 128
        %1427 = vxpose.xlu0.c.b16.cont [3/8] 0, 128
        %1428 = vxpose.xlu0.c.b16.cont [4/8] 0, 128
        %1429 = vxpose.xlu0.c.b16.cont [5/8] 0, 128
        %1430 = vxpose.xlu0.c.b16.cont [6/8] 0, 128
        %1431 = vxpose.xlu0.c.b16.cont [7/8] 0, 128
        %1432 = vxpose.xlu0.c.b16.end [8/8] 0, 128
        %v1433 = vpop.trf.xlu0
        %v1434 = vpop.trf.xlu0
        %v1435 = vpop.trf.xlu0
        %v1436 = vpop.trf.xlu0
        %v1437 = vpop.trf.xlu0
        %v1438 = vpop.trf.xlu0
        %v1439 = vpop.trf.xlu0
        %v1440 = vpop.trf.xlu0
        %1441 = vxpose.xlu0.c.b16.start [1/8] %v1326, 128
        %1442 = vxpose.xlu0.c.b16.cont [2/8] 0, 128
        %1443 = vxpose.xlu0.c.b16.cont [3/8] 0, 128
        %1444 = vxpose.xlu0.c.b16.cont [4/8] 0, 128
        %1445 = vxpose.xlu0.c.b16.cont [5/8] 0, 128
        %1446 = vxpose.xlu0.c.b16.cont [6/8] 0, 128
        %1447 = vxpose.xlu0.c.b16.cont [7/8] 0, 128
        %1448 = vxpose.xlu0.c.b16.end [8/8] 0, 128
        %v1449 = vpop.trf.xlu0
        %v1450 = vpop.trf.xlu0
        %v1451 = vpop.trf.xlu0
        %v1452 = vpop.trf.xlu0
        %v1453 = vpop.trf.xlu0
        %v1454 = vpop.trf.xlu0
        %v1455 = vpop.trf.xlu0
        %v1456 = vpop.trf.xlu0
        %1457 = vxpose.xlu0.c.b16.start [1/8] %v1327, 128
        %1458 = vxpose.xlu0.c.b16.cont [2/8] 0, 128
        %1459 = vxpose.xlu0.c.b16.cont [3/8] 0, 128
        %1460 = vxpose.xlu0.c.b16.cont [4/8] 0, 128
        %1461 = vxpose.xlu0.c.b16.cont [5/8] 0, 128
        %1462 = vxpose.xlu0.c.b16.cont [6/8] 0, 128
        %1463 = vxpose.xlu0.c.b16.cont [7/8] 0, 128
        %1464 = vxpose.xlu0.c.b16.end [8/8] 0, 128
        %v1465 = vpop.trf.xlu0
        %v1466 = vpop.trf.xlu0
        %v1467 = vpop.trf.xlu0
        %v1468 = vpop.trf.xlu0
        %v1469 = vpop.trf.xlu0
        %v1470 = vpop.trf.xlu0
        %v1471 = vpop.trf.xlu0
        %v1472 = vpop.trf.xlu0
        %1473 = vxpose.xlu0.c.b16.start [1/8] %v1328, 128
        %1474 = vxpose.xlu0.c.b16.cont [2/8] 0, 128
        %1475 = vxpose.xlu0.c.b16.cont [3/8] 0, 128
        %1476 = vxpose.xlu0.c.b16.cont [4/8] 0, 128
        %1477 = vxpose.xlu0.c.b16.cont [5/8] 0, 128
        %1478 = vxpose.xlu0.c.b16.cont [6/8] 0, 128
        %1479 = vxpose.xlu0.c.b16.cont [7/8] 0, 128
        %1480 = vxpose.xlu0.c.b16.end [8/8] 0, 128
        %v1481 = vpop.trf.xlu0
        %v1482 = vpop.trf.xlu0
        %v1483 = vpop.trf.xlu0
        %v1484 = vpop.trf.xlu0
        %v1485 = vpop.trf.xlu0
        %v1486 = vpop.trf.xlu0
        %v1487 = vpop.trf.xlu0
        %v1488 = vpop.trf.xlu0
        %1489 = vxpose.xlu0.c.b16.start [1/8] %v1329, 128
        %1490 = vxpose.xlu0.c.b16.cont [2/8] 0, 128
        %1491 = vxpose.xlu0.c.b16.cont [3/8] 0, 128
        %1492 = vxpose.xlu0.c.b16.cont [4/8] 0, 128
        %1493 = vxpose.xlu0.c.b16.cont [5/8] 0, 128
        %1494 = vxpose.xlu0.c.b16.cont [6/8] 0, 128
        %1495 = vxpose.xlu0.c.b16.cont [7/8] 0, 128
        %1496 = vxpose.xlu0.c.b16.end [8/8] 0, 128
        %v1497 = vpop.trf.xlu0
        %v1498 = vpop.trf.xlu0
        %v1499 = vpop.trf.xlu0
        %v1500 = vpop.trf.xlu0
        %v1501 = vpop.trf.xlu0
        %v1502 = vpop.trf.xlu0
        %v1503 = vpop.trf.xlu0
        %v1504 = vpop.trf.xlu0
        %1505 = vxpose.xlu0.c.b16.start [1/8] %v1330, 128
        %1506 = vxpose.xlu0.c.b16.cont [2/8] 0, 128
        %1507 = vxpose.xlu0.c.b16.cont [3/8] 0, 128
        %1508 = vxpose.xlu0.c.b16.cont [4/8] 0, 128
        %1509 = vxpose.xlu0.c.b16.cont [5/8] 0, 128
        %1510 = vxpose.xlu0.c.b16.cont [6/8] 0, 128
        %1511 = vxpose.xlu0.c.b16.cont [7/8] 0, 128
        %1512 = vxpose.xlu0.c.b16.end [8/8] 0, 128
        %v1513 = vpop.trf.xlu0
        %v1514 = vpop.trf.xlu0
        %v1515 = vpop.trf.xlu0
        %v1516 = vpop.trf.xlu0
        %v1517 = vpop.trf.xlu0
        %v1518 = vpop.trf.xlu0
        %v1519 = vpop.trf.xlu0
        %v1520 = vpop.trf.xlu0
        %v1523 = vpack.i.b16 %v1417, %v1401
        %v1525 = vshrl.u32 %v1401, 16
        %v1526 = vshrl.u32 %v1417, 16
        %v1527 = vpack.i.b16 %v1526, %v1525
        %v1531 = vpack.i.b16 %v1449, %v1433
        %v1533 = vshrl.u32 %v1433, 16
        %v1534 = vshrl.u32 %v1449, 16
        %v1535 = vpack.i.b16 %v1534, %v1533
        %v1539 = vpack.i.b16 %v1481, %v1465
        %v1541 = vshrl.u32 %v1465, 16
        %v1542 = vshrl.u32 %v1481, 16
        %v1543 = vpack.i.b16 %v1542, %v1541
        %v1547 = vpack.i.b16 %v1513, %v1497
        %v1549 = vshrl.u32 %v1497, 16
        %v1550 = vshrl.u32 %v1513, 16
        %v1551 = vpack.i.b16 %v1550, %v1549
        %v1555 = vpack.i.b16 %v1418, %v1402
        %v1557 = vshrl.u32 %v1402, 16
        %v1558 = vshrl.u32 %v1418, 16
        %v1559 = vpack.i.b16 %v1558, %v1557
        %v1563 = vpack.i.b16 %v1450, %v1434
        %v1565 = vshrl.u32 %v1434, 16
        %v1566 = vshrl.u32 %v1450, 16
        %v1567 = vpack.i.b16 %v1566, %v1565
        %v1571 = vpack.i.b16 %v1482, %v1466
        %v1573 = vshrl.u32 %v1466, 16
        %v1574 = vshrl.u32 %v1482, 16
        %v1575 = vpack.i.b16 %v1574, %v1573
        %v1579 = vpack.i.b16 %v1514, %v1498
        %v1581 = vshrl.u32 %v1498, 16
        %v1582 = vshrl.u32 %v1514, 16
        %v1583 = vpack.i.b16 %v1582, %v1581
        %v1585 = vcombine.low %v1523, %v1539
        %v1586 = vcombine.high %v1523, %v1539
        %v1588 = vunpack.c.l.s4 1983009808
        %v1589 = vunpack.c.0.s8 %v1588
        %v1590 = vlaneseq
        %v1591 = vshrl.u32 %v1590, 7
        %v1592 = vsub.s32 %v1589, %v1591
        %v1593 = vrot.slane %v1585, %v1592
        %v1595 = vunpack.c.l.s4 1983009808
        %v1596 = vunpack.c.0.s8 %v1595
        %v1597 = vlaneseq
        %v1598 = vshrl.u32 %v1597, 7
        %v1599 = vsub.s32 %v1596, %v1598
        %v1600 = vrot.slane %v1586, %v1599
        %v1601 = vcombine.low %v1531, %v1547
        %v1602 = vcombine.high %v1531, %v1547
        %v1604 = vunpack.c.l.s4 1983009808
        %v1605 = vunpack.c.0.s8 %v1604
        %v1606 = vlaneseq
        %v1607 = vshrl.u32 %v1606, 7
        %v1608 = vsub.s32 %v1605, %v1607
        %v1609 = vrot.slane %v1601, %v1608
        %v1611 = vunpack.c.l.s4 1983009808
        %v1612 = vunpack.c.0.s8 %v1611
        %v1613 = vlaneseq
        %v1614 = vshrl.u32 %v1613, 7
        %v1615 = vsub.s32 %v1612, %v1614
        %v1616 = vrot.slane %v1602, %v1615
        %v1617 = vcombine.low %v1593, %v1609
        %v1618 = vcombine.high %v1593, %v1609
        %v1620 = vunpack.c.l.s4 1934713408
        %v1621 = vunpack.c.0.s8 %v1620
        %v1622 = vlaneseq
        %v1623 = vshrl.u32 %v1622, 7
        %v1624 = vsub.s32 %v1621, %v1623
        %v1625 = vrot.slane %v1617, %v1624
        %v1627 = vunpack.c.l.s4 1934713408
        %v1628 = vunpack.c.0.s8 %v1627
        %v1629 = vlaneseq
        %v1630 = vshrl.u32 %v1629, 7
        %v1631 = vsub.s32 %v1628, %v1630
        %v1632 = vrot.slane %v1618, %v1631
        %v1633 = vcombine.low %v1600, %v1616
        %v1634 = vcombine.high %v1600, %v1616
        %v1636 = vunpack.c.l.s4 1934713408
        %v1637 = vunpack.c.0.s8 %v1636
        %v1638 = vlaneseq
        %v1639 = vshrl.u32 %v1638, 7
        %v1640 = vsub.s32 %v1637, %v1639
        %v1641 = vrot.slane %v1633, %v1640
        %v1643 = vunpack.c.l.s4 1934713408
        %v1644 = vunpack.c.0.s8 %v1643
        %v1645 = vlaneseq
        %v1646 = vshrl.u32 %v1645, 7
        %v1647 = vsub.s32 %v1644, %v1646
        %v1648 = vrot.slane %v1634, %v1647
        %v1649 = vcombine.high %v1625, 0
        %v1650 = vcombine.high %v1632, 0
        %v1651 = vcombine.high %v1641, 0
        %v1652 = vcombine.high %v1648, 0
        %v1653 = vcombine.low %v1527, %v1543
        %v1654 = vcombine.high %v1527, %v1543
        %v1656 = vunpack.c.l.s4 1983009808
        %v1657 = vunpack.c.0.s8 %v1656
        %v1658 = vlaneseq
        %v1659 = vshrl.u32 %v1658, 7
        %v1660 = vsub.s32 %v1657, %v1659
        %v1661 = vrot.slane %v1653, %v1660
        %v1663 = vunpack.c.l.s4 1983009808
        %v1664 = vunpack.c.0.s8 %v1663
        %v1665 = vlaneseq
        %v1666 = vshrl.u32 %v1665, 7
        %v1667 = vsub.s32 %v1664, %v1666
        %v1668 = vrot.slane %v1654, %v1667
        %v1669 = vcombine.low %v1535, %v1551
        %v1670 = vcombine.high %v1535, %v1551
        %v1672 = vunpack.c.l.s4 1983009808
        %v1673 = vunpack.c.0.s8 %v1672
        %v1674 = vlaneseq
        %v1675 = vshrl.u32 %v1674, 7
        %v1676 = vsub.s32 %v1673, %v1675
        %v1677 = vrot.slane %v1669, %v1676
        %v1679 = vunpack.c.l.s4 1983009808
        %v1680 = vunpack.c.0.s8 %v1679
        %v1681 = vlaneseq
        %v1682 = vshrl.u32 %v1681, 7
        %v1683 = vsub.s32 %v1680, %v1682
        %v1684 = vrot.slane %v1670, %v1683
        %v1685 = vcombine.low %v1661, %v1677
        %v1686 = vcombine.high %v1661, %v1677
        %v1688 = vunpack.c.l.s4 1934713408
        %v1689 = vunpack.c.0.s8 %v1688
        %v1690 = vlaneseq
        %v1691 = vshrl.u32 %v1690, 7
        %v1692 = vsub.s32 %v1689, %v1691
        %v1693 = vrot.slane %v1685, %v1692
        %v1695 = vunpack.c.l.s4 1934713408
        %v1696 = vunpack.c.0.s8 %v1695
        %v1697 = vlaneseq
        %v1698 = vshrl.u32 %v1697, 7
        %v1699 = vsub.s32 %v1696, %v1698
        %v1700 = vrot.slane %v1686, %v1699
        %v1701 = vcombine.low %v1668, %v1684
        %v1702 = vcombine.high %v1668, %v1684
        %v1704 = vunpack.c.l.s4 1934713408
        %v1705 = vunpack.c.0.s8 %v1704
        %v1706 = vlaneseq
        %v1707 = vshrl.u32 %v1706, 7
        %v1708 = vsub.s32 %v1705, %v1707
        %v1709 = vrot.slane %v1701, %v1708
        %v1711 = vunpack.c.l.s4 1934713408
        %v1712 = vunpack.c.0.s8 %v1711
        %v1713 = vlaneseq
        %v1714 = vshrl.u32 %v1713, 7
        %v1715 = vsub.s32 %v1712, %v1714
        %v1716 = vrot.slane %v1702, %v1715
        %v1717 = vcombine.high %v1693, 0
        %v1718 = vcombine.high %v1700, 0
        %v1719 = vcombine.high %v1709, 0
        %v1720 = vcombine.high %v1716, 0
        %v1721 = vcombine.low %v1555, %v1571
        %v1722 = vcombine.high %v1555, %v1571
        %v1724 = vunpack.c.l.s4 1983009808
        %v1725 = vunpack.c.0.s8 %v1724
        %v1726 = vlaneseq
        %v1727 = vshrl.u32 %v1726, 7
        %v1728 = vsub.s32 %v1725, %v1727
        %v1729 = vrot.slane %v1721, %v1728
        %v1731 = vunpack.c.l.s4 1983009808
        %v1732 = vunpack.c.0.s8 %v1731
        %v1733 = vlaneseq
        %v1734 = vshrl.u32 %v1733, 7
        %v1735 = vsub.s32 %v1732, %v1734
        %v1736 = vrot.slane %v1722, %v1735
        %v1737 = vcombine.low %v1563, %v1579
        %v1738 = vcombine.high %v1563, %v1579
        %v1740 = vunpack.c.l.s4 1983009808
        %v1741 = vunpack.c.0.s8 %v1740
        %v1742 = vlaneseq
        %v1743 = vshrl.u32 %v1742, 7
        %v1744 = vsub.s32 %v1741, %v1743
        %v1745 = vrot.slane %v1737, %v1744
        %v1747 = vunpack.c.l.s4 1983009808
        %v1748 = vunpack.c.0.s8 %v1747
        %v1749 = vlaneseq
        %v1750 = vshrl.u32 %v1749, 7
        %v1751 = vsub.s32 %v1748, %v1750
        %v1752 = vrot.slane %v1738, %v1751
        %v1753 = vcombine.low %v1729, %v1745
        %v1754 = vcombine.high %v1729, %v1745
        %v1756 = vunpack.c.l.s4 1934713408
        %v1757 = vunpack.c.0.s8 %v1756
        %v1758 = vlaneseq
        %v1759 = vshrl.u32 %v1758, 7
        %v1760 = vsub.s32 %v1757, %v1759
        %v1761 = vrot.slane %v1753, %v1760
        %v1763 = vunpack.c.l.s4 1934713408
        %v1764 = vunpack.c.0.s8 %v1763
        %v1765 = vlaneseq
        %v1766 = vshrl.u32 %v1765, 7
        %v1767 = vsub.s32 %v1764, %v1766
        %v1768 = vrot.slane %v1754, %v1767
        %v1769 = vcombine.low %v1736, %v1752
        %v1770 = vcombine.high %v1736, %v1752
        %v1772 = vunpack.c.l.s4 1934713408
        %v1773 = vunpack.c.0.s8 %v1772
        %v1774 = vlaneseq
        %v1775 = vshrl.u32 %v1774, 7
        %v1776 = vsub.s32 %v1773, %v1775
        %v1777 = vrot.slane %v1769, %v1776
        %v1779 = vunpack.c.l.s4 1934713408
        %v1780 = vunpack.c.0.s8 %v1779
        %v1781 = vlaneseq
        %v1782 = vshrl.u32 %v1781, 7
        %v1783 = vsub.s32 %v1780, %v1782
        %v1784 = vrot.slane %v1770, %v1783
        %v1785 = vcombine.high %v1761, 0
        %v1786 = vcombine.high %v1768, 0
        %v1787 = vcombine.high %v1777, 0
        %v1788 = vcombine.high %v1784, 0
        %v1789 = vcombine.low %v1559, %v1575
        %v1790 = vcombine.high %v1559, %v1575
        %v1792 = vunpack.c.l.s4 1983009808
        %v1793 = vunpack.c.0.s8 %v1792
        %v1794 = vlaneseq
        %v1795 = vshrl.u32 %v1794, 7
        %v1796 = vsub.s32 %v1793, %v1795
        %v1797 = vrot.slane %v1789, %v1796
        %v1799 = vunpack.c.l.s4 1983009808
        %v1800 = vunpack.c.0.s8 %v1799
        %v1801 = vlaneseq
        %v1802 = vshrl.u32 %v1801, 7
        %v1803 = vsub.s32 %v1800, %v1802
        %v1804 = vrot.slane %v1790, %v1803
        %v1805 = vcombine.low %v1567, %v1583
        %v1806 = vcombine.high %v1567, %v1583
        %v1808 = vunpack.c.l.s4 1983009808
        %v1809 = vunpack.c.0.s8 %v1808
        %v1810 = vlaneseq
        %v1811 = vshrl.u32 %v1810, 7
        %v1812 = vsub.s32 %v1809, %v1811
        %v1813 = vrot.slane %v1805, %v1812
        %v1815 = vunpack.c.l.s4 1983009808
        %v1816 = vunpack.c.0.s8 %v1815
        %v1817 = vlaneseq
        %v1818 = vshrl.u32 %v1817, 7
        %v1819 = vsub.s32 %v1816, %v1818
        %v1820 = vrot.slane %v1806, %v1819
        %v1821 = vcombine.low %v1797, %v1813
        %v1822 = vcombine.high %v1797, %v1813
        %v1824 = vunpack.c.l.s4 1934713408
        %v1825 = vunpack.c.0.s8 %v1824
        %v1826 = vlaneseq
        %v1827 = vshrl.u32 %v1826, 7
        %v1828 = vsub.s32 %v1825, %v1827
        %v1829 = vrot.slane %v1821, %v1828
        %v1831 = vunpack.c.l.s4 1934713408
        %v1832 = vunpack.c.0.s8 %v1831
        %v1833 = vlaneseq
        %v1834 = vshrl.u32 %v1833, 7
        %v1835 = vsub.s32 %v1832, %v1834
        %v1836 = vrot.slane %v1822, %v1835
        %v1837 = vcombine.low %v1804, %v1820
        %v1838 = vcombine.high %v1804, %v1820
        %v1840 = vunpack.c.l.s4 1934713408
        %v1841 = vunpack.c.0.s8 %v1840
        %v1842 = vlaneseq
        %v1843 = vshrl.u32 %v1842, 7
        %v1844 = vsub.s32 %v1841, %v1843
        %v1845 = vrot.slane %v1837, %v1844
        %v1847 = vunpack.c.l.s4 1934713408
        %v1848 = vunpack.c.0.s8 %v1847
        %v1849 = vlaneseq
        %v1850 = vshrl.u32 %v1849, 7
        %v1851 = vsub.s32 %v1848, %v1850
        %v1852 = vrot.slane %v1838, %v1851
        %v1853 = vcombine.high %v1829, 0
        %v1854 = vcombine.high %v1836, 0
        %v1855 = vcombine.high %v1845, 0
        %v1856 = vcombine.high %v1852, 0
        %1857 = vxpose.xlu0.c.b16.start [1/8] %v1625, 128
        %1858 = vxpose.xlu0.c.b16.cont [2/8] 0, 128
        %1859 = vxpose.xlu0.c.b16.cont [3/8] 0, 128
        %1860 = vxpose.xlu0.c.b16.cont [4/8] 0, 128
        %1861 = vxpose.xlu0.c.b16.cont [5/8] 0, 128
        %1862 = vxpose.xlu0.c.b16.cont [6/8] 0, 128
        %1863 = vxpose.xlu0.c.b16.cont [7/8] 0, 128
        %1864 = vxpose.xlu0.c.b16.end [8/8] 0, 128
        %v1865 = vpop.trf.xlu0
        %v1866 = vpop.trf.xlu0
        %v1867 = vpop.trf.xlu0
        %v1868 = vpop.trf.xlu0
        %v1869 = vpop.trf.xlu0
        %v1870 = vpop.trf.xlu0
        %v1871 = vpop.trf.xlu0
        %v1872 = vpop.trf.xlu0
        %1873 = vxpose.xlu0.c.b16.start [1/8] %v1693, 128
        %1874 = vxpose.xlu0.c.b16.cont [2/8] 0, 128
        %1875 = vxpose.xlu0.c.b16.cont [3/8] 0, 128
        %1876 = vxpose.xlu0.c.b16.cont [4/8] 0, 128
        %1877 = vxpose.xlu0.c.b16.cont [5/8] 0, 128
        %1878 = vxpose.xlu0.c.b16.cont [6/8] 0, 128
        %1879 = vxpose.xlu0.c.b16.cont [7/8] 0, 128
        %1880 = vxpose.xlu0.c.b16.end [8/8] 0, 128
        %v1881 = vpop.trf.xlu0
        %v1882 = vpop.trf.xlu0
        %v1883 = vpop.trf.xlu0
        %v1884 = vpop.trf.xlu0
        %v1885 = vpop.trf.xlu0
        %v1886 = vpop.trf.xlu0
        %v1887 = vpop.trf.xlu0
        %v1888 = vpop.trf.xlu0
        %1889 = vxpose.xlu0.c.b16.start [1/8] %v1649, 128
        %1890 = vxpose.xlu0.c.b16.cont [2/8] 0, 128
        %1891 = vxpose.xlu0.c.b16.cont [3/8] 0, 128
        %1892 = vxpose.xlu0.c.b16.cont [4/8] 0, 128
        %1893 = vxpose.xlu0.c.b16.cont [5/8] 0, 128
        %1894 = vxpose.xlu0.c.b16.cont [6/8] 0, 128
        %1895 = vxpose.xlu0.c.b16.cont [7/8] 0, 128
        %1896 = vxpose.xlu0.c.b16.end [8/8] 0, 128
        %v1897 = vpop.trf.xlu0
        %v1898 = vpop.trf.xlu0
        %v1899 = vpop.trf.xlu0
        %v1900 = vpop.trf.xlu0
        %v1901 = vpop.trf.xlu0
        %v1902 = vpop.trf.xlu0
        %v1903 = vpop.trf.xlu0
        %v1904 = vpop.trf.xlu0
        %1905 = vxpose.xlu0.c.b16.start [1/8] %v1717, 128
        %1906 = vxpose.xlu0.c.b16.cont [2/8] 0, 128
        %1907 = vxpose.xlu0.c.b16.cont [3/8] 0, 128
        %1908 = vxpose.xlu0.c.b16.cont [4/8] 0, 128
        %1909 = vxpose.xlu0.c.b16.cont [5/8] 0, 128
        %1910 = vxpose.xlu0.c.b16.cont [6/8] 0, 128
        %1911 = vxpose.xlu0.c.b16.cont [7/8] 0, 128
        %1912 = vxpose.xlu0.c.b16.end [8/8] 0, 128
        %v1913 = vpop.trf.xlu0
        %v1914 = vpop.trf.xlu0
        %v1915 = vpop.trf.xlu0
        %v1916 = vpop.trf.xlu0
        %v1917 = vpop.trf.xlu0
        %v1918 = vpop.trf.xlu0
        %v1919 = vpop.trf.xlu0
        %v1920 = vpop.trf.xlu0
        %1921 = vxpose.xlu0.c.b16.start [1/8] %v1632, 128
        %1922 = vxpose.xlu0.c.b16.cont [2/8] 0, 128
        %1923 = vxpose.xlu0.c.b16.cont [3/8] 0, 128
        %1924 = vxpose.xlu0.c.b16.cont [4/8] 0, 128
        %1925 = vxpose.xlu0.c.b16.cont [5/8] 0, 128
        %1926 = vxpose.xlu0.c.b16.cont [6/8] 0, 128
        %1927 = vxpose.xlu0.c.b16.cont [7/8] 0, 128
        %1928 = vxpose.xlu0.c.b16.end [8/8] 0, 128
        %v1929 = vpop.trf.xlu0
        %v1930 = vpop.trf.xlu0
        %v1931 = vpop.trf.xlu0
        %v1932 = vpop.trf.xlu0
        %v1933 = vpop.trf.xlu0
        %v1934 = vpop.trf.xlu0
        %v1935 = vpop.trf.xlu0
        %v1936 = vpop.trf.xlu0
        %1937 = vxpose.xlu0.c.b16.start [1/8] %v1700, 128
        %1938 = vxpose.xlu0.c.b16.cont [2/8] 0, 128
        %1939 = vxpose.xlu0.c.b16.cont [3/8] 0, 128
        %1940 = vxpose.xlu0.c.b16.cont [4/8] 0, 128
        %1941 = vxpose.xlu0.c.b16.cont [5/8] 0, 128
        %1942 = vxpose.xlu0.c.b16.cont [6/8] 0, 128
        %1943 = vxpose.xlu0.c.b16.cont [7/8] 0, 128
        %1944 = vxpose.xlu0.c.b16.end [8/8] 0, 128
        %v1945 = vpop.trf.xlu0
        %v1946 = vpop.trf.xlu0
        %v1947 = vpop.trf.xlu0
        %v1948 = vpop.trf.xlu0
        %v1949 = vpop.trf.xlu0
        %v1950 = vpop.trf.xlu0
        %v1951 = vpop.trf.xlu0
        %v1952 = vpop.trf.xlu0
        %1953 = vxpose.xlu0.c.b16.start [1/8] %v1650, 128
        %1954 = vxpose.xlu0.c.b16.cont [2/8] 0, 128
        %1955 = vxpose.xlu0.c.b16.cont [3/8] 0, 128
        %1956 = vxpose.xlu0.c.b16.cont [4/8] 0, 128
        %1957 = vxpose.xlu0.c.b16.cont [5/8] 0, 128
        %1958 = vxpose.xlu0.c.b16.cont [6/8] 0, 128
        %1959 = vxpose.xlu0.c.b16.cont [7/8] 0, 128
        %1960 = vxpose.xlu0.c.b16.end [8/8] 0, 128
        %v1961 = vpop.trf.xlu0
        %v1962 = vpop.trf.xlu0
        %v1963 = vpop.trf.xlu0
        %v1964 = vpop.trf.xlu0
        %v1965 = vpop.trf.xlu0
        %v1966 = vpop.trf.xlu0
        %v1967 = vpop.trf.xlu0
        %v1968 = vpop.trf.xlu0
        %1969 = vxpose.xlu0.c.b16.start [1/8] %v1718, 128
        %1970 = vxpose.xlu0.c.b16.cont [2/8] 0, 128
        %1971 = vxpose.xlu0.c.b16.cont [3/8] 0, 128
        %1972 = vxpose.xlu0.c.b16.cont [4/8] 0, 128
        %1973 = vxpose.xlu0.c.b16.cont [5/8] 0, 128
        %1974 = vxpose.xlu0.c.b16.cont [6/8] 0, 128
        %1975 = vxpose.xlu0.c.b16.cont [7/8] 0, 128
        %1976 = vxpose.xlu0.c.b16.end [8/8] 0, 128
        %v1977 = vpop.trf.xlu0
        %v1978 = vpop.trf.xlu0
        %v1979 = vpop.trf.xlu0
        %v1980 = vpop.trf.xlu0
        %v1981 = vpop.trf.xlu0
        %v1982 = vpop.trf.xlu0
        %v1983 = vpop.trf.xlu0
        %v1984 = vpop.trf.xlu0
        %1985 = vxpose.xlu0.c.b16.start [1/8] %v1641, 128
        %1986 = vxpose.xlu0.c.b16.cont [2/8] 0, 128
        %1987 = vxpose.xlu0.c.b16.cont [3/8] 0, 128
        %1988 = vxpose.xlu0.c.b16.cont [4/8] 0, 128
        %1989 = vxpose.xlu0.c.b16.cont [5/8] 0, 128
        %1990 = vxpose.xlu0.c.b16.cont [6/8] 0, 128
        %1991 = vxpose.xlu0.c.b16.cont [7/8] 0, 128
        %1992 = vxpose.xlu0.c.b16.end [8/8] 0, 128
        %v1993 = vpop.trf.xlu0
        %v1994 = vpop.trf.xlu0
        %v1995 = vpop.trf.xlu0
        %v1996 = vpop.trf.xlu0
        %v1997 = vpop.trf.xlu0
        %v1998 = vpop.trf.xlu0
        %v1999 = vpop.trf.xlu0
        %v2000 = vpop.trf.xlu0
        %2001 = vxpose.xlu0.c.b16.start [1/8] %v1709, 128
        %2002 = vxpose.xlu0.c.b16.cont [2/8] 0, 128
        %2003 = vxpose.xlu0.c.b16.cont [3/8] 0, 128
        %2004 = vxpose.xlu0.c.b16.cont [4/8] 0, 128
        %2005 = vxpose.xlu0.c.b16.cont [5/8] 0, 128
        %2006 = vxpose.xlu0.c.b16.cont [6/8] 0, 128
        %2007 = vxpose.xlu0.c.b16.cont [7/8] 0, 128
        %2008 = vxpose.xlu0.c.b16.end [8/8] 0, 128
        %v2009 = vpop.trf.xlu0
        %v2010 = vpop.trf.xlu0
        %v2011 = vpop.trf.xlu0
        %v2012 = vpop.trf.xlu0
        %v2013 = vpop.trf.xlu0
        %v2014 = vpop.trf.xlu0
        %v2015 = vpop.trf.xlu0
        %v2016 = vpop.trf.xlu0
        %2017 = vxpose.xlu0.c.b16.start [1/8] %v1651, 128
        %2018 = vxpose.xlu0.c.b16.cont [2/8] 0, 128
        %2019 = vxpose.xlu0.c.b16.cont [3/8] 0, 128
        %2020 = vxpose.xlu0.c.b16.cont [4/8] 0, 128
        %2021 = vxpose.xlu0.c.b16.cont [5/8] 0, 128
        %2022 = vxpose.xlu0.c.b16.cont [6/8] 0, 128
        %2023 = vxpose.xlu0.c.b16.cont [7/8] 0, 128
        %2024 = vxpose.xlu0.c.b16.end [8/8] 0, 128
        %v2025 = vpop.trf.xlu0
        %v2026 = vpop.trf.xlu0
        %v2027 = vpop.trf.xlu0
        %v2028 = vpop.trf.xlu0
        %v2029 = vpop.trf.xlu0
        %v2030 = vpop.trf.xlu0
        %v2031 = vpop.trf.xlu0
        %v2032 = vpop.trf.xlu0
        %2033 = vxpose.xlu0.c.b16.start [1/8] %v1719, 128
        %2034 = vxpose.xlu0.c.b16.cont [2/8] 0, 128
        %2035 = vxpose.xlu0.c.b16.cont [3/8] 0, 128
        %2036 = vxpose.xlu0.c.b16.cont [4/8] 0, 128
        %2037 = vxpose.xlu0.c.b16.cont [5/8] 0, 128
        %2038 = vxpose.xlu0.c.b16.cont [6/8] 0, 128
        %2039 = vxpose.xlu0.c.b16.cont [7/8] 0, 128
        %2040 = vxpose.xlu0.c.b16.end [8/8] 0, 128
        %v2041 = vpop.trf.xlu0
        %v2042 = vpop.trf.xlu0
        %v2043 = vpop.trf.xlu0
        %v2044 = vpop.trf.xlu0
        %v2045 = vpop.trf.xlu0
        %v2046 = vpop.trf.xlu0
        %v2047 = vpop.trf.xlu0
        %v2048 = vpop.trf.xlu0
        %2049 = vxpose.xlu0.c.b16.start [1/8] %v1648, 128
        %2050 = vxpose.xlu0.c.b16.cont [2/8] 0, 128
        %2051 = vxpose.xlu0.c.b16.cont [3/8] 0, 128
        %2052 = vxpose.xlu0.c.b16.cont [4/8] 0, 128
        %2053 = vxpose.xlu0.c.b16.cont [5/8] 0, 128
        %2054 = vxpose.xlu0.c.b16.cont [6/8] 0, 128
        %2055 = vxpose.xlu0.c.b16.cont [7/8] 0, 128
        %2056 = vxpose.xlu0.c.b16.end [8/8] 0, 128
        %v2057 = vpop.trf.xlu0
        %v2058 = vpop.trf.xlu0
        %v2059 = vpop.trf.xlu0
        %v2060 = vpop.trf.xlu0
        %v2061 = vpop.trf.xlu0
        %v2062 = vpop.trf.xlu0
        %v2063 = vpop.trf.xlu0
        %v2064 = vpop.trf.xlu0
        %2065 = vxpose.xlu0.c.b16.start [1/8] %v1716, 128
        %2066 = vxpose.xlu0.c.b16.cont [2/8] 0, 128
        %2067 = vxpose.xlu0.c.b16.cont [3/8] 0, 128
        %2068 = vxpose.xlu0.c.b16.cont [4/8] 0, 128
        %2069 = vxpose.xlu0.c.b16.cont [5/8] 0, 128
        %2070 = vxpose.xlu0.c.b16.cont [6/8] 0, 128
        %2071 = vxpose.xlu0.c.b16.cont [7/8] 0, 128
        %2072 = vxpose.xlu0.c.b16.end [8/8] 0, 128
        %v2073 = vpop.trf.xlu0
        %v2074 = vpop.trf.xlu0
        %v2075 = vpop.trf.xlu0
        %v2076 = vpop.trf.xlu0
        %v2077 = vpop.trf.xlu0
        %v2078 = vpop.trf.xlu0
        %v2079 = vpop.trf.xlu0
        %v2080 = vpop.trf.xlu0
        %2081 = vxpose.xlu0.c.b16.start [1/8] %v1652, 128
        %2082 = vxpose.xlu0.c.b16.cont [2/8] 0, 128
        %2083 = vxpose.xlu0.c.b16.cont [3/8] 0, 128
        %2084 = vxpose.xlu0.c.b16.cont [4/8] 0, 128
        %2085 = vxpose.xlu0.c.b16.cont [5/8] 0, 128
        %2086 = vxpose.xlu0.c.b16.cont [6/8] 0, 128
        %2087 = vxpose.xlu0.c.b16.cont [7/8] 0, 128
        %2088 = vxpose.xlu0.c.b16.end [8/8] 0, 128
        %v2089 = vpop.trf.xlu0
        %v2090 = vpop.trf.xlu0
        %v2091 = vpop.trf.xlu0
        %v2092 = vpop.trf.xlu0
        %v2093 = vpop.trf.xlu0
        %v2094 = vpop.trf.xlu0
        %v2095 = vpop.trf.xlu0
        %v2096 = vpop.trf.xlu0
        %2097 = vxpose.xlu0.c.b16.start [1/8] %v1720, 128
        %2098 = vxpose.xlu0.c.b16.cont [2/8] 0, 128
        %2099 = vxpose.xlu0.c.b16.cont [3/8] 0, 128
        %2100 = vxpose.xlu0.c.b16.cont [4/8] 0, 128
        %2101 = vxpose.xlu0.c.b16.cont [5/8] 0, 128
        %2102 = vxpose.xlu0.c.b16.cont [6/8] 0, 128
        %2103 = vxpose.xlu0.c.b16.cont [7/8] 0, 128
        %2104 = vxpose.xlu0.c.b16.end [8/8] 0, 128
        %v2105 = vpop.trf.xlu0
        %v2106 = vpop.trf.xlu0
        %v2107 = vpop.trf.xlu0
        %v2108 = vpop.trf.xlu0
        %v2109 = vpop.trf.xlu0
        %v2110 = vpop.trf.xlu0
        %v2111 = vpop.trf.xlu0
        %v2112 = vpop.trf.xlu0
        %2113 = vxpose.xlu0.c.b16.start [1/8] %v1761, 128
        %2114 = vxpose.xlu0.c.b16.cont [2/8] 0, 128
        %2115 = vxpose.xlu0.c.b16.cont [3/8] 0, 128
        %2116 = vxpose.xlu0.c.b16.cont [4/8] 0, 128
        %2117 = vxpose.xlu0.c.b16.cont [5/8] 0, 128
        %2118 = vxpose.xlu0.c.b16.cont [6/8] 0, 128
        %2119 = vxpose.xlu0.c.b16.cont [7/8] 0, 128
        %2120 = vxpose.xlu0.c.b16.end [8/8] 0, 128
        %v2121 = vpop.trf.xlu0
        %v2122 = vpop.trf.xlu0
        %v2123 = vpop.trf.xlu0
        %v2124 = vpop.trf.xlu0
        %v2125 = vpop.trf.xlu0
        %v2126 = vpop.trf.xlu0
        %v2127 = vpop.trf.xlu0
        %v2128 = vpop.trf.xlu0
        %2129 = vxpose.xlu0.c.b16.start [1/8] %v1829, 128
        %2130 = vxpose.xlu0.c.b16.cont [2/8] 0, 128
        %2131 = vxpose.xlu0.c.b16.cont [3/8] 0, 128
        %2132 = vxpose.xlu0.c.b16.cont [4/8] 0, 128
        %2133 = vxpose.xlu0.c.b16.cont [5/8] 0, 128
        %2134 = vxpose.xlu0.c.b16.cont [6/8] 0, 128
        %2135 = vxpose.xlu0.c.b16.cont [7/8] 0, 128
        %2136 = vxpose.xlu0.c.b16.end [8/8] 0, 128
        %v2137 = vpop.trf.xlu0
        %v2138 = vpop.trf.xlu0
        %v2139 = vpop.trf.xlu0
        %v2140 = vpop.trf.xlu0
        %v2141 = vpop.trf.xlu0
        %v2142 = vpop.trf.xlu0
        %v2143 = vpop.trf.xlu0
        %v2144 = vpop.trf.xlu0
        %2145 = vxpose.xlu0.c.b16.start [1/8] %v1785, 128
        %2146 = vxpose.xlu0.c.b16.cont [2/8] 0, 128
        %2147 = vxpose.xlu0.c.b16.cont [3/8] 0, 128
        %2148 = vxpose.xlu0.c.b16.cont [4/8] 0, 128
        %2149 = vxpose.xlu0.c.b16.cont [5/8] 0, 128
        %2150 = vxpose.xlu0.c.b16.cont [6/8] 0, 128
        %2151 = vxpose.xlu0.c.b16.cont [7/8] 0, 128
        %2152 = vxpose.xlu0.c.b16.end [8/8] 0, 128
        %v2153 = vpop.trf.xlu0
        %v2154 = vpop.trf.xlu0
        %v2155 = vpop.trf.xlu0
        %v2156 = vpop.trf.xlu0
        %v2157 = vpop.trf.xlu0
        %v2158 = vpop.trf.xlu0
        %v2159 = vpop.trf.xlu0
        %v2160 = vpop.trf.xlu0
        %2161 = vxpose.xlu0.c.b16.start [1/8] %v1853, 128
        %2162 = vxpose.xlu0.c.b16.cont [2/8] 0, 128
        %2163 = vxpose.xlu0.c.b16.cont [3/8] 0, 128
        %2164 = vxpose.xlu0.c.b16.cont [4/8] 0, 128
        %2165 = vxpose.xlu0.c.b16.cont [5/8] 0, 128
        %2166 = vxpose.xlu0.c.b16.cont [6/8] 0, 128
        %2167 = vxpose.xlu0.c.b16.cont [7/8] 0, 128
        %2168 = vxpose.xlu0.c.b16.end [8/8] 0, 128
        %v2169 = vpop.trf.xlu0
        %v2170 = vpop.trf.xlu0
        %v2171 = vpop.trf.xlu0
        %v2172 = vpop.trf.xlu0
        %v2173 = vpop.trf.xlu0
        %v2174 = vpop.trf.xlu0
        %v2175 = vpop.trf.xlu0
        %v2176 = vpop.trf.xlu0
        %2177 = vxpose.xlu0.c.b16.start [1/8] %v1768, 128
        %2178 = vxpose.xlu0.c.b16.cont [2/8] 0, 128
        %2179 = vxpose.xlu0.c.b16.cont [3/8] 0, 128
        %2180 = vxpose.xlu0.c.b16.cont [4/8] 0, 128
        %2181 = vxpose.xlu0.c.b16.cont [5/8] 0, 128
        %2182 = vxpose.xlu0.c.b16.cont [6/8] 0, 128
        %2183 = vxpose.xlu0.c.b16.cont [7/8] 0, 128
        %2184 = vxpose.xlu0.c.b16.end [8/8] 0, 128
        %v2185 = vpop.trf.xlu0
        %v2186 = vpop.trf.xlu0
        %v2187 = vpop.trf.xlu0
        %v2188 = vpop.trf.xlu0
        %v2189 = vpop.trf.xlu0
        %v2190 = vpop.trf.xlu0
        %v2191 = vpop.trf.xlu0
        %v2192 = vpop.trf.xlu0
        %2193 = vxpose.xlu0.c.b16.start [1/8] %v1836, 128
        %2194 = vxpose.xlu0.c.b16.cont [2/8] 0, 128
        %2195 = vxpose.xlu0.c.b16.cont [3/8] 0, 128
        %2196 = vxpose.xlu0.c.b16.cont [4/8] 0, 128
        %2197 = vxpose.xlu0.c.b16.cont [5/8] 0, 128
        %2198 = vxpose.xlu0.c.b16.cont [6/8] 0, 128
        %2199 = vxpose.xlu0.c.b16.cont [7/8] 0, 128
        %2200 = vxpose.xlu0.c.b16.end [8/8] 0, 128
        %v2201 = vpop.trf.xlu0
        %v2202 = vpop.trf.xlu0
        %v2203 = vpop.trf.xlu0
        %v2204 = vpop.trf.xlu0
        %v2205 = vpop.trf.xlu0
        %v2206 = vpop.trf.xlu0
        %v2207 = vpop.trf.xlu0
        %v2208 = vpop.trf.xlu0
        %2209 = vxpose.xlu0.c.b16.start [1/8] %v1786, 128
        %2210 = vxpose.xlu0.c.b16.cont [2/8] 0, 128
        %2211 = vxpose.xlu0.c.b16.cont [3/8] 0, 128
        %2212 = vxpose.xlu0.c.b16.cont [4/8] 0, 128
        %2213 = vxpose.xlu0.c.b16.cont [5/8] 0, 128
        %2214 = vxpose.xlu0.c.b16.cont [6/8] 0, 128
        %2215 = vxpose.xlu0.c.b16.cont [7/8] 0, 128
        %2216 = vxpose.xlu0.c.b16.end [8/8] 0, 128
        %v2217 = vpop.trf.xlu0
        %v2218 = vpop.trf.xlu0
        %v2219 = vpop.trf.xlu0
        %v2220 = vpop.trf.xlu0
        %v2221 = vpop.trf.xlu0
        %v2222 = vpop.trf.xlu0
        %v2223 = vpop.trf.xlu0
        %v2224 = vpop.trf.xlu0
        %2225 = vxpose.xlu0.c.b16.start [1/8] %v1854, 128
        %2226 = vxpose.xlu0.c.b16.cont [2/8] 0, 128
        %2227 = vxpose.xlu0.c.b16.cont [3/8] 0, 128
        %2228 = vxpose.xlu0.c.b16.cont [4/8] 0, 128
        %2229 = vxpose.xlu0.c.b16.cont [5/8] 0, 128
        %2230 = vxpose.xlu0.c.b16.cont [6/8] 0, 128
        %2231 = vxpose.xlu0.c.b16.cont [7/8] 0, 128
        %2232 = vxpose.xlu0.c.b16.end [8/8] 0, 128
        %v2233 = vpop.trf.xlu0
        %v2234 = vpop.trf.xlu0
        %v2235 = vpop.trf.xlu0
        %v2236 = vpop.trf.xlu0
        %v2237 = vpop.trf.xlu0
        %v2238 = vpop.trf.xlu0
        %v2239 = vpop.trf.xlu0
        %v2240 = vpop.trf.xlu0
        %2241 = vxpose.xlu0.c.b16.start [1/8] %v1777, 128
        %2242 = vxpose.xlu0.c.b16.cont [2/8] 0, 128
        %2243 = vxpose.xlu0.c.b16.cont [3/8] 0, 128
        %2244 = vxpose.xlu0.c.b16.cont [4/8] 0, 128
        %2245 = vxpose.xlu0.c.b16.cont [5/8] 0, 128
        %2246 = vxpose.xlu0.c.b16.cont [6/8] 0, 128
        %2247 = vxpose.xlu0.c.b16.cont [7/8] 0, 128
        %2248 = vxpose.xlu0.c.b16.end [8/8] 0, 128
        %v2249 = vpop.trf.xlu0
        %v2250 = vpop.trf.xlu0
        %v2251 = vpop.trf.xlu0
        %v2252 = vpop.trf.xlu0
        %v2253 = vpop.trf.xlu0
        %v2254 = vpop.trf.xlu0
        %v2255 = vpop.trf.xlu0
        %v2256 = vpop.trf.xlu0
        %2257 = vxpose.xlu0.c.b16.start [1/8] %v1845, 128
        %2258 = vxpose.xlu0.c.b16.cont [2/8] 0, 128
        %2259 = vxpose.xlu0.c.b16.cont [3/8] 0, 128
        %2260 = vxpose.xlu0.c.b16.cont [4/8] 0, 128
        %2261 = vxpose.xlu0.c.b16.cont [5/8] 0, 128
        %2262 = vxpose.xlu0.c.b16.cont [6/8] 0, 128
        %2263 = vxpose.xlu0.c.b16.cont [7/8] 0, 128
        %2264 = vxpose.xlu0.c.b16.end [8/8] 0, 128
        %v2265 = vpop.trf.xlu0
        %v2266 = vpop.trf.xlu0
        %v2267 = vpop.trf.xlu0
        %v2268 = vpop.trf.xlu0
        %v2269 = vpop.trf.xlu0
        %v2270 = vpop.trf.xlu0
        %v2271 = vpop.trf.xlu0
        %v2272 = vpop.trf.xlu0
        %2273 = vxpose.xlu0.c.b16.start [1/8] %v1787, 128
        %2274 = vxpose.xlu0.c.b16.cont [2/8] 0, 128
        %2275 = vxpose.xlu0.c.b16.cont [3/8] 0, 128
        %2276 = vxpose.xlu0.c.b16.cont [4/8] 0, 128
        %2277 = vxpose.xlu0.c.b16.cont [5/8] 0, 128
        %2278 = vxpose.xlu0.c.b16.cont [6/8] 0, 128
        %2279 = vxpose.xlu0.c.b16.cont [7/8] 0, 128
        %2280 = vxpose.xlu0.c.b16.end [8/8] 0, 128
        %v2281 = vpop.trf.xlu0
        %v2282 = vpop.trf.xlu0
        %v2283 = vpop.trf.xlu0
        %v2284 = vpop.trf.xlu0
        %v2285 = vpop.trf.xlu0
        %v2286 = vpop.trf.xlu0
        %v2287 = vpop.trf.xlu0
        %v2288 = vpop.trf.xlu0
        %2289 = vxpose.xlu0.c.b16.start [1/8] %v1855, 128
        %2290 = vxpose.xlu0.c.b16.cont [2/8] 0, 128
        %2291 = vxpose.xlu0.c.b16.cont [3/8] 0, 128
        %2292 = vxpose.xlu0.c.b16.cont [4/8] 0, 128
        %2293 = vxpose.xlu0.c.b16.cont [5/8] 0, 128
        %2294 = vxpose.xlu0.c.b16.cont [6/8] 0, 128
        %2295 = vxpose.xlu0.c.b16.cont [7/8] 0, 128
        %2296 = vxpose.xlu0.c.b16.end [8/8] 0, 128
        %v2297 = vpop.trf.xlu0
        %v2298 = vpop.trf.xlu0
        %v2299 = vpop.trf.xlu0
        %v2300 = vpop.trf.xlu0
        %v2301 = vpop.trf.xlu0
        %v2302 = vpop.trf.xlu0
        %v2303 = vpop.trf.xlu0
        %v2304 = vpop.trf.xlu0
        %2305 = vxpose.xlu0.c.b16.start [1/8] %v1784, 128
        %2306 = vxpose.xlu0.c.b16.cont [2/8] 0, 128
        %2307 = vxpose.xlu0.c.b16.cont [3/8] 0, 128
        %2308 = vxpose.xlu0.c.b16.cont [4/8] 0, 128
        %2309 = vxpose.xlu0.c.b16.cont [5/8] 0, 128
        %2310 = vxpose.xlu0.c.b16.cont [6/8] 0, 128
        %2311 = vxpose.xlu0.c.b16.cont [7/8] 0, 128
        %2312 = vxpose.xlu0.c.b16.end [8/8] 0, 128
        %v2313 = vpop.trf.xlu0
        %v2314 = vpop.trf.xlu0
        %v2315 = vpop.trf.xlu0
        %v2316 = vpop.trf.xlu0
        %v2317 = vpop.trf.xlu0
        %v2318 = vpop.trf.xlu0
        %v2319 = vpop.trf.xlu0
        %v2320 = vpop.trf.xlu0
        %2321 = vxpose.xlu0.c.b16.start [1/8] %v1852, 128
        %2322 = vxpose.xlu0.c.b16.cont [2/8] 0, 128
        %2323 = vxpose.xlu0.c.b16.cont [3/8] 0, 128
        %2324 = vxpose.xlu0.c.b16.cont [4/8] 0, 128
        %2325 = vxpose.xlu0.c.b16.cont [5/8] 0, 128
        %2326 = vxpose.xlu0.c.b16.cont [6/8] 0, 128
        %2327 = vxpose.xlu0.c.b16.cont [7/8] 0, 128
        %2328 = vxpose.xlu0.c.b16.end [8/8] 0, 128
        %v2329 = vpop.trf.xlu0
        %v2330 = vpop.trf.xlu0
        %v2331 = vpop.trf.xlu0
        %v2332 = vpop.trf.xlu0
        %v2333 = vpop.trf.xlu0
        %v2334 = vpop.trf.xlu0
        %v2335 = vpop.trf.xlu0
        %v2336 = vpop.trf.xlu0
        %2337 = vxpose.xlu0.c.b16.start [1/8] %v1788, 128
        %2338 = vxpose.xlu0.c.b16.cont [2/8] 0, 128
        %2339 = vxpose.xlu0.c.b16.cont [3/8] 0, 128
        %2340 = vxpose.xlu0.c.b16.cont [4/8] 0, 128
        %2341 = vxpose.xlu0.c.b16.cont [5/8] 0, 128
        %2342 = vxpose.xlu0.c.b16.cont [6/8] 0, 128
        %2343 = vxpose.xlu0.c.b16.cont [7/8] 0, 128
        %2344 = vxpose.xlu0.c.b16.end [8/8] 0, 128
        %v2345 = vpop.trf.xlu0
        %v2346 = vpop.trf.xlu0
        %v2347 = vpop.trf.xlu0
        %v2348 = vpop.trf.xlu0
        %v2349 = vpop.trf.xlu0
        %v2350 = vpop.trf.xlu0
        %v2351 = vpop.trf.xlu0
        %v2352 = vpop.trf.xlu0
        %2353 = vxpose.xlu0.c.b16.start [1/8] %v1856, 128
        %2354 = vxpose.xlu0.c.b16.cont [2/8] 0, 128
        %2355 = vxpose.xlu0.c.b16.cont [3/8] 0, 128
        %2356 = vxpose.xlu0.c.b16.cont [4/8] 0, 128
        %2357 = vxpose.xlu0.c.b16.cont [5/8] 0, 128
        %2358 = vxpose.xlu0.c.b16.cont [6/8] 0, 128
        %2359 = vxpose.xlu0.c.b16.cont [7/8] 0, 128
        %2360 = vxpose.xlu0.c.b16.end [8/8] 0, 128
        %v2361 = vpop.trf.xlu0
        %v2362 = vpop.trf.xlu0
        %v2363 = vpop.trf.xlu0
        %v2364 = vpop.trf.xlu0
        %v2365 = vpop.trf.xlu0
        %v2366 = vpop.trf.xlu0
        %v2367 = vpop.trf.xlu0
        %v2368 = vpop.trf.xlu0
        %v2369 = vcombine.low %v1865, %v1929
        %v2371 = vunpack.c.l.s4 1983009808
        %v2372 = vunpack.c.0.s8 %v2371
        %v2373 = vlaneseq
        %v2374 = vshrl.u32 %v2373, 7
        %v2375 = vsub.s32 %v2372, %v2374
        %v2376 = vrot.slane %v2369, %v2375
        %v2377 = vcombine.low %v1897, %v1961
        %v2379 = vunpack.c.l.s4 1983009808
        %v2380 = vunpack.c.0.s8 %v2379
        %v2381 = vlaneseq
        %v2382 = vshrl.u32 %v2381, 7
        %v2383 = vsub.s32 %v2380, %v2382
        %v2384 = vrot.slane %v2377, %v2383
        %v2385 = vcombine.low %v1993, %v2057
        %v2387 = vunpack.c.l.s4 1983009808
        %v2388 = vunpack.c.0.s8 %v2387
        %v2389 = vlaneseq
        %v2390 = vshrl.u32 %v2389, 7
        %v2391 = vsub.s32 %v2388, %v2390
        %v2392 = vrot.slane %v2385, %v2391
        %v2393 = vcombine.low %v2025, %v2089
        %v2395 = vunpack.c.l.s4 1983009808
        %v2396 = vunpack.c.0.s8 %v2395
        %v2397 = vlaneseq
        %v2398 = vshrl.u32 %v2397, 7
        %v2399 = vsub.s32 %v2396, %v2398
        %v2400 = vrot.slane %v2393, %v2399
        %v2401 = vcombine.low %v2376, %v2384
        %v2403 = vunpack.c.l.s4 1934713408
        %v2404 = vunpack.c.0.s8 %v2403
        %v2405 = vlaneseq
        %v2406 = vshrl.u32 %v2405, 7
        %v2407 = vsub.s32 %v2404, %v2406
        %v2408 = vrot.slane %v2401, %v2407
        %v2409 = vcombine.low %v2392, %v2400
        %v2411 = vunpack.c.l.s4 1934713408
        %v2412 = vunpack.c.0.s8 %v2411
        %v2413 = vlaneseq
        %v2414 = vshrl.u32 %v2413, 7
        %v2415 = vsub.s32 %v2412, %v2414
        %v2416 = vrot.slane %v2409, %v2415
        %v2417 = vcombine.low %v2408, %v2416
        %v2418 = vcombine.high %v2408, %v2416
        %v2419 = vcombine.low %v1881, %v1945
        %v2421 = vunpack.c.l.s4 1983009808
        %v2422 = vunpack.c.0.s8 %v2421
        %v2423 = vlaneseq
        %v2424 = vshrl.u32 %v2423, 7
        %v2425 = vsub.s32 %v2422, %v2424
        %v2426 = vrot.slane %v2419, %v2425
        %v2427 = vcombine.low %v1913, %v1977
        %v2429 = vunpack.c.l.s4 1983009808
        %v2430 = vunpack.c.0.s8 %v2429
        %v2431 = vlaneseq
        %v2432 = vshrl.u32 %v2431, 7
        %v2433 = vsub.s32 %v2430, %v2432
        %v2434 = vrot.slane %v2427, %v2433
        %v2435 = vcombine.low %v2009, %v2073
        %v2437 = vunpack.c.l.s4 1983009808
        %v2438 = vunpack.c.0.s8 %v2437
        %v2439 = vlaneseq
        %v2440 = vshrl.u32 %v2439, 7
        %v2441 = vsub.s32 %v2438, %v2440
        %v2442 = vrot.slane %v2435, %v2441
        %v2443 = vcombine.low %v2041, %v2105
        %v2445 = vunpack.c.l.s4 1983009808
        %v2446 = vunpack.c.0.s8 %v2445
        %v2447 = vlaneseq
        %v2448 = vshrl.u32 %v2447, 7
        %v2449 = vsub.s32 %v2446, %v2448
        %v2450 = vrot.slane %v2443, %v2449
        %v2451 = vcombine.low %v2426, %v2434
        %v2453 = vunpack.c.l.s4 1934713408
        %v2454 = vunpack.c.0.s8 %v2453
        %v2455 = vlaneseq
        %v2456 = vshrl.u32 %v2455, 7
        %v2457 = vsub.s32 %v2454, %v2456
        %v2458 = vrot.slane %v2451, %v2457
        %v2459 = vcombine.low %v2442, %v2450
        %v2461 = vunpack.c.l.s4 1934713408
        %v2462 = vunpack.c.0.s8 %v2461
        %v2463 = vlaneseq
        %v2464 = vshrl.u32 %v2463, 7
        %v2465 = vsub.s32 %v2462, %v2464
        %v2466 = vrot.slane %v2459, %v2465
        %v2467 = vcombine.low %v2458, %v2466
        %v2468 = vcombine.high %v2458, %v2466
        %v2469 = vcombine.low %v2121, %v2185
        %v2471 = vunpack.c.l.s4 1983009808
        %v2472 = vunpack.c.0.s8 %v2471
        %v2473 = vlaneseq
        %v2474 = vshrl.u32 %v2473, 7
        %v2475 = vsub.s32 %v2472, %v2474
        %v2476 = vrot.slane %v2469, %v2475
        %v2477 = vcombine.low %v2153, %v2217
        %v2479 = vunpack.c.l.s4 1983009808
        %v2480 = vunpack.c.0.s8 %v2479
        %v2481 = vlaneseq
        %v2482 = vshrl.u32 %v2481, 7
        %v2483 = vsub.s32 %v2480, %v2482
        %v2484 = vrot.slane %v2477, %v2483
        %v2485 = vcombine.low %v2249, %v2313
        %v2487 = vunpack.c.l.s4 1983009808
        %v2488 = vunpack.c.0.s8 %v2487
        %v2489 = vlaneseq
        %v2490 = vshrl.u32 %v2489, 7
        %v2491 = vsub.s32 %v2488, %v2490
        %v2492 = vrot.slane %v2485, %v2491
        %v2493 = vcombine.low %v2281, %v2345
        %v2495 = vunpack.c.l.s4 1983009808
        %v2496 = vunpack.c.0.s8 %v2495
        %v2497 = vlaneseq
        %v2498 = vshrl.u32 %v2497, 7
        %v2499 = vsub.s32 %v2496, %v2498
        %v2500 = vrot.slane %v2493, %v2499
        %v2501 = vcombine.low %v2476, %v2484
        %v2503 = vunpack.c.l.s4 1934713408
        %v2504 = vunpack.c.0.s8 %v2503
        %v2505 = vlaneseq
        %v2506 = vshrl.u32 %v2505, 7
        %v2507 = vsub.s32 %v2504, %v2506
        %v2508 = vrot.slane %v2501, %v2507
        %v2509 = vcombine.low %v2492, %v2500
        %v2511 = vunpack.c.l.s4 1934713408
        %v2512 = vunpack.c.0.s8 %v2511
        %v2513 = vlaneseq
        %v2514 = vshrl.u32 %v2513, 7
        %v2515 = vsub.s32 %v2512, %v2514
        %v2516 = vrot.slane %v2509, %v2515
        %v2517 = vcombine.low %v2508, %v2516
        %v2518 = vcombine.high %v2508, %v2516
        %v2519 = vcombine.low %v2137, %v2201
        %v2521 = vunpack.c.l.s4 1983009808
        %v2522 = vunpack.c.0.s8 %v2521
        %v2523 = vlaneseq
        %v2524 = vshrl.u32 %v2523, 7
        %v2525 = vsub.s32 %v2522, %v2524
        %v2526 = vrot.slane %v2519, %v2525
        %v2527 = vcombine.low %v2169, %v2233
        %v2529 = vunpack.c.l.s4 1983009808
        %v2530 = vunpack.c.0.s8 %v2529
        %v2531 = vlaneseq
        %v2532 = vshrl.u32 %v2531, 7
        %v2533 = vsub.s32 %v2530, %v2532
        %v2534 = vrot.slane %v2527, %v2533
        %v2535 = vcombine.low %v2265, %v2329
        %v2537 = vunpack.c.l.s4 1983009808
        %v2538 = vunpack.c.0.s8 %v2537
        %v2539 = vlaneseq
        %v2540 = vshrl.u32 %v2539, 7
        %v2541 = vsub.s32 %v2538, %v2540
        %v2542 = vrot.slane %v2535, %v2541
        %v2543 = vcombine.low %v2297, %v2361
        %v2545 = vunpack.c.l.s4 1983009808
        %v2546 = vunpack.c.0.s8 %v2545
        %v2547 = vlaneseq
        %v2548 = vshrl.u32 %v2547, 7
        %v2549 = vsub.s32 %v2546, %v2548
        %v2550 = vrot.slane %v2543, %v2549
        %v2551 = vcombine.low %v2526, %v2534
        %v2553 = vunpack.c.l.s4 1934713408
        %v2554 = vunpack.c.0.s8 %v2553
        %v2555 = vlaneseq
        %v2556 = vshrl.u32 %v2555, 7
        %v2557 = vsub.s32 %v2554, %v2556
        %v2558 = vrot.slane %v2551, %v2557
        %v2559 = vcombine.low %v2542, %v2550
        %v2561 = vunpack.c.l.s4 1934713408
        %v2562 = vunpack.c.0.s8 %v2561
        %v2563 = vlaneseq
        %v2564 = vshrl.u32 %v2563, 7
        %v2565 = vsub.s32 %v2562, %v2564
        %v2566 = vrot.slane %v2559, %v2565
        %v2567 = vcombine.low %v2558, %v2566
        %v2568 = vcombine.high %v2558, %v2566
        %v2571 = vpack.i.b16 %v2467, %v2417
        %v2573 = vshrl.u32 %v2417, 16
        %v2574 = vshrl.u32 %v2467, 16
        %v2575 = vpack.i.b16 %v2574, %v2573
        %v2579 = vpack.i.b16 %v2468, %v2418
        %v2581 = vshrl.u32 %v2418, 16
        %v2582 = vshrl.u32 %v2468, 16
        %v2583 = vpack.i.b16 %v2582, %v2581
        %v2587 = vpack.i.b16 %v2567, %v2517
        %v2589 = vshrl.u32 %v2517, 16
        %v2590 = vshrl.u32 %v2567, 16
        %v2591 = vpack.i.b16 %v2590, %v2589
        %v2595 = vpack.i.b16 %v2568, %v2518
        %v2597 = vshrl.u32 %v2518, 16
        %v2598 = vshrl.u32 %v2568, 16
        %v2599 = vpack.i.b16 %v2598, %v2597
        %vm2601 = vcmask 261120
        %v2603 = vsel %vm2601, %v1383, 0
        %2605 = vmatprep.subr.bf16.mxu0 0
        %2606 = vmatpush1.bf16.msra.mxu0 %v2571
        %2607 = vmatprep.subr.bf16.mxu0 0
        %2608 = vmatpush1.bf16.msra.mxu0 %v2587
        %2609 = vmatprep.subr.bf16.mxu0 0
        %2610 = vmatpush1.bf16.msra.mxu0 0
        %2611 = vmatprep.subr.bf16.mxu0 0
        %2612 = vmatpush1.bf16.msra.mxu0 0
        %2613 = vmatprep.subr.bf16.mxu0 0
        %2614 = vmatpush1.bf16.msra.mxu0 0
        %2615 = vmatprep.subr.bf16.mxu0 0
        %2616 = vmatpush1.bf16.msra.mxu0 0
        %2617 = vmatprep.subr.bf16.mxu0 0
        %2618 = vmatpush1.bf16.msra.mxu0 0
        %2619 = vmatprep.subr.bf16.mxu0 0
        %2620 = vmatpush1.bf16.msra.mxu0 0
        %2621 = vmatprep.subr.bf16.mxu0 0
        %2622 = vmatpush1.bf16.msra.mxu0 0
        %2623 = vmatprep.subr.bf16.mxu0 0
        %2624 = vmatpush1.bf16.msra.mxu0 0
        %2625 = vmatprep.subr.bf16.mxu0 0
        %2626 = vmatpush1.bf16.msra.mxu0 0
        %2627 = vmatprep.subr.bf16.mxu0 0
        %2628 = vmatpush1.bf16.msra.mxu0 0
        %2629 = vmatprep.subr.bf16.mxu0 0
        %2630 = vmatpush1.bf16.msra.mxu0 0
        %2631 = vmatprep.subr.bf16.mxu0 0
        %2632 = vmatpush1.bf16.msra.mxu0 0
        %2633 = vmatprep.subr.bf16.mxu0 0
        %2634 = vmatpush1.bf16.msra.mxu0 0
        %2635 = vmatprep.subr.bf16.mxu0 0
        %2636 = vmatpush1.bf16.msra.mxu0 0
        %2637 = vmatprep.mubr.bf16.mxu0 0
        %2638 = vmatmul.mubr.bf16.gmra.mrb[0].mxu0 %v2603
        %v2639 = vpop.f32.mrb[0].mxu0
        %v2640 = vadd.f32 0.0, %v2639
        %v2641 = vpop.f32.mrb[0].mxu0
        %v2642 = vpop.f32.mrb[0].mxu0
        %v2643 = vpop.f32.mrb[0].mxu0
        %2644 = vdwg.mxu0
        %v2646 = vsel %vm2601, %v1386, 0
        %2648 = vmatprep.subr.bf16.mxu0 0
        %2649 = vmatpush1.bf16.msra.mxu0 %v2575
        %2650 = vmatprep.subr.bf16.mxu0 0
        %2651 = vmatpush1.bf16.msra.mxu0 %v2591
        %2652 = vmatprep.subr.bf16.mxu0 0
        %2653 = vmatpush1.bf16.msra.mxu0 0
        %2654 = vmatprep.subr.bf16.mxu0 0
        %2655 = vmatpush1.bf16.msra.mxu0 0
        %2656 = vmatprep.subr.bf16.mxu0 0
        %2657 = vmatpush1.bf16.msra.mxu0 0
        %2658 = vmatprep.subr.bf16.mxu0 0
        %2659 = vmatpush1.bf16.msra.mxu0 0
        %2660 = vmatprep.subr.bf16.mxu0 0
        %2661 = vmatpush1.bf16.msra.mxu0 0
        %2662 = vmatprep.subr.bf16.mxu0 0
        %2663 = vmatpush1.bf16.msra.mxu0 0
        %2664 = vmatprep.subr.bf16.mxu0 0
        %2665 = vmatpush1.bf16.msra.mxu0 0
        %2666 = vmatprep.subr.bf16.mxu0 0
        %2667 = vmatpush1.bf16.msra.mxu0 0
        %2668 = vmatprep.subr.bf16.mxu0 0
        %2669 = vmatpush1.bf16.msra.mxu0 0
        %2670 = vmatprep.subr.bf16.mxu0 0
        %2671 = vmatpush1.bf16.msra.mxu0 0
        %2672 = vmatprep.subr.bf16.mxu0 0
        %2673 = vmatpush1.bf16.msra.mxu0 0
        %2674 = vmatprep.subr.bf16.mxu0 0
        %2675 = vmatpush1.bf16.msra.mxu0 0
        %2676 = vmatprep.subr.bf16.mxu0 0
        %2677 = vmatpush1.bf16.msra.mxu0 0
        %2678 = vmatprep.subr.bf16.mxu0 0
        %2679 = vmatpush1.bf16.msra.mxu0 0
        %2680 = vmatprep.mubr.bf16.mxu0 0
        %2681 = vmatmul.mubr.bf16.gmra.mrb[0].mxu0 %v2646
        %v2682 = vpop.f32.mrb[0].mxu0
        %v2683 = vadd.f32 0.0, %v2682
        %v2684 = vpop.f32.mrb[0].mxu0
        %v2685 = vpop.f32.mrb[0].mxu0
        %v2686 = vpop.f32.mrb[0].mxu0
        %2687 = vdwg.mxu0
        %v2689 = vsel %vm2601, %v1389, 0
        %2691 = vmatprep.subr.bf16.mxu0 0
        %2692 = vmatpush1.bf16.msra.mxu0 %v2579
        %2693 = vmatprep.subr.bf16.mxu0 0
        %2694 = vmatpush1.bf16.msra.mxu0 %v2595
        %2695 = vmatprep.subr.bf16.mxu0 0
        %2696 = vmatpush1.bf16.msra.mxu0 0
        %2697 = vmatprep.subr.bf16.mxu0 0
        %2698 = vmatpush1.bf16.msra.mxu0 0
        %2699 = vmatprep.subr.bf16.mxu0 0
        %2700 = vmatpush1.bf16.msra.mxu0 0
        %2701 = vmatprep.subr.bf16.mxu0 0
        %2702 = vmatpush1.bf16.msra.mxu0 0
        %2703 = vmatprep.subr.bf16.mxu0 0
        %2704 = vmatpush1.bf16.msra.mxu0 0
        %2705 = vmatprep.subr.bf16.mxu0 0
        %2706 = vmatpush1.bf16.msra.mxu0 0
        %2707 = vmatprep.subr.bf16.mxu0 0
        %2708 = vmatpush1.bf16.msra.mxu0 0
        %2709 = vmatprep.subr.bf16.mxu0 0
        %2710 = vmatpush1.bf16.msra.mxu0 0
        %2711 = vmatprep.subr.bf16.mxu0 0
        %2712 = vmatpush1.bf16.msra.mxu0 0
        %2713 = vmatprep.subr.bf16.mxu0 0
        %2714 = vmatpush1.bf16.msra.mxu0 0
        %2715 = vmatprep.subr.bf16.mxu0 0
        %2716 = vmatpush1.bf16.msra.mxu0 0
        %2717 = vmatprep.subr.bf16.mxu0 0
        %2718 = vmatpush1.bf16.msra.mxu0 0
        %2719 = vmatprep.subr.bf16.mxu0 0
        %2720 = vmatpush1.bf16.msra.mxu0 0
        %2721 = vmatprep.subr.bf16.mxu0 0
        %2722 = vmatpush1.bf16.msra.mxu0 0
        %2723 = vmatprep.mubr.bf16.mxu0 0
        %2724 = vmatmul.mubr.bf16.gmra.mrb[0].mxu0 %v2689
        %v2725 = vpop.f32.mrb[0].mxu0
        %v2726 = vadd.f32 0.0, %v2725
        %v2727 = vpop.f32.mrb[0].mxu0
        %v2728 = vpop.f32.mrb[0].mxu0
        %v2729 = vpop.f32.mrb[0].mxu0
        %2730 = vdwg.mxu0
        %v2732 = vsel %vm2601, %v1392, 0
        %2734 = vmatprep.subr.bf16.mxu0 0
        %2735 = vmatpush1.bf16.msra.mxu0 %v2583
        %2736 = vmatprep.subr.bf16.mxu0 0
        %2737 = vmatpush1.bf16.msra.mxu0 %v2599
        %2738 = vmatprep.subr.bf16.mxu0 0
        %2739 = vmatpush1.bf16.msra.mxu0 0
        %2740 = vmatprep.subr.bf16.mxu0 0
        %2741 = vmatpush1.bf16.msra.mxu0 0
        %2742 = vmatprep.subr.bf16.mxu0 0
        %2743 = vmatpush1.bf16.msra.mxu0 0
        %2744 = vmatprep.subr.bf16.mxu0 0
        %2745 = vmatpush1.bf16.msra.mxu0 0
        %2746 = vmatprep.subr.bf16.mxu0 0
        %2747 = vmatpush1.bf16.msra.mxu0 0
        %2748 = vmatprep.subr.bf16.mxu0 0
        %2749 = vmatpush1.bf16.msra.mxu0 0
        %2750 = vmatprep.subr.bf16.mxu0 0
        %2751 = vmatpush1.bf16.msra.mxu0 0
        %2752 = vmatprep.subr.bf16.mxu0 0
        %2753 = vmatpush1.bf16.msra.mxu0 0
        %2754 = vmatprep.subr.bf16.mxu0 0
        %2755 = vmatpush1.bf16.msra.mxu0 0
        %2756 = vmatprep.subr.bf16.mxu0 0
        %2757 = vmatpush1.bf16.msra.mxu0 0
        %2758 = vmatprep.subr.bf16.mxu0 0
        %2759 = vmatpush1.bf16.msra.mxu0 0
        %2760 = vmatprep.subr.bf16.mxu0 0
        %2761 = vmatpush1.bf16.msra.mxu0 0
        %2762 = vmatprep.subr.bf16.mxu0 0
        %2763 = vmatpush1.bf16.msra.mxu0 0
        %2764 = vmatprep.subr.bf16.mxu0 0
        %2765 = vmatpush1.bf16.msra.mxu0 0
        %2766 = vmatprep.mubr.bf16.mxu0 0
        %2767 = vmatmul.mubr.bf16.gmra.mrb[0].mxu0 %v2732
        %v2768 = vpop.f32.mrb[0].mxu0
        %v2769 = vadd.f32 0.0, %v2768
        %v2770 = vpop.f32.mrb[0].mxu0
        %v2771 = vpop.f32.mrb[0].mxu0
        %v2772 = vpop.f32.mrb[0].mxu0
        %2773 = vdwg.mxu0
        %vm2774 = vcmask 64512
        %v2775 = vsel %vm2774, %v2640, -inf
        %2776 = vmax.xlane.f32.xlu0 %v2775
        %v2777 = vpop.xlane.xlu0 %2776
        %v2778 = vsel %vm2774, %v2683, -inf
        %2779 = vmax.xlane.f32.xlu0 %v2778
        %v2780 = vpop.xlane.xlu0 %2779
        %v2781 = vsel %vm2774, %v2726, -inf
        %2782 = vmax.xlane.f32.xlu0 %v2781
        %v2783 = vpop.xlane.xlu0 %2782
        %v2784 = vsel %vm2774, %v2769, -inf
        %2785 = vmax.xlane.f32.xlu0 %v2784
        %v2786 = vpop.xlane.xlu0 %2785
        %v2787 = vsub.f32 %v2640, %v2777
        %v2788 = vsub.f32 %v2683, %v2780
        %v2789 = vsub.f32 %v2726, %v2783
        %v2790 = vsub.f32 %v2769, %v2786
        %v2791 = vmul.f32 %v2787, 1.442695
        %v2792 = vpow.pop %v2791
        %v2793 = vmul.f32 %v2788, 1.442695
        %v2794 = vpow.pop %v2793
        %v2795 = vmul.f32 %v2789, 1.442695
        %v2796 = vpow.pop %v2795
        %v2797 = vmul.f32 %v2790, 1.442695
        %v2798 = vpow.pop %v2797
        %v2799 = vsel %vm2774, %v2792, 0.0
        %2800 = vadd.xlane.f32.xlu0 %v2799
        %v2801 = vpop.xlane.xlu0 %2800
        %v2802 = vsel %vm2774, %v2794, 0.0
        %2803 = vadd.xlane.f32.xlu0 %v2802
        %v2804 = vpop.xlane.xlu0 %2803
        %v2805 = vsel %vm2774, %v2796, 0.0
        %2806 = vadd.xlane.f32.xlu0 %v2805
        %v2807 = vpop.xlane.xlu0 %2806
        %v2808 = vsel %vm2774, %v2798, 0.0
        %2809 = vadd.xlane.f32.xlu0 %v2808
        %v2810 = vpop.xlane.xlu0 %2809
        %v2811 = vrcp.pop %v2801
        %v2812 = vmul.f32 %v2792, %v2811
        %v2813 = vrcp.pop %v2804
        %v2814 = vmul.f32 %v2794, %v2813
        %v2815 = vrcp.pop %v2807
        %v2816 = vmul.f32 %v2796, %v2815
        %v2817 = vrcp.pop %v2810
        %v2818 = vmul.f32 %v2798, %v2817
        %v2819 = vpack.c.bf16 %v2812, %v2812
        %v2820 = vpack.c.bf16 %v2814, %v2814
        %v2821 = vpack.c.bf16 %v2816, %v2816
        %v2822 = vpack.c.bf16 %v2818, %v2818
        %v2823 = vpack.c.bf16 %v1287, %v1287
        %v2824 = vpack.c.bf16 %v1311, %v1311
        %v2825 = vpack.c.bf16 %v1294, %v1294
        %v2826 = vpack.c.bf16 %v1312, %v1312
        %v2827 = vpack.c.bf16 %v1303, %v1303
        %v2828 = vpack.c.bf16 %v1313, %v1313
        %v2829 = vpack.c.bf16 %v1310, %v1310
        %v2830 = vpack.c.bf16 %v1314, %v1314
        %2831 = vxpose.xlu0.c.b16.start [1/8] %v2823, 128
        %2832 = vxpose.xlu0.c.b16.cont [2/8] 0, 128
        %2833 = vxpose.xlu0.c.b16.cont [3/8] 0, 128
        %2834 = vxpose.xlu0.c.b16.cont [4/8] 0, 128
        %2835 = vxpose.xlu0.c.b16.cont [5/8] 0, 128
        %2836 = vxpose.xlu0.c.b16.cont [6/8] 0, 128
        %2837 = vxpose.xlu0.c.b16.cont [7/8] 0, 128
        %2838 = vxpose.xlu0.c.b16.end [8/8] 0, 128
        %v2839 = vpop.trf.xlu0
        %v2840 = vpop.trf.xlu0
        %v2841 = vpop.trf.xlu0
        %v2842 = vpop.trf.xlu0
        %v2843 = vpop.trf.xlu0
        %v2844 = vpop.trf.xlu0
        %v2845 = vpop.trf.xlu0
        %v2846 = vpop.trf.xlu0
        %2847 = vxpose.xlu0.c.b16.start [1/8] %v2824, 128
        %2848 = vxpose.xlu0.c.b16.cont [2/8] 0, 128
        %2849 = vxpose.xlu0.c.b16.cont [3/8] 0, 128
        %2850 = vxpose.xlu0.c.b16.cont [4/8] 0, 128
        %2851 = vxpose.xlu0.c.b16.cont [5/8] 0, 128
        %2852 = vxpose.xlu0.c.b16.cont [6/8] 0, 128
        %2853 = vxpose.xlu0.c.b16.cont [7/8] 0, 128
        %2854 = vxpose.xlu0.c.b16.end [8/8] 0, 128
        %v2855 = vpop.trf.xlu0
        %v2856 = vpop.trf.xlu0
        %v2857 = vpop.trf.xlu0
        %v2858 = vpop.trf.xlu0
        %v2859 = vpop.trf.xlu0
        %v2860 = vpop.trf.xlu0
        %v2861 = vpop.trf.xlu0
        %v2862 = vpop.trf.xlu0
        %2863 = vxpose.xlu0.c.b16.start [1/8] %v2825, 128
        %2864 = vxpose.xlu0.c.b16.cont [2/8] 0, 128
        %2865 = vxpose.xlu0.c.b16.cont [3/8] 0, 128
        %2866 = vxpose.xlu0.c.b16.cont [4/8] 0, 128
        %2867 = vxpose.xlu0.c.b16.cont [5/8] 0, 128
        %2868 = vxpose.xlu0.c.b16.cont [6/8] 0, 128
        %2869 = vxpose.xlu0.c.b16.cont [7/8] 0, 128
        %2870 = vxpose.xlu0.c.b16.end [8/8] 0, 128
        %v2871 = vpop.trf.xlu0
        %v2872 = vpop.trf.xlu0
        %v2873 = vpop.trf.xlu0
        %v2874 = vpop.trf.xlu0
        %v2875 = vpop.trf.xlu0
        %v2876 = vpop.trf.xlu0
        %v2877 = vpop.trf.xlu0
        %v2878 = vpop.trf.xlu0
        %2879 = vxpose.xlu0.c.b16.start [1/8] %v2826, 128
        %2880 = vxpose.xlu0.c.b16.cont [2/8] 0, 128
        %2881 = vxpose.xlu0.c.b16.cont [3/8] 0, 128
        %2882 = vxpose.xlu0.c.b16.cont [4/8] 0, 128
        %2883 = vxpose.xlu0.c.b16.cont [5/8] 0, 128
        %2884 = vxpose.xlu0.c.b16.cont [6/8] 0, 128
        %2885 = vxpose.xlu0.c.b16.cont [7/8] 0, 128
        %2886 = vxpose.xlu0.c.b16.end [8/8] 0, 128
        %v2887 = vpop.trf.xlu0
        %v2888 = vpop.trf.xlu0
        %v2889 = vpop.trf.xlu0
        %v2890 = vpop.trf.xlu0
        %v2891 = vpop.trf.xlu0
        %v2892 = vpop.trf.xlu0
        %v2893 = vpop.trf.xlu0
        %v2894 = vpop.trf.xlu0
        %2895 = vxpose.xlu0.c.b16.start [1/8] %v2827, 128
        %2896 = vxpose.xlu0.c.b16.cont [2/8] 0, 128
        %2897 = vxpose.xlu0.c.b16.cont [3/8] 0, 128
        %2898 = vxpose.xlu0.c.b16.cont [4/8] 0, 128
        %2899 = vxpose.xlu0.c.b16.cont [5/8] 0, 128
        %2900 = vxpose.xlu0.c.b16.cont [6/8] 0, 128
        %2901 = vxpose.xlu0.c.b16.cont [7/8] 0, 128
        %2902 = vxpose.xlu0.c.b16.end [8/8] 0, 128
        %v2903 = vpop.trf.xlu0
        %v2904 = vpop.trf.xlu0
        %v2905 = vpop.trf.xlu0
        %v2906 = vpop.trf.xlu0
        %v2907 = vpop.trf.xlu0
        %v2908 = vpop.trf.xlu0
        %v2909 = vpop.trf.xlu0
        %v2910 = vpop.trf.xlu0
        %2911 = vxpose.xlu0.c.b16.start [1/8] %v2828, 128
        %2912 = vxpose.xlu0.c.b16.cont [2/8] 0, 128
        %2913 = vxpose.xlu0.c.b16.cont [3/8] 0, 128
        %2914 = vxpose.xlu0.c.b16.cont [4/8] 0, 128
        %2915 = vxpose.xlu0.c.b16.cont [5/8] 0, 128
        %2916 = vxpose.xlu0.c.b16.cont [6/8] 0, 128
        %2917 = vxpose.xlu0.c.b16.cont [7/8] 0, 128
        %2918 = vxpose.xlu0.c.b16.end [8/8] 0, 128
        %v2919 = vpop.trf.xlu0
        %v2920 = vpop.trf.xlu0
        %v2921 = vpop.trf.xlu0
        %v2922 = vpop.trf.xlu0
        %v2923 = vpop.trf.xlu0
        %v2924 = vpop.trf.xlu0
        %v2925 = vpop.trf.xlu0
        %v2926 = vpop.trf.xlu0
        %2927 = vxpose.xlu0.c.b16.start [1/8] %v2829, 128
        %2928 = vxpose.xlu0.c.b16.cont [2/8] 0, 128
        %2929 = vxpose.xlu0.c.b16.cont [3/8] 0, 128
        %2930 = vxpose.xlu0.c.b16.cont [4/8] 0, 128
        %2931 = vxpose.xlu0.c.b16.cont [5/8] 0, 128
        %2932 = vxpose.xlu0.c.b16.cont [6/8] 0, 128
        %2933 = vxpose.xlu0.c.b16.cont [7/8] 0, 128
        %2934 = vxpose.xlu0.c.b16.end [8/8] 0, 128
        %v2935 = vpop.trf.xlu0
        %v2936 = vpop.trf.xlu0
        %v2937 = vpop.trf.xlu0
        %v2938 = vpop.trf.xlu0
        %v2939 = vpop.trf.xlu0
        %v2940 = vpop.trf.xlu0
        %v2941 = vpop.trf.xlu0
        %v2942 = vpop.trf.xlu0
        %2943 = vxpose.xlu0.c.b16.start [1/8] %v2830, 128
        %2944 = vxpose.xlu0.c.b16.cont [2/8] 0, 128
        %2945 = vxpose.xlu0.c.b16.cont [3/8] 0, 128
        %2946 = vxpose.xlu0.c.b16.cont [4/8] 0, 128
        %2947 = vxpose.xlu0.c.b16.cont [5/8] 0, 128
        %2948 = vxpose.xlu0.c.b16.cont [6/8] 0, 128
        %2949 = vxpose.xlu0.c.b16.cont [7/8] 0, 128
        %2950 = vxpose.xlu0.c.b16.end [8/8] 0, 128
        %v2951 = vpop.trf.xlu0
        %v2952 = vpop.trf.xlu0
        %v2953 = vpop.trf.xlu0
        %v2954 = vpop.trf.xlu0
        %v2955 = vpop.trf.xlu0
        %v2956 = vpop.trf.xlu0
        %v2957 = vpop.trf.xlu0
        %v2958 = vpop.trf.xlu0
        %v2961 = vpack.i.b16 %v2855, %v2839
        %v2963 = vshrl.u32 %v2839, 16
        %v2964 = vshrl.u32 %v2855, 16
        %v2965 = vpack.i.b16 %v2964, %v2963
        %v2969 = vpack.i.b16 %v2887, %v2871
        %v2971 = vshrl.u32 %v2871, 16
        %v2972 = vshrl.u32 %v2887, 16
        %v2973 = vpack.i.b16 %v2972, %v2971
        %v2977 = vpack.i.b16 %v2919, %v2903
        %v2979 = vshrl.u32 %v2903, 16
        %v2980 = vshrl.u32 %v2919, 16
        %v2981 = vpack.i.b16 %v2980, %v2979
        %v2985 = vpack.i.b16 %v2951, %v2935
        %v2987 = vshrl.u32 %v2935, 16
        %v2988 = vshrl.u32 %v2951, 16
        %v2989 = vpack.i.b16 %v2988, %v2987
        %v2993 = vpack.i.b16 %v2856, %v2840
        %v2995 = vshrl.u32 %v2840, 16
        %v2996 = vshrl.u32 %v2856, 16
        %v2997 = vpack.i.b16 %v2996, %v2995
        %v3001 = vpack.i.b16 %v2888, %v2872
        %v3003 = vshrl.u32 %v2872, 16
        %v3004 = vshrl.u32 %v2888, 16
        %v3005 = vpack.i.b16 %v3004, %v3003
        %v3009 = vpack.i.b16 %v2920, %v2904
        %v3011 = vshrl.u32 %v2904, 16
        %v3012 = vshrl.u32 %v2920, 16
        %v3013 = vpack.i.b16 %v3012, %v3011
        %v3017 = vpack.i.b16 %v2952, %v2936
        %v3019 = vshrl.u32 %v2936, 16
        %v3020 = vshrl.u32 %v2952, 16
        %v3021 = vpack.i.b16 %v3020, %v3019
        %v3023 = vcombine.low %v2961, %v2977
        %v3024 = vcombine.high %v2961, %v2977
        %v3026 = vunpack.c.l.s4 1983009808
        %v3027 = vunpack.c.0.s8 %v3026
        %v3028 = vlaneseq
        %v3029 = vshrl.u32 %v3028, 7
        %v3030 = vsub.s32 %v3027, %v3029
        %v3031 = vrot.slane %v3023, %v3030
        %v3033 = vunpack.c.l.s4 1983009808
        %v3034 = vunpack.c.0.s8 %v3033
        %v3035 = vlaneseq
        %v3036 = vshrl.u32 %v3035, 7
        %v3037 = vsub.s32 %v3034, %v3036
        %v3038 = vrot.slane %v3024, %v3037
        %v3039 = vcombine.low %v2969, %v2985
        %v3040 = vcombine.high %v2969, %v2985
        %v3042 = vunpack.c.l.s4 1983009808
        %v3043 = vunpack.c.0.s8 %v3042
        %v3044 = vlaneseq
        %v3045 = vshrl.u32 %v3044, 7
        %v3046 = vsub.s32 %v3043, %v3045
        %v3047 = vrot.slane %v3039, %v3046
        %v3049 = vunpack.c.l.s4 1983009808
        %v3050 = vunpack.c.0.s8 %v3049
        %v3051 = vlaneseq
        %v3052 = vshrl.u32 %v3051, 7
        %v3053 = vsub.s32 %v3050, %v3052
        %v3054 = vrot.slane %v3040, %v3053
        %v3055 = vcombine.low %v3031, %v3047
        %v3056 = vcombine.high %v3031, %v3047
        %v3058 = vunpack.c.l.s4 1934713408
        %v3059 = vunpack.c.0.s8 %v3058
        %v3060 = vlaneseq
        %v3061 = vshrl.u32 %v3060, 7
        %v3062 = vsub.s32 %v3059, %v3061
        %v3063 = vrot.slane %v3055, %v3062
        %v3065 = vunpack.c.l.s4 1934713408
        %v3066 = vunpack.c.0.s8 %v3065
        %v3067 = vlaneseq
        %v3068 = vshrl.u32 %v3067, 7
        %v3069 = vsub.s32 %v3066, %v3068
        %v3070 = vrot.slane %v3056, %v3069
        %v3071 = vcombine.low %v3038, %v3054
        %v3072 = vcombine.high %v3038, %v3054
        %v3074 = vunpack.c.l.s4 1934713408
        %v3075 = vunpack.c.0.s8 %v3074
        %v3076 = vlaneseq
        %v3077 = vshrl.u32 %v3076, 7
        %v3078 = vsub.s32 %v3075, %v3077
        %v3079 = vrot.slane %v3071, %v3078
        %v3081 = vunpack.c.l.s4 1934713408
        %v3082 = vunpack.c.0.s8 %v3081
        %v3083 = vlaneseq
        %v3084 = vshrl.u32 %v3083, 7
        %v3085 = vsub.s32 %v3082, %v3084
        %v3086 = vrot.slane %v3072, %v3085
        %v3087 = vcombine.high %v3063, 0
        %v3088 = vcombine.high %v3070, 0
        %v3089 = vcombine.high %v3079, 0
        %v3090 = vcombine.high %v3086, 0
        %v3091 = vcombine.low %v2965, %v2981
        %v3092 = vcombine.high %v2965, %v2981
        %v3094 = vunpack.c.l.s4 1983009808
        %v3095 = vunpack.c.0.s8 %v3094
        %v3096 = vlaneseq
        %v3097 = vshrl.u32 %v3096, 7
        %v3098 = vsub.s32 %v3095, %v3097
        %v3099 = vrot.slane %v3091, %v3098
        %v3101 = vunpack.c.l.s4 1983009808
        %v3102 = vunpack.c.0.s8 %v3101
        %v3103 = vlaneseq
        %v3104 = vshrl.u32 %v3103, 7
        %v3105 = vsub.s32 %v3102, %v3104
        %v3106 = vrot.slane %v3092, %v3105
        %v3107 = vcombine.low %v2973, %v2989
        %v3108 = vcombine.high %v2973, %v2989
        %v3110 = vunpack.c.l.s4 1983009808
        %v3111 = vunpack.c.0.s8 %v3110
        %v3112 = vlaneseq
        %v3113 = vshrl.u32 %v3112, 7
        %v3114 = vsub.s32 %v3111, %v3113
        %v3115 = vrot.slane %v3107, %v3114
        %v3117 = vunpack.c.l.s4 1983009808
        %v3118 = vunpack.c.0.s8 %v3117
        %v3119 = vlaneseq
        %v3120 = vshrl.u32 %v3119, 7
        %v3121 = vsub.s32 %v3118, %v3120
        %v3122 = vrot.slane %v3108, %v3121
        %v3123 = vcombine.low %v3099, %v3115
        %v3124 = vcombine.high %v3099, %v3115
        %v3126 = vunpack.c.l.s4 1934713408
        %v3127 = vunpack.c.0.s8 %v3126
        %v3128 = vlaneseq
        %v3129 = vshrl.u32 %v3128, 7
        %v3130 = vsub.s32 %v3127, %v3129
        %v3131 = vrot.slane %v3123, %v3130
        %v3133 = vunpack.c.l.s4 1934713408
        %v3134 = vunpack.c.0.s8 %v3133
        %v3135 = vlaneseq
        %v3136 = vshrl.u32 %v3135, 7
        %v3137 = vsub.s32 %v3134, %v3136
        %v3138 = vrot.slane %v3124, %v3137
        %v3139 = vcombine.low %v3106, %v3122
        %v3140 = vcombine.high %v3106, %v3122
        %v3142 = vunpack.c.l.s4 1934713408
        %v3143 = vunpack.c.0.s8 %v3142
        %v3144 = vlaneseq
        %v3145 = vshrl.u32 %v3144, 7
        %v3146 = vsub.s32 %v3143, %v3145
        %v3147 = vrot.slane %v3139, %v3146
        %v3149 = vunpack.c.l.s4 1934713408
        %v3150 = vunpack.c.0.s8 %v3149
        %v3151 = vlaneseq
        %v3152 = vshrl.u32 %v3151, 7
        %v3153 = vsub.s32 %v3150, %v3152
        %v3154 = vrot.slane %v3140, %v3153
        %v3155 = vcombine.high %v3131, 0
        %v3156 = vcombine.high %v3138, 0
        %v3157 = vcombine.high %v3147, 0
        %v3158 = vcombine.high %v3154, 0
        %v3159 = vcombine.low %v2993, %v3009
        %v3160 = vcombine.high %v2993, %v3009
        %v3162 = vunpack.c.l.s4 1983009808
        %v3163 = vunpack.c.0.s8 %v3162
        %v3164 = vlaneseq
        %v3165 = vshrl.u32 %v3164, 7
        %v3166 = vsub.s32 %v3163, %v3165
        %v3167 = vrot.slane %v3159, %v3166
        %v3169 = vunpack.c.l.s4 1983009808
        %v3170 = vunpack.c.0.s8 %v3169
        %v3171 = vlaneseq
        %v3172 = vshrl.u32 %v3171, 7
        %v3173 = vsub.s32 %v3170, %v3172
        %v3174 = vrot.slane %v3160, %v3173
        %v3175 = vcombine.low %v3001, %v3017
        %v3176 = vcombine.high %v3001, %v3017
        %v3178 = vunpack.c.l.s4 1983009808
        %v3179 = vunpack.c.0.s8 %v3178
        %v3180 = vlaneseq
        %v3181 = vshrl.u32 %v3180, 7
        %v3182 = vsub.s32 %v3179, %v3181
        %v3183 = vrot.slane %v3175, %v3182
        %v3185 = vunpack.c.l.s4 1983009808
        %v3186 = vunpack.c.0.s8 %v3185
        %v3187 = vlaneseq
        %v3188 = vshrl.u32 %v3187, 7
        %v3189 = vsub.s32 %v3186, %v3188
        %v3190 = vrot.slane %v3176, %v3189
        %v3191 = vcombine.low %v3167, %v3183
        %v3192 = vcombine.high %v3167, %v3183
        %v3194 = vunpack.c.l.s4 1934713408
        %v3195 = vunpack.c.0.s8 %v3194
        %v3196 = vlaneseq
        %v3197 = vshrl.u32 %v3196, 7
        %v3198 = vsub.s32 %v3195, %v3197
        %v3199 = vrot.slane %v3191, %v3198
        %v3201 = vunpack.c.l.s4 1934713408
        %v3202 = vunpack.c.0.s8 %v3201
        %v3203 = vlaneseq
        %v3204 = vshrl.u32 %v3203, 7
        %v3205 = vsub.s32 %v3202, %v3204
        %v3206 = vrot.slane %v3192, %v3205
        %v3207 = vcombine.low %v3174, %v3190
        %v3208 = vcombine.high %v3174, %v3190
        %v3210 = vunpack.c.l.s4 1934713408
        %v3211 = vunpack.c.0.s8 %v3210
        %v3212 = vlaneseq
        %v3213 = vshrl.u32 %v3212, 7
        %v3214 = vsub.s32 %v3211, %v3213
        %v3215 = vrot.slane %v3207, %v3214
        %v3217 = vunpack.c.l.s4 1934713408
        %v3218 = vunpack.c.0.s8 %v3217
        %v3219 = vlaneseq
        %v3220 = vshrl.u32 %v3219, 7
        %v3221 = vsub.s32 %v3218, %v3220
        %v3222 = vrot.slane %v3208, %v3221
        %v3223 = vcombine.high %v3199, 0
        %v3224 = vcombine.high %v3206, 0
        %v3225 = vcombine.high %v3215, 0
        %v3226 = vcombine.high %v3222, 0
        %v3227 = vcombine.low %v2997, %v3013
        %v3228 = vcombine.high %v2997, %v3013
        %v3230 = vunpack.c.l.s4 1983009808
        %v3231 = vunpack.c.0.s8 %v3230
        %v3232 = vlaneseq
        %v3233 = vshrl.u32 %v3232, 7
        %v3234 = vsub.s32 %v3231, %v3233
        %v3235 = vrot.slane %v3227, %v3234
        %v3237 = vunpack.c.l.s4 1983009808
        %v3238 = vunpack.c.0.s8 %v3237
        %v3239 = vlaneseq
        %v3240 = vshrl.u32 %v3239, 7
        %v3241 = vsub.s32 %v3238, %v3240
        %v3242 = vrot.slane %v3228, %v3241
        %v3243 = vcombine.low %v3005, %v3021
        %v3244 = vcombine.high %v3005, %v3021
        %v3246 = vunpack.c.l.s4 1983009808
        %v3247 = vunpack.c.0.s8 %v3246
        %v3248 = vlaneseq
        %v3249 = vshrl.u32 %v3248, 7
        %v3250 = vsub.s32 %v3247, %v3249
        %v3251 = vrot.slane %v3243, %v3250
        %v3253 = vunpack.c.l.s4 1983009808
        %v3254 = vunpack.c.0.s8 %v3253
        %v3255 = vlaneseq
        %v3256 = vshrl.u32 %v3255, 7
        %v3257 = vsub.s32 %v3254, %v3256
        %v3258 = vrot.slane %v3244, %v3257
        %v3259 = vcombine.low %v3235, %v3251
        %v3260 = vcombine.high %v3235, %v3251
        %v3262 = vunpack.c.l.s4 1934713408
        %v3263 = vunpack.c.0.s8 %v3262
        %v3264 = vlaneseq
        %v3265 = vshrl.u32 %v3264, 7
        %v3266 = vsub.s32 %v3263, %v3265
        %v3267 = vrot.slane %v3259, %v3266
        %v3269 = vunpack.c.l.s4 1934713408
        %v3270 = vunpack.c.0.s8 %v3269
        %v3271 = vlaneseq
        %v3272 = vshrl.u32 %v3271, 7
        %v3273 = vsub.s32 %v3270, %v3272
        %v3274 = vrot.slane %v3260, %v3273
        %v3275 = vcombine.low %v3242, %v3258
        %v3276 = vcombine.high %v3242, %v3258
        %v3278 = vunpack.c.l.s4 1934713408
        %v3279 = vunpack.c.0.s8 %v3278
        %v3280 = vlaneseq
        %v3281 = vshrl.u32 %v3280, 7
        %v3282 = vsub.s32 %v3279, %v3281
        %v3283 = vrot.slane %v3275, %v3282
        %v3285 = vunpack.c.l.s4 1934713408
        %v3286 = vunpack.c.0.s8 %v3285
        %v3287 = vlaneseq
        %v3288 = vshrl.u32 %v3287, 7
        %v3289 = vsub.s32 %v3286, %v3288
        %v3290 = vrot.slane %v3276, %v3289
        %v3291 = vcombine.high %v3267, 0
        %v3292 = vcombine.high %v3274, 0
        %v3293 = vcombine.high %v3283, 0
        %v3294 = vcombine.high %v3290, 0
        %3295 = vxpose.xlu0.c.b16.start [1/8] %v3063, 128
        %3296 = vxpose.xlu0.c.b16.cont [2/8] 0, 128
        %3297 = vxpose.xlu0.c.b16.cont [3/8] 0, 128
        %3298 = vxpose.xlu0.c.b16.cont [4/8] 0, 128
        %3299 = vxpose.xlu0.c.b16.cont [5/8] 0, 128
        %3300 = vxpose.xlu0.c.b16.cont [6/8] 0, 128
        %3301 = vxpose.xlu0.c.b16.cont [7/8] 0, 128
        %3302 = vxpose.xlu0.c.b16.end [8/8] 0, 128
        %v3303 = vpop.trf.xlu0
        %v3304 = vpop.trf.xlu0
        %v3305 = vpop.trf.xlu0
        %v3306 = vpop.trf.xlu0
        %v3307 = vpop.trf.xlu0
        %v3308 = vpop.trf.xlu0
        %v3309 = vpop.trf.xlu0
        %v3310 = vpop.trf.xlu0
        %3311 = vxpose.xlu0.c.b16.start [1/8] %v3131, 128
        %3312 = vxpose.xlu0.c.b16.cont [2/8] 0, 128
        %3313 = vxpose.xlu0.c.b16.cont [3/8] 0, 128
        %3314 = vxpose.xlu0.c.b16.cont [4/8] 0, 128
        %3315 = vxpose.xlu0.c.b16.cont [5/8] 0, 128
        %3316 = vxpose.xlu0.c.b16.cont [6/8] 0, 128
        %3317 = vxpose.xlu0.c.b16.cont [7/8] 0, 128
        %3318 = vxpose.xlu0.c.b16.end [8/8] 0, 128
        %v3319 = vpop.trf.xlu0
        %v3320 = vpop.trf.xlu0
        %v3321 = vpop.trf.xlu0
        %v3322 = vpop.trf.xlu0
        %v3323 = vpop.trf.xlu0
        %v3324 = vpop.trf.xlu0
        %v3325 = vpop.trf.xlu0
        %v3326 = vpop.trf.xlu0
        %3327 = vxpose.xlu0.c.b16.start [1/8] %v3087, 128
        %3328 = vxpose.xlu0.c.b16.cont [2/8] 0, 128
        %3329 = vxpose.xlu0.c.b16.cont [3/8] 0, 128
        %3330 = vxpose.xlu0.c.b16.cont [4/8] 0, 128
        %3331 = vxpose.xlu0.c.b16.cont [5/8] 0, 128
        %3332 = vxpose.xlu0.c.b16.cont [6/8] 0, 128
        %3333 = vxpose.xlu0.c.b16.cont [7/8] 0, 128
        %3334 = vxpose.xlu0.c.b16.end [8/8] 0, 128
        %v3335 = vpop.trf.xlu0
        %v3336 = vpop.trf.xlu0
        %v3337 = vpop.trf.xlu0
        %v3338 = vpop.trf.xlu0
        %v3339 = vpop.trf.xlu0
        %v3340 = vpop.trf.xlu0
        %v3341 = vpop.trf.xlu0
        %v3342 = vpop.trf.xlu0
        %3343 = vxpose.xlu0.c.b16.start [1/8] %v3155, 128
        %3344 = vxpose.xlu0.c.b16.cont [2/8] 0, 128
        %3345 = vxpose.xlu0.c.b16.cont [3/8] 0, 128
        %3346 = vxpose.xlu0.c.b16.cont [4/8] 0, 128
        %3347 = vxpose.xlu0.c.b16.cont [5/8] 0, 128
        %3348 = vxpose.xlu0.c.b16.cont [6/8] 0, 128
        %3349 = vxpose.xlu0.c.b16.cont [7/8] 0, 128
        %3350 = vxpose.xlu0.c.b16.end [8/8] 0, 128
        %v3351 = vpop.trf.xlu0
        %v3352 = vpop.trf.xlu0
        %v3353 = vpop.trf.xlu0
        %v3354 = vpop.trf.xlu0
        %v3355 = vpop.trf.xlu0
        %v3356 = vpop.trf.xlu0
        %v3357 = vpop.trf.xlu0
        %v3358 = vpop.trf.xlu0
        %3359 = vxpose.xlu0.c.b16.start [1/8] %v3070, 128
        %3360 = vxpose.xlu0.c.b16.cont [2/8] 0, 128
        %3361 = vxpose.xlu0.c.b16.cont [3/8] 0, 128
        %3362 = vxpose.xlu0.c.b16.cont [4/8] 0, 128
        %3363 = vxpose.xlu0.c.b16.cont [5/8] 0, 128
        %3364 = vxpose.xlu0.c.b16.cont [6/8] 0, 128
        %3365 = vxpose.xlu0.c.b16.cont [7/8] 0, 128
        %3366 = vxpose.xlu0.c.b16.end [8/8] 0, 128
        %v3367 = vpop.trf.xlu0
        %v3368 = vpop.trf.xlu0
        %v3369 = vpop.trf.xlu0
        %v3370 = vpop.trf.xlu0
        %v3371 = vpop.trf.xlu0
        %v3372 = vpop.trf.xlu0
        %v3373 = vpop.trf.xlu0
        %v3374 = vpop.trf.xlu0
        %3375 = vxpose.xlu0.c.b16.start [1/8] %v3138, 128
        %3376 = vxpose.xlu0.c.b16.cont [2/8] 0, 128
        %3377 = vxpose.xlu0.c.b16.cont [3/8] 0, 128
        %3378 = vxpose.xlu0.c.b16.cont [4/8] 0, 128
        %3379 = vxpose.xlu0.c.b16.cont [5/8] 0, 128
        %3380 = vxpose.xlu0.c.b16.cont [6/8] 0, 128
        %3381 = vxpose.xlu0.c.b16.cont [7/8] 0, 128
        %3382 = vxpose.xlu0.c.b16.end [8/8] 0, 128
        %v3383 = vpop.trf.xlu0
        %v3384 = vpop.trf.xlu0
        %v3385 = vpop.trf.xlu0
        %v3386 = vpop.trf.xlu0
        %v3387 = vpop.trf.xlu0
        %v3388 = vpop.trf.xlu0
        %v3389 = vpop.trf.xlu0
        %v3390 = vpop.trf.xlu0
        %3391 = vxpose.xlu0.c.b16.start [1/8] %v3088, 128
        %3392 = vxpose.xlu0.c.b16.cont [2/8] 0, 128
        %3393 = vxpose.xlu0.c.b16.cont [3/8] 0, 128
        %3394 = vxpose.xlu0.c.b16.cont [4/8] 0, 128
        %3395 = vxpose.xlu0.c.b16.cont [5/8] 0, 128
        %3396 = vxpose.xlu0.c.b16.cont [6/8] 0, 128
        %3397 = vxpose.xlu0.c.b16.cont [7/8] 0, 128
        %3398 = vxpose.xlu0.c.b16.end [8/8] 0, 128
        %v3399 = vpop.trf.xlu0
        %v3400 = vpop.trf.xlu0
        %v3401 = vpop.trf.xlu0
        %v3402 = vpop.trf.xlu0
        %v3403 = vpop.trf.xlu0
        %v3404 = vpop.trf.xlu0
        %v3405 = vpop.trf.xlu0
        %v3406 = vpop.trf.xlu0
        %3407 = vxpose.xlu0.c.b16.start [1/8] %v3156, 128
        %3408 = vxpose.xlu0.c.b16.cont [2/8] 0, 128
        %3409 = vxpose.xlu0.c.b16.cont [3/8] 0, 128
        %3410 = vxpose.xlu0.c.b16.cont [4/8] 0, 128
        %3411 = vxpose.xlu0.c.b16.cont [5/8] 0, 128
        %3412 = vxpose.xlu0.c.b16.cont [6/8] 0, 128
        %3413 = vxpose.xlu0.c.b16.cont [7/8] 0, 128
        %3414 = vxpose.xlu0.c.b16.end [8/8] 0, 128
        %v3415 = vpop.trf.xlu0
        %v3416 = vpop.trf.xlu0
        %v3417 = vpop.trf.xlu0
        %v3418 = vpop.trf.xlu0
        %v3419 = vpop.trf.xlu0
        %v3420 = vpop.trf.xlu0
        %v3421 = vpop.trf.xlu0
        %v3422 = vpop.trf.xlu0
        %3423 = vxpose.xlu0.c.b16.start [1/8] %v3079, 128
        %3424 = vxpose.xlu0.c.b16.cont [2/8] 0, 128
        %3425 = vxpose.xlu0.c.b16.cont [3/8] 0, 128
        %3426 = vxpose.xlu0.c.b16.cont [4/8] 0, 128
        %3427 = vxpose.xlu0.c.b16.cont [5/8] 0, 128
        %3428 = vxpose.xlu0.c.b16.cont [6/8] 0, 128
        %3429 = vxpose.xlu0.c.b16.cont [7/8] 0, 128
        %3430 = vxpose.xlu0.c.b16.end [8/8] 0, 128
        %v3431 = vpop.trf.xlu0
        %v3432 = vpop.trf.xlu0
        %v3433 = vpop.trf.xlu0
        %v3434 = vpop.trf.xlu0
        %v3435 = vpop.trf.xlu0
        %v3436 = vpop.trf.xlu0
        %v3437 = vpop.trf.xlu0
        %v3438 = vpop.trf.xlu0
        %3439 = vxpose.xlu0.c.b16.start [1/8] %v3147, 128
        %3440 = vxpose.xlu0.c.b16.cont [2/8] 0, 128
        %3441 = vxpose.xlu0.c.b16.cont [3/8] 0, 128
        %3442 = vxpose.xlu0.c.b16.cont [4/8] 0, 128
        %3443 = vxpose.xlu0.c.b16.cont [5/8] 0, 128
        %3444 = vxpose.xlu0.c.b16.cont [6/8] 0, 128
        %3445 = vxpose.xlu0.c.b16.cont [7/8] 0, 128
        %3446 = vxpose.xlu0.c.b16.end [8/8] 0, 128
        %v3447 = vpop.trf.xlu0
        %v3448 = vpop.trf.xlu0
        %v3449 = vpop.trf.xlu0
        %v3450 = vpop.trf.xlu0
        %v3451 = vpop.trf.xlu0
        %v3452 = vpop.trf.xlu0
        %v3453 = vpop.trf.xlu0
        %v3454 = vpop.trf.xlu0
        %3455 = vxpose.xlu0.c.b16.start [1/8] %v3089, 128
        %3456 = vxpose.xlu0.c.b16.cont [2/8] 0, 128
        %3457 = vxpose.xlu0.c.b16.cont [3/8] 0, 128
        %3458 = vxpose.xlu0.c.b16.cont [4/8] 0, 128
        %3459 = vxpose.xlu0.c.b16.cont [5/8] 0, 128
        %3460 = vxpose.xlu0.c.b16.cont [6/8] 0, 128
        %3461 = vxpose.xlu0.c.b16.cont [7/8] 0, 128
        %3462 = vxpose.xlu0.c.b16.end [8/8] 0, 128
        %v3463 = vpop.trf.xlu0
        %v3464 = vpop.trf.xlu0
        %v3465 = vpop.trf.xlu0
        %v3466 = vpop.trf.xlu0
        %v3467 = vpop.trf.xlu0
        %v3468 = vpop.trf.xlu0
        %v3469 = vpop.trf.xlu0
        %v3470 = vpop.trf.xlu0
        %3471 = vxpose.xlu0.c.b16.start [1/8] %v3157, 128
        %3472 = vxpose.xlu0.c.b16.cont [2/8] 0, 128
        %3473 = vxpose.xlu0.c.b16.cont [3/8] 0, 128
        %3474 = vxpose.xlu0.c.b16.cont [4/8] 0, 128
        %3475 = vxpose.xlu0.c.b16.cont [5/8] 0, 128
        %3476 = vxpose.xlu0.c.b16.cont [6/8] 0, 128
        %3477 = vxpose.xlu0.c.b16.cont [7/8] 0, 128
        %3478 = vxpose.xlu0.c.b16.end [8/8] 0, 128
        %v3479 = vpop.trf.xlu0
        %v3480 = vpop.trf.xlu0
        %v3481 = vpop.trf.xlu0
        %v3482 = vpop.trf.xlu0
        %v3483 = vpop.trf.xlu0
        %v3484 = vpop.trf.xlu0
        %v3485 = vpop.trf.xlu0
        %v3486 = vpop.trf.xlu0
        %3487 = vxpose.xlu0.c.b16.start [1/8] %v3086, 128
        %3488 = vxpose.xlu0.c.b16.cont [2/8] 0, 128
        %3489 = vxpose.xlu0.c.b16.cont [3/8] 0, 128
        %3490 = vxpose.xlu0.c.b16.cont [4/8] 0, 128
        %3491 = vxpose.xlu0.c.b16.cont [5/8] 0, 128
        %3492 = vxpose.xlu0.c.b16.cont [6/8] 0, 128
        %3493 = vxpose.xlu0.c.b16.cont [7/8] 0, 128
        %3494 = vxpose.xlu0.c.b16.end [8/8] 0, 128
        %v3495 = vpop.trf.xlu0
        %v3496 = vpop.trf.xlu0
        %v3497 = vpop.trf.xlu0
        %v3498 = vpop.trf.xlu0
        %v3499 = vpop.trf.xlu0
        %v3500 = vpop.trf.xlu0
        %v3501 = vpop.trf.xlu0
        %v3502 = vpop.trf.xlu0
        %3503 = vxpose.xlu0.c.b16.start [1/8] %v3154, 128
        %3504 = vxpose.xlu0.c.b16.cont [2/8] 0, 128
        %3505 = vxpose.xlu0.c.b16.cont [3/8] 0, 128
        %3506 = vxpose.xlu0.c.b16.cont [4/8] 0, 128
        %3507 = vxpose.xlu0.c.b16.cont [5/8] 0, 128
        %3508 = vxpose.xlu0.c.b16.cont [6/8] 0, 128
        %3509 = vxpose.xlu0.c.b16.cont [7/8] 0, 128
        %3510 = vxpose.xlu0.c.b16.end [8/8] 0, 128
        %v3511 = vpop.trf.xlu0
        %v3512 = vpop.trf.xlu0
        %v3513 = vpop.trf.xlu0
        %v3514 = vpop.trf.xlu0
        %v3515 = vpop.trf.xlu0
        %v3516 = vpop.trf.xlu0
        %v3517 = vpop.trf.xlu0
        %v3518 = vpop.trf.xlu0
        %3519 = vxpose.xlu0.c.b16.start [1/8] %v3090, 128
        %3520 = vxpose.xlu0.c.b16.cont [2/8] 0, 128
        %3521 = vxpose.xlu0.c.b16.cont [3/8] 0, 128
        %3522 = vxpose.xlu0.c.b16.cont [4/8] 0, 128
        %3523 = vxpose.xlu0.c.b16.cont [5/8] 0, 128
        %3524 = vxpose.xlu0.c.b16.cont [6/8] 0, 128
        %3525 = vxpose.xlu0.c.b16.cont [7/8] 0, 128
        %3526 = vxpose.xlu0.c.b16.end [8/8] 0, 128
        %v3527 = vpop.trf.xlu0
        %v3528 = vpop.trf.xlu0
        %v3529 = vpop.trf.xlu0
        %v3530 = vpop.trf.xlu0
        %v3531 = vpop.trf.xlu0
        %v3532 = vpop.trf.xlu0
        %v3533 = vpop.trf.xlu0
        %v3534 = vpop.trf.xlu0
        %3535 = vxpose.xlu0.c.b16.start [1/8] %v3158, 128
        %3536 = vxpose.xlu0.c.b16.cont [2/8] 0, 128
        %3537 = vxpose.xlu0.c.b16.cont [3/8] 0, 128
        %3538 = vxpose.xlu0.c.b16.cont [4/8] 0, 128
        %3539 = vxpose.xlu0.c.b16.cont [5/8] 0, 128
        %3540 = vxpose.xlu0.c.b16.cont [6/8] 0, 128
        %3541 = vxpose.xlu0.c.b16.cont [7/8] 0, 128
        %3542 = vxpose.xlu0.c.b16.end [8/8] 0, 128
        %v3543 = vpop.trf.xlu0
        %v3544 = vpop.trf.xlu0
        %v3545 = vpop.trf.xlu0
        %v3546 = vpop.trf.xlu0
        %v3547 = vpop.trf.xlu0
        %v3548 = vpop.trf.xlu0
        %v3549 = vpop.trf.xlu0
        %v3550 = vpop.trf.xlu0
        %3551 = vxpose.xlu0.c.b16.start [1/8] %v3199, 128
        %3552 = vxpose.xlu0.c.b16.cont [2/8] 0, 128
        %3553 = vxpose.xlu0.c.b16.cont [3/8] 0, 128
        %3554 = vxpose.xlu0.c.b16.cont [4/8] 0, 128
        %3555 = vxpose.xlu0.c.b16.cont [5/8] 0, 128
        %3556 = vxpose.xlu0.c.b16.cont [6/8] 0, 128
        %3557 = vxpose.xlu0.c.b16.cont [7/8] 0, 128
        %3558 = vxpose.xlu0.c.b16.end [8/8] 0, 128
        %v3559 = vpop.trf.xlu0
        %v3560 = vpop.trf.xlu0
        %v3561 = vpop.trf.xlu0
        %v3562 = vpop.trf.xlu0
        %v3563 = vpop.trf.xlu0
        %v3564 = vpop.trf.xlu0
        %v3565 = vpop.trf.xlu0
        %v3566 = vpop.trf.xlu0
        %3567 = vxpose.xlu0.c.b16.start [1/8] %v3267, 128
        %3568 = vxpose.xlu0.c.b16.cont [2/8] 0, 128
        %3569 = vxpose.xlu0.c.b16.cont [3/8] 0, 128
        %3570 = vxpose.xlu0.c.b16.cont [4/8] 0, 128
        %3571 = vxpose.xlu0.c.b16.cont [5/8] 0, 128
        %3572 = vxpose.xlu0.c.b16.cont [6/8] 0, 128
        %3573 = vxpose.xlu0.c.b16.cont [7/8] 0, 128
        %3574 = vxpose.xlu0.c.b16.end [8/8] 0, 128
        %v3575 = vpop.trf.xlu0
        %v3576 = vpop.trf.xlu0
        %v3577 = vpop.trf.xlu0
        %v3578 = vpop.trf.xlu0
        %v3579 = vpop.trf.xlu0
        %v3580 = vpop.trf.xlu0
        %v3581 = vpop.trf.xlu0
        %v3582 = vpop.trf.xlu0
        %3583 = vxpose.xlu0.c.b16.start [1/8] %v3223, 128
        %3584 = vxpose.xlu0.c.b16.cont [2/8] 0, 128
        %3585 = vxpose.xlu0.c.b16.cont [3/8] 0, 128
        %3586 = vxpose.xlu0.c.b16.cont [4/8] 0, 128
        %3587 = vxpose.xlu0.c.b16.cont [5/8] 0, 128
        %3588 = vxpose.xlu0.c.b16.cont [6/8] 0, 128
        %3589 = vxpose.xlu0.c.b16.cont [7/8] 0, 128
        %3590 = vxpose.xlu0.c.b16.end [8/8] 0, 128
        %v3591 = vpop.trf.xlu0
        %v3592 = vpop.trf.xlu0
        %v3593 = vpop.trf.xlu0
        %v3594 = vpop.trf.xlu0
        %v3595 = vpop.trf.xlu0
        %v3596 = vpop.trf.xlu0
        %v3597 = vpop.trf.xlu0
        %v3598 = vpop.trf.xlu0
        %3599 = vxpose.xlu0.c.b16.start [1/8] %v3291, 128
        %3600 = vxpose.xlu0.c.b16.cont [2/8] 0, 128
        %3601 = vxpose.xlu0.c.b16.cont [3/8] 0, 128
        %3602 = vxpose.xlu0.c.b16.cont [4/8] 0, 128
        %3603 = vxpose.xlu0.c.b16.cont [5/8] 0, 128
        %3604 = vxpose.xlu0.c.b16.cont [6/8] 0, 128
        %3605 = vxpose.xlu0.c.b16.cont [7/8] 0, 128
        %3606 = vxpose.xlu0.c.b16.end [8/8] 0, 128
        %v3607 = vpop.trf.xlu0
        %v3608 = vpop.trf.xlu0
        %v3609 = vpop.trf.xlu0
        %v3610 = vpop.trf.xlu0
        %v3611 = vpop.trf.xlu0
        %v3612 = vpop.trf.xlu0
        %v3613 = vpop.trf.xlu0
        %v3614 = vpop.trf.xlu0
        %3615 = vxpose.xlu0.c.b16.start [1/8] %v3206, 128
        %3616 = vxpose.xlu0.c.b16.cont [2/8] 0, 128
        %3617 = vxpose.xlu0.c.b16.cont [3/8] 0, 128
        %3618 = vxpose.xlu0.c.b16.cont [4/8] 0, 128
        %3619 = vxpose.xlu0.c.b16.cont [5/8] 0, 128
        %3620 = vxpose.xlu0.c.b16.cont [6/8] 0, 128
        %3621 = vxpose.xlu0.c.b16.cont [7/8] 0, 128
        %3622 = vxpose.xlu0.c.b16.end [8/8] 0, 128
        %v3623 = vpop.trf.xlu0
        %v3624 = vpop.trf.xlu0
        %v3625 = vpop.trf.xlu0
        %v3626 = vpop.trf.xlu0
        %v3627 = vpop.trf.xlu0
        %v3628 = vpop.trf.xlu0
        %v3629 = vpop.trf.xlu0
        %v3630 = vpop.trf.xlu0
        %3631 = vxpose.xlu0.c.b16.start [1/8] %v3274, 128
        %3632 = vxpose.xlu0.c.b16.cont [2/8] 0, 128
        %3633 = vxpose.xlu0.c.b16.cont [3/8] 0, 128
        %3634 = vxpose.xlu0.c.b16.cont [4/8] 0, 128
        %3635 = vxpose.xlu0.c.b16.cont [5/8] 0, 128
        %3636 = vxpose.xlu0.c.b16.cont [6/8] 0, 128
        %3637 = vxpose.xlu0.c.b16.cont [7/8] 0, 128
        %3638 = vxpose.xlu0.c.b16.end [8/8] 0, 128
        %v3639 = vpop.trf.xlu0
        %v3640 = vpop.trf.xlu0
        %v3641 = vpop.trf.xlu0
        %v3642 = vpop.trf.xlu0
        %v3643 = vpop.trf.xlu0
        %v3644 = vpop.trf.xlu0
        %v3645 = vpop.trf.xlu0
        %v3646 = vpop.trf.xlu0
        %3647 = vxpose.xlu0.c.b16.start [1/8] %v3224, 128
        %3648 = vxpose.xlu0.c.b16.cont [2/8] 0, 128
        %3649 = vxpose.xlu0.c.b16.cont [3/8] 0, 128
        %3650 = vxpose.xlu0.c.b16.cont [4/8] 0, 128
        %3651 = vxpose.xlu0.c.b16.cont [5/8] 0, 128
        %3652 = vxpose.xlu0.c.b16.cont [6/8] 0, 128
        %3653 = vxpose.xlu0.c.b16.cont [7/8] 0, 128
        %3654 = vxpose.xlu0.c.b16.end [8/8] 0, 128
        %v3655 = vpop.trf.xlu0
        %v3656 = vpop.trf.xlu0
        %v3657 = vpop.trf.xlu0
        %v3658 = vpop.trf.xlu0
        %v3659 = vpop.trf.xlu0
        %v3660 = vpop.trf.xlu0
        %v3661 = vpop.trf.xlu0
        %v3662 = vpop.trf.xlu0
        %3663 = vxpose.xlu0.c.b16.start [1/8] %v3292, 128
        %3664 = vxpose.xlu0.c.b16.cont [2/8] 0, 128
        %3665 = vxpose.xlu0.c.b16.cont [3/8] 0, 128
        %3666 = vxpose.xlu0.c.b16.cont [4/8] 0, 128
        %3667 = vxpose.xlu0.c.b16.cont [5/8] 0, 128
        %3668 = vxpose.xlu0.c.b16.cont [6/8] 0, 128
        %3669 = vxpose.xlu0.c.b16.cont [7/8] 0, 128
        %3670 = vxpose.xlu0.c.b16.end [8/8] 0, 128
        %v3671 = vpop.trf.xlu0
        %v3672 = vpop.trf.xlu0
        %v3673 = vpop.trf.xlu0
        %v3674 = vpop.trf.xlu0
        %v3675 = vpop.trf.xlu0
        %v3676 = vpop.trf.xlu0
        %v3677 = vpop.trf.xlu0
        %v3678 = vpop.trf.xlu0
        %3679 = vxpose.xlu0.c.b16.start [1/8] %v3215, 128
        %3680 = vxpose.xlu0.c.b16.cont [2/8] 0, 128
        %3681 = vxpose.xlu0.c.b16.cont [3/8] 0, 128
        %3682 = vxpose.xlu0.c.b16.cont [4/8] 0, 128
        %3683 = vxpose.xlu0.c.b16.cont [5/8] 0, 128
        %3684 = vxpose.xlu0.c.b16.cont [6/8] 0, 128
        %3685 = vxpose.xlu0.c.b16.cont [7/8] 0, 128
        %3686 = vxpose.xlu0.c.b16.end [8/8] 0, 128
        %v3687 = vpop.trf.xlu0
        %v3688 = vpop.trf.xlu0
        %v3689 = vpop.trf.xlu0
        %v3690 = vpop.trf.xlu0
        %v3691 = vpop.trf.xlu0
        %v3692 = vpop.trf.xlu0
        %v3693 = vpop.trf.xlu0
        %v3694 = vpop.trf.xlu0
        %3695 = vxpose.xlu0.c.b16.start [1/8] %v3283, 128
        %3696 = vxpose.xlu0.c.b16.cont [2/8] 0, 128
        %3697 = vxpose.xlu0.c.b16.cont [3/8] 0, 128
        %3698 = vxpose.xlu0.c.b16.cont [4/8] 0, 128
        %3699 = vxpose.xlu0.c.b16.cont [5/8] 0, 128
        %3700 = vxpose.xlu0.c.b16.cont [6/8] 0, 128
        %3701 = vxpose.xlu0.c.b16.cont [7/8] 0, 128
        %3702 = vxpose.xlu0.c.b16.end [8/8] 0, 128
        %v3703 = vpop.trf.xlu0
        %v3704 = vpop.trf.xlu0
        %v3705 = vpop.trf.xlu0
        %v3706 = vpop.trf.xlu0
        %v3707 = vpop.trf.xlu0
        %v3708 = vpop.trf.xlu0
        %v3709 = vpop.trf.xlu0
        %v3710 = vpop.trf.xlu0
        %3711 = vxpose.xlu0.c.b16.start [1/8] %v3225, 128
        %3712 = vxpose.xlu0.c.b16.cont [2/8] 0, 128
        %3713 = vxpose.xlu0.c.b16.cont [3/8] 0, 128
        %3714 = vxpose.xlu0.c.b16.cont [4/8] 0, 128
        %3715 = vxpose.xlu0.c.b16.cont [5/8] 0, 128
        %3716 = vxpose.xlu0.c.b16.cont [6/8] 0, 128
        %3717 = vxpose.xlu0.c.b16.cont [7/8] 0, 128
        %3718 = vxpose.xlu0.c.b16.end [8/8] 0, 128
        %v3719 = vpop.trf.xlu0
        %v3720 = vpop.trf.xlu0
        %v3721 = vpop.trf.xlu0
        %v3722 = vpop.trf.xlu0
        %v3723 = vpop.trf.xlu0
        %v3724 = vpop.trf.xlu0
        %v3725 = vpop.trf.xlu0
        %v3726 = vpop.trf.xlu0
        %3727 = vxpose.xlu0.c.b16.start [1/8] %v3293, 128
        %3728 = vxpose.xlu0.c.b16.cont [2/8] 0, 128
        %3729 = vxpose.xlu0.c.b16.cont [3/8] 0, 128
        %3730 = vxpose.xlu0.c.b16.cont [4/8] 0, 128
        %3731 = vxpose.xlu0.c.b16.cont [5/8] 0, 128
        %3732 = vxpose.xlu0.c.b16.cont [6/8] 0, 128
        %3733 = vxpose.xlu0.c.b16.cont [7/8] 0, 128
        %3734 = vxpose.xlu0.c.b16.end [8/8] 0, 128
        %v3735 = vpop.trf.xlu0
        %v3736 = vpop.trf.xlu0
        %v3737 = vpop.trf.xlu0
        %v3738 = vpop.trf.xlu0
        %v3739 = vpop.trf.xlu0
        %v3740 = vpop.trf.xlu0
        %v3741 = vpop.trf.xlu0
        %v3742 = vpop.trf.xlu0
        %3743 = vxpose.xlu0.c.b16.start [1/8] %v3222, 128
        %3744 = vxpose.xlu0.c.b16.cont [2/8] 0, 128
        %3745 = vxpose.xlu0.c.b16.cont [3/8] 0, 128
        %3746 = vxpose.xlu0.c.b16.cont [4/8] 0, 128
        %3747 = vxpose.xlu0.c.b16.cont [5/8] 0, 128
        %3748 = vxpose.xlu0.c.b16.cont [6/8] 0, 128
        %3749 = vxpose.xlu0.c.b16.cont [7/8] 0, 128
        %3750 = vxpose.xlu0.c.b16.end [8/8] 0, 128
        %v3751 = vpop.trf.xlu0
        %v3752 = vpop.trf.xlu0
        %v3753 = vpop.trf.xlu0
        %v3754 = vpop.trf.xlu0
        %v3755 = vpop.trf.xlu0
        %v3756 = vpop.trf.xlu0
        %v3757 = vpop.trf.xlu0
        %v3758 = vpop.trf.xlu0
        %3759 = vxpose.xlu0.c.b16.start [1/8] %v3290, 128
        %3760 = vxpose.xlu0.c.b16.cont [2/8] 0, 128
        %3761 = vxpose.xlu0.c.b16.cont [3/8] 0, 128
        %3762 = vxpose.xlu0.c.b16.cont [4/8] 0, 128
        %3763 = vxpose.xlu0.c.b16.cont [5/8] 0, 128
        %3764 = vxpose.xlu0.c.b16.cont [6/8] 0, 128
        %3765 = vxpose.xlu0.c.b16.cont [7/8] 0, 128
        %3766 = vxpose.xlu0.c.b16.end [8/8] 0, 128
        %v3767 = vpop.trf.xlu0
        %v3768 = vpop.trf.xlu0
        %v3769 = vpop.trf.xlu0
        %v3770 = vpop.trf.xlu0
        %v3771 = vpop.trf.xlu0
        %v3772 = vpop.trf.xlu0
        %v3773 = vpop.trf.xlu0
        %v3774 = vpop.trf.xlu0
        %3775 = vxpose.xlu0.c.b16.start [1/8] %v3226, 128
        %3776 = vxpose.xlu0.c.b16.cont [2/8] 0, 128
        %3777 = vxpose.xlu0.c.b16.cont [3/8] 0, 128
        %3778 = vxpose.xlu0.c.b16.cont [4/8] 0, 128
        %3779 = vxpose.xlu0.c.b16.cont [5/8] 0, 128
        %3780 = vxpose.xlu0.c.b16.cont [6/8] 0, 128
        %3781 = vxpose.xlu0.c.b16.cont [7/8] 0, 128
        %3782 = vxpose.xlu0.c.b16.end [8/8] 0, 128
        %v3783 = vpop.trf.xlu0
        %v3784 = vpop.trf.xlu0
        %v3785 = vpop.trf.xlu0
        %v3786 = vpop.trf.xlu0
        %v3787 = vpop.trf.xlu0
        %v3788 = vpop.trf.xlu0
        %v3789 = vpop.trf.xlu0
        %v3790 = vpop.trf.xlu0
        %3791 = vxpose.xlu0.c.b16.start [1/8] %v3294, 128
        %3792 = vxpose.xlu0.c.b16.cont [2/8] 0, 128
        %3793 = vxpose.xlu0.c.b16.cont [3/8] 0, 128
        %3794 = vxpose.xlu0.c.b16.cont [4/8] 0, 128
        %3795 = vxpose.xlu0.c.b16.cont [5/8] 0, 128
        %3796 = vxpose.xlu0.c.b16.cont [6/8] 0, 128
        %3797 = vxpose.xlu0.c.b16.cont [7/8] 0, 128
        %3798 = vxpose.xlu0.c.b16.end [8/8] 0, 128
        %v3799 = vpop.trf.xlu0
        %v3800 = vpop.trf.xlu0
        %v3801 = vpop.trf.xlu0
        %v3802 = vpop.trf.xlu0
        %v3803 = vpop.trf.xlu0
        %v3804 = vpop.trf.xlu0
        %v3805 = vpop.trf.xlu0
        %v3806 = vpop.trf.xlu0
        %v3807 = vcombine.low %v3303, %v3367
        %v3809 = vunpack.c.l.s4 1983009808
        %v3810 = vunpack.c.0.s8 %v3809
        %v3811 = vlaneseq
        %v3812 = vshrl.u32 %v3811, 7
        %v3813 = vsub.s32 %v3810, %v3812
        %v3814 = vrot.slane %v3807, %v3813
        %v3815 = vcombine.low %v3335, %v3399
        %v3817 = vunpack.c.l.s4 1983009808
        %v3818 = vunpack.c.0.s8 %v3817
        %v3819 = vlaneseq
        %v3820 = vshrl.u32 %v3819, 7
        %v3821 = vsub.s32 %v3818, %v3820
        %v3822 = vrot.slane %v3815, %v3821
        %v3823 = vcombine.low %v3431, %v3495
        %v3825 = vunpack.c.l.s4 1983009808
        %v3826 = vunpack.c.0.s8 %v3825
        %v3827 = vlaneseq
        %v3828 = vshrl.u32 %v3827, 7
        %v3829 = vsub.s32 %v3826, %v3828
        %v3830 = vrot.slane %v3823, %v3829
        %v3831 = vcombine.low %v3463, %v3527
        %v3833 = vunpack.c.l.s4 1983009808
        %v3834 = vunpack.c.0.s8 %v3833
        %v3835 = vlaneseq
        %v3836 = vshrl.u32 %v3835, 7
        %v3837 = vsub.s32 %v3834, %v3836
        %v3838 = vrot.slane %v3831, %v3837
        %v3839 = vcombine.low %v3814, %v3822
        %v3841 = vunpack.c.l.s4 1934713408
        %v3842 = vunpack.c.0.s8 %v3841
        %v3843 = vlaneseq
        %v3844 = vshrl.u32 %v3843, 7
        %v3845 = vsub.s32 %v3842, %v3844
        %v3846 = vrot.slane %v3839, %v3845
        %v3847 = vcombine.low %v3830, %v3838
        %v3849 = vunpack.c.l.s4 1934713408
        %v3850 = vunpack.c.0.s8 %v3849
        %v3851 = vlaneseq
        %v3852 = vshrl.u32 %v3851, 7
        %v3853 = vsub.s32 %v3850, %v3852
        %v3854 = vrot.slane %v3847, %v3853
        %v3855 = vcombine.low %v3846, %v3854
        %v3856 = vcombine.high %v3846, %v3854
        %v3857 = vcombine.low %v3319, %v3383
        %v3859 = vunpack.c.l.s4 1983009808
        %v3860 = vunpack.c.0.s8 %v3859
        %v3861 = vlaneseq
        %v3862 = vshrl.u32 %v3861, 7
        %v3863 = vsub.s32 %v3860, %v3862
        %v3864 = vrot.slane %v3857, %v3863
        %v3865 = vcombine.low %v3351, %v3415
        %v3867 = vunpack.c.l.s4 1983009808
        %v3868 = vunpack.c.0.s8 %v3867
        %v3869 = vlaneseq
        %v3870 = vshrl.u32 %v3869, 7
        %v3871 = vsub.s32 %v3868, %v3870
        %v3872 = vrot.slane %v3865, %v3871
        %v3873 = vcombine.low %v3447, %v3511
        %v3875 = vunpack.c.l.s4 1983009808
        %v3876 = vunpack.c.0.s8 %v3875
        %v3877 = vlaneseq
        %v3878 = vshrl.u32 %v3877, 7
        %v3879 = vsub.s32 %v3876, %v3878
        %v3880 = vrot.slane %v3873, %v3879
        %v3881 = vcombine.low %v3479, %v3543
        %v3883 = vunpack.c.l.s4 1983009808
        %v3884 = vunpack.c.0.s8 %v3883
        %v3885 = vlaneseq
        %v3886 = vshrl.u32 %v3885, 7
        %v3887 = vsub.s32 %v3884, %v3886
        %v3888 = vrot.slane %v3881, %v3887
        %v3889 = vcombine.low %v3864, %v3872
        %v3891 = vunpack.c.l.s4 1934713408
        %v3892 = vunpack.c.0.s8 %v3891
        %v3893 = vlaneseq
        %v3894 = vshrl.u32 %v3893, 7
        %v3895 = vsub.s32 %v3892, %v3894
        %v3896 = vrot.slane %v3889, %v3895
        %v3897 = vcombine.low %v3880, %v3888
        %v3899 = vunpack.c.l.s4 1934713408
        %v3900 = vunpack.c.0.s8 %v3899
        %v3901 = vlaneseq
        %v3902 = vshrl.u32 %v3901, 7
        %v3903 = vsub.s32 %v3900, %v3902
        %v3904 = vrot.slane %v3897, %v3903
        %v3905 = vcombine.low %v3896, %v3904
        %v3906 = vcombine.high %v3896, %v3904
        %v3907 = vcombine.low %v3559, %v3623
        %v3909 = vunpack.c.l.s4 1983009808
        %v3910 = vunpack.c.0.s8 %v3909
        %v3911 = vlaneseq
        %v3912 = vshrl.u32 %v3911, 7
        %v3913 = vsub.s32 %v3910, %v3912
        %v3914 = vrot.slane %v3907, %v3913
        %v3915 = vcombine.low %v3591, %v3655
        %v3917 = vunpack.c.l.s4 1983009808
        %v3918 = vunpack.c.0.s8 %v3917
        %v3919 = vlaneseq
        %v3920 = vshrl.u32 %v3919, 7
        %v3921 = vsub.s32 %v3918, %v3920
        %v3922 = vrot.slane %v3915, %v3921
        %v3923 = vcombine.low %v3687, %v3751
        %v3925 = vunpack.c.l.s4 1983009808
        %v3926 = vunpack.c.0.s8 %v3925
        %v3927 = vlaneseq
        %v3928 = vshrl.u32 %v3927, 7
        %v3929 = vsub.s32 %v3926, %v3928
        %v3930 = vrot.slane %v3923, %v3929
        %v3931 = vcombine.low %v3719, %v3783
        %v3933 = vunpack.c.l.s4 1983009808
        %v3934 = vunpack.c.0.s8 %v3933
        %v3935 = vlaneseq
        %v3936 = vshrl.u32 %v3935, 7
        %v3937 = vsub.s32 %v3934, %v3936
        %v3938 = vrot.slane %v3931, %v3937
        %v3939 = vcombine.low %v3914, %v3922
        %v3941 = vunpack.c.l.s4 1934713408
        %v3942 = vunpack.c.0.s8 %v3941
        %v3943 = vlaneseq
        %v3944 = vshrl.u32 %v3943, 7
        %v3945 = vsub.s32 %v3942, %v3944
        %v3946 = vrot.slane %v3939, %v3945
        %v3947 = vcombine.low %v3930, %v3938
        %v3949 = vunpack.c.l.s4 1934713408
        %v3950 = vunpack.c.0.s8 %v3949
        %v3951 = vlaneseq
        %v3952 = vshrl.u32 %v3951, 7
        %v3953 = vsub.s32 %v3950, %v3952
        %v3954 = vrot.slane %v3947, %v3953
        %v3955 = vcombine.low %v3946, %v3954
        %v3956 = vcombine.high %v3946, %v3954
        %v3957 = vcombine.low %v3575, %v3639
        %v3959 = vunpack.c.l.s4 1983009808
        %v3960 = vunpack.c.0.s8 %v3959
        %v3961 = vlaneseq
        %v3962 = vshrl.u32 %v3961, 7
        %v3963 = vsub.s32 %v3960, %v3962
        %v3964 = vrot.slane %v3957, %v3963
        %v3965 = vcombine.low %v3607, %v3671
        %v3967 = vunpack.c.l.s4 1983009808
        %v3968 = vunpack.c.0.s8 %v3967
        %v3969 = vlaneseq
        %v3970 = vshrl.u32 %v3969, 7
        %v3971 = vsub.s32 %v3968, %v3970
        %v3972 = vrot.slane %v3965, %v3971
        %v3973 = vcombine.low %v3703, %v3767
        %v3975 = vunpack.c.l.s4 1983009808
        %v3976 = vunpack.c.0.s8 %v3975
        %v3977 = vlaneseq
        %v3978 = vshrl.u32 %v3977, 7
        %v3979 = vsub.s32 %v3976, %v3978
        %v3980 = vrot.slane %v3973, %v3979
        %v3981 = vcombine.low %v3735, %v3799
        %v3983 = vunpack.c.l.s4 1983009808
        %v3984 = vunpack.c.0.s8 %v3983
        %v3985 = vlaneseq
        %v3986 = vshrl.u32 %v3985, 7
        %v3987 = vsub.s32 %v3984, %v3986
        %v3988 = vrot.slane %v3981, %v3987
        %v3989 = vcombine.low %v3964, %v3972
        %v3991 = vunpack.c.l.s4 1934713408
        %v3992 = vunpack.c.0.s8 %v3991
        %v3993 = vlaneseq
        %v3994 = vshrl.u32 %v3993, 7
        %v3995 = vsub.s32 %v3992, %v3994
        %v3996 = vrot.slane %v3989, %v3995
        %v3997 = vcombine.low %v3980, %v3988
        %v3999 = vunpack.c.l.s4 1934713408
        %v4000 = vunpack.c.0.s8 %v3999
        %v4001 = vlaneseq
        %v4002 = vshrl.u32 %v4001, 7
        %v4003 = vsub.s32 %v4000, %v4002
        %v4004 = vrot.slane %v3997, %v4003
        %v4005 = vcombine.low %v3996, %v4004
        %v4006 = vcombine.high %v3996, %v4004
        %v4009 = vpack.i.b16 %v3905, %v3855
        %v4010 = vshrl.u32 %v3855, 16
        %v4011 = vshrl.u32 %v3905, 16
        %v4012 = vpack.i.b16 %v4011, %v4010
        %v4015 = vpack.i.b16 %v3906, %v3856
        %v4016 = vshrl.u32 %v3856, 16
        %v4017 = vshrl.u32 %v3906, 16
        %v4018 = vpack.i.b16 %v4017, %v4016
        %v4021 = vpack.i.b16 %v4005, %v3955
        %v4022 = vshrl.u32 %v3955, 16
        %v4023 = vshrl.u32 %v4005, 16
        %v4024 = vpack.i.b16 %v4023, %v4022
        %v4027 = vpack.i.b16 %v4006, %v3956
        %v4028 = vshrl.u32 %v3956, 16
        %v4029 = vshrl.u32 %v4006, 16
        %v4030 = vpack.i.b16 %v4029, %v4028
        %v4032 = vsel %vm2774, %v4009, 0
        %v4035 = vsel %vm2774, %v4021, 0
        %v4038 = vsel %vm2774, %v2819, 0
        %4040 = vmatprep.subr.bf16.mxu0 0
        %4041 = vmatpush1.bf16.xpose.msra.mxu0 %v4038
        %4042 = vmatprep.subr.bf16.mxu0 0
        %4043 = vmatpush1.bf16.xpose.msra.mxu0 0
        %4044 = vmatprep.subr.bf16.mxu0 0
        %4045 = vmatpush1.bf16.xpose.msra.mxu0 0
        %4046 = vmatprep.subr.bf16.mxu0 0
        %4047 = vmatpush1.bf16.xpose.msra.mxu0 0
        %4048 = vmatprep.subr.bf16.mxu0 0
        %4049 = vmatpush1.bf16.xpose.msra.mxu0 0
        %4050 = vmatprep.subr.bf16.mxu0 0
        %4051 = vmatpush1.bf16.xpose.msra.mxu0 0
        %4052 = vmatprep.subr.bf16.mxu0 0
        %4053 = vmatpush1.bf16.xpose.msra.mxu0 0
        %4054 = vmatprep.subr.bf16.mxu0 0
        %4055 = vmatpush1.bf16.xpose.msra.mxu0 0
        %4056 = vmatprep.subr.bf16.mxu0 0
        %4057 = vmatpush1.bf16.xpose.msra.mxu0 0
        %4058 = vmatprep.subr.bf16.mxu0 0
        %4059 = vmatpush1.bf16.xpose.msra.mxu0 0
        %4060 = vmatprep.subr.bf16.mxu0 0
        %4061 = vmatpush1.bf16.xpose.msra.mxu0 0
        %4062 = vmatprep.subr.bf16.mxu0 0
        %4063 = vmatpush1.bf16.xpose.msra.mxu0 0
        %4064 = vmatprep.subr.bf16.mxu0 0
        %4065 = vmatpush1.bf16.xpose.msra.mxu0 0
        %4066 = vmatprep.subr.bf16.mxu0 0
        %4067 = vmatpush1.bf16.xpose.msra.mxu0 0
        %4068 = vmatprep.subr.bf16.mxu0 0
        %4069 = vmatpush1.bf16.xpose.msra.mxu0 0
        %4070 = vmatprep.subr.bf16.mxu0 0
        %4071 = vmatpush1.bf16.xpose.msra.mxu0 0
        %4072 = vmatprep.mubr.bf16.mxu0 0
        %4073 = vmatmul.mubr.bf16.gmra.mrb[0].mxu0 %v4032
        %v4074 = vpop.f32.mrb[0].mxu0
        %v4075 = vadd.f32 0.0, %v4074
        %v4076 = vpop.f32.mrb[0].mxu0
        %v4077 = vpop.f32.mrb[0].mxu0
        %v4078 = vadd.f32 0.0, %v4077
        %v4079 = vpop.f32.mrb[0].mxu0
        %4080 = vmatprep.mubr.bf16.mxu0 0
        %4081 = vmatmul.mubr.bf16.gmra.mrb[0].mxu0 %v4035
        %v4082 = vpop.f32.mrb[0].mxu0
        %v4083 = vadd.f32 0.0, %v4082
        %v4084 = vpop.f32.mrb[0].mxu0
        %v4085 = vpop.f32.mrb[0].mxu0
        %v4086 = vadd.f32 0.0, %v4085
        %v4087 = vpop.f32.mrb[0].mxu0
        %4088 = vdwg.mxu0
        %v4090 = vsel %vm2774, %v4012, 0
        %v4093 = vsel %vm2774, %v4024, 0
        %v4096 = vsel %vm2774, %v2820, 0
        %4098 = vmatprep.subr.bf16.mxu0 0
        %4099 = vmatpush1.bf16.xpose.msra.mxu0 %v4096
        %4100 = vmatprep.subr.bf16.mxu0 0
        %4101 = vmatpush1.bf16.xpose.msra.mxu0 0
        %4102 = vmatprep.subr.bf16.mxu0 0
        %4103 = vmatpush1.bf16.xpose.msra.mxu0 0
        %4104 = vmatprep.subr.bf16.mxu0 0
        %4105 = vmatpush1.bf16.xpose.msra.mxu0 0
        %4106 = vmatprep.subr.bf16.mxu0 0
        %4107 = vmatpush1.bf16.xpose.msra.mxu0 0
        %4108 = vmatprep.subr.bf16.mxu0 0
        %4109 = vmatpush1.bf16.xpose.msra.mxu0 0
        %4110 = vmatprep.subr.bf16.mxu0 0
        %4111 = vmatpush1.bf16.xpose.msra.mxu0 0
        %4112 = vmatprep.subr.bf16.mxu0 0
        %4113 = vmatpush1.bf16.xpose.msra.mxu0 0
        %4114 = vmatprep.subr.bf16.mxu0 0
        %4115 = vmatpush1.bf16.xpose.msra.mxu0 0
        %4116 = vmatprep.subr.bf16.mxu0 0
        %4117 = vmatpush1.bf16.xpose.msra.mxu0 0
        %4118 = vmatprep.subr.bf16.mxu0 0
        %4119 = vmatpush1.bf16.xpose.msra.mxu0 0
        %4120 = vmatprep.subr.bf16.mxu0 0
        %4121 = vmatpush1.bf16.xpose.msra.mxu0 0
        %4122 = vmatprep.subr.bf16.mxu0 0
        %4123 = vmatpush1.bf16.xpose.msra.mxu0 0
        %4124 = vmatprep.subr.bf16.mxu0 0
        %4125 = vmatpush1.bf16.xpose.msra.mxu0 0
        %4126 = vmatprep.subr.bf16.mxu0 0
        %4127 = vmatpush1.bf16.xpose.msra.mxu0 0
        %4128 = vmatprep.subr.bf16.mxu0 0
        %4129 = vmatpush1.bf16.xpose.msra.mxu0 0
        %4130 = vmatprep.mubr.bf16.mxu0 0
        %4131 = vmatmul.mubr.bf16.gmra.mrb[0].mxu0 %v4090
        %v4132 = vpop.f32.mrb[0].mxu0
        %v4133 = vadd.f32 0.0, %v4132
        %v4134 = vpop.f32.mrb[0].mxu0
        %v4135 = vpop.f32.mrb[0].mxu0
        %v4136 = vadd.f32 0.0, %v4135
        %v4137 = vpop.f32.mrb[0].mxu0
        %4138 = vmatprep.mubr.bf16.mxu0 0
        %4139 = vmatmul.mubr.bf16.gmra.mrb[0].mxu0 %v4093
        %v4140 = vpop.f32.mrb[0].mxu0
        %v4141 = vadd.f32 0.0, %v4140
        %v4142 = vpop.f32.mrb[0].mxu0
        %v4143 = vpop.f32.mrb[0].mxu0
        %v4144 = vadd.f32 0.0, %v4143
        %v4145 = vpop.f32.mrb[0].mxu0
        %4146 = vdwg.mxu0
        %v4148 = vsel %vm2774, %v4015, 0
        %v4151 = vsel %vm2774, %v4027, 0
        %v4154 = vsel %vm2774, %v2821, 0
        %4156 = vmatprep.subr.bf16.mxu0 0
        %4157 = vmatpush1.bf16.xpose.msra.mxu0 %v4154
        %4158 = vmatprep.subr.bf16.mxu0 0
        %4159 = vmatpush1.bf16.xpose.msra.mxu0 0
        %4160 = vmatprep.subr.bf16.mxu0 0
        %4161 = vmatpush1.bf16.xpose.msra.mxu0 0
        %4162 = vmatprep.subr.bf16.mxu0 0
        %4163 = vmatpush1.bf16.xpose.msra.mxu0 0
        %4164 = vmatprep.subr.bf16.mxu0 0
        %4165 = vmatpush1.bf16.xpose.msra.mxu0 0
        %4166 = vmatprep.subr.bf16.mxu0 0
        %4167 = vmatpush1.bf16.xpose.msra.mxu0 0
        %4168 = vmatprep.subr.bf16.mxu0 0
        %4169 = vmatpush1.bf16.xpose.msra.mxu0 0
        %4170 = vmatprep.subr.bf16.mxu0 0
        %4171 = vmatpush1.bf16.xpose.msra.mxu0 0
        %4172 = vmatprep.subr.bf16.mxu0 0
        %4173 = vmatpush1.bf16.xpose.msra.mxu0 0
        %4174 = vmatprep.subr.bf16.mxu0 0
        %4175 = vmatpush1.bf16.xpose.msra.mxu0 0
        %4176 = vmatprep.subr.bf16.mxu0 0
        %4177 = vmatpush1.bf16.xpose.msra.mxu0 0
        %4178 = vmatprep.subr.bf16.mxu0 0
        %4179 = vmatpush1.bf16.xpose.msra.mxu0 0
        %4180 = vmatprep.subr.bf16.mxu0 0
        %4181 = vmatpush1.bf16.xpose.msra.mxu0 0
        %4182 = vmatprep.subr.bf16.mxu0 0
        %4183 = vmatpush1.bf16.xpose.msra.mxu0 0
        %4184 = vmatprep.subr.bf16.mxu0 0
        %4185 = vmatpush1.bf16.xpose.msra.mxu0 0
        %4186 = vmatprep.subr.bf16.mxu0 0
        %4187 = vmatpush1.bf16.xpose.msra.mxu0 0
        %4188 = vmatprep.mubr.bf16.mxu0 0
        %4189 = vmatmul.mubr.bf16.gmra.mrb[0].mxu0 %v4148
        %v4190 = vpop.f32.mrb[0].mxu0
        %v4191 = vadd.f32 0.0, %v4190
        %v4192 = vpop.f32.mrb[0].mxu0
        %v4193 = vpop.f32.mrb[0].mxu0
        %v4194 = vadd.f32 0.0, %v4193
        %v4195 = vpop.f32.mrb[0].mxu0
        %4196 = vmatprep.mubr.bf16.mxu0 0
        %4197 = vmatmul.mubr.bf16.gmra.mrb[0].mxu0 %v4151
        %v4198 = vpop.f32.mrb[0].mxu0
        %v4199 = vadd.f32 0.0, %v4198
        %v4200 = vpop.f32.mrb[0].mxu0
        %v4201 = vpop.f32.mrb[0].mxu0
        %v4202 = vadd.f32 0.0, %v4201
        %v4203 = vpop.f32.mrb[0].mxu0
        %4204 = vdwg.mxu0
        %v4206 = vsel %vm2774, %v4018, 0
        %v4209 = vsel %vm2774, %v4030, 0
        %v4212 = vsel %vm2774, %v2822, 0
        %4214 = vmatprep.subr.bf16.mxu0 0
        %4215 = vmatpush1.bf16.xpose.msra.mxu0 %v4212
        %4216 = vmatprep.subr.bf16.mxu0 0
        %4217 = vmatpush1.bf16.xpose.msra.mxu0 0
        %4218 = vmatprep.subr.bf16.mxu0 0
        %4219 = vmatpush1.bf16.xpose.msra.mxu0 0
        %4220 = vmatprep.subr.bf16.mxu0 0
        %4221 = vmatpush1.bf16.xpose.msra.mxu0 0
        %4222 = vmatprep.subr.bf16.mxu0 0
        %4223 = vmatpush1.bf16.xpose.msra.mxu0 0
        %4224 = vmatprep.subr.bf16.mxu0 0
        %4225 = vmatpush1.bf16.xpose.msra.mxu0 0
        %4226 = vmatprep.subr.bf16.mxu0 0
        %4227 = vmatpush1.bf16.xpose.msra.mxu0 0
        %4228 = vmatprep.subr.bf16.mxu0 0
        %4229 = vmatpush1.bf16.xpose.msra.mxu0 0
        %4230 = vmatprep.subr.bf16.mxu0 0
        %4231 = vmatpush1.bf16.xpose.msra.mxu0 0
        %4232 = vmatprep.subr.bf16.mxu0 0
        %4233 = vmatpush1.bf16.xpose.msra.mxu0 0
        %4234 = vmatprep.subr.bf16.mxu0 0
        %4235 = vmatpush1.bf16.xpose.msra.mxu0 0
        %4236 = vmatprep.subr.bf16.mxu0 0
        %4237 = vmatpush1.bf16.xpose.msra.mxu0 0
        %4238 = vmatprep.subr.bf16.mxu0 0
        %4239 = vmatpush1.bf16.xpose.msra.mxu0 0
        %4240 = vmatprep.subr.bf16.mxu0 0
        %4241 = vmatpush1.bf16.xpose.msra.mxu0 0
        %4242 = vmatprep.subr.bf16.mxu0 0
        %4243 = vmatpush1.bf16.xpose.msra.mxu0 0
        %4244 = vmatprep.subr.bf16.mxu0 0
        %4245 = vmatpush1.bf16.xpose.msra.mxu0 0
        %4246 = vmatprep.mubr.bf16.mxu0 0
        %4247 = vmatmul.mubr.bf16.gmra.mrb[0].mxu0 %v4206
        %v4248 = vpop.f32.mrb[0].mxu0
        %v4249 = vadd.f32 0.0, %v4248
        %v4250 = vpop.f32.mrb[0].mxu0
        %v4251 = vpop.f32.mrb[0].mxu0
        %v4252 = vadd.f32 0.0, %v4251
        %v4253 = vpop.f32.mrb[0].mxu0
        %4254 = vmatprep.mubr.bf16.mxu0 0
        %4255 = vmatmul.mubr.bf16.gmra.mrb[0].mxu0 %v4209
        %v4256 = vpop.f32.mrb[0].mxu0
        %v4257 = vadd.f32 0.0, %v4256
        %v4258 = vpop.f32.mrb[0].mxu0
        %v4259 = vpop.f32.mrb[0].mxu0
        %v4260 = vadd.f32 0.0, %v4259
        %v4261 = vpop.f32.mrb[0].mxu0
        %4262 = vdwg.mxu0
        %4263 = vxpose.xlu0.b32.start [1/16] %v4075, 128
        %4264 = vxpose.xlu0.b32.cont [2/16] %v4078, 128
        %4265 = vxpose.xlu0.b32.cont [3/16] %v4083, 128
        %4266 = vxpose.xlu0.b32.cont [4/16] %v4086, 128
        %4267 = vxpose.xlu0.b32.cont [5/16] 0.0, 128
        %4268 = vxpose.xlu0.b32.cont [6/16] 0.0, 128
        %4269 = vxpose.xlu0.b32.cont [7/16] 0.0, 128
        %4270 = vxpose.xlu0.b32.cont [8/16] 0.0, 128
        %4271 = vxpose.xlu0.b32.cont [9/16] 0.0, 128
        %4272 = vxpose.xlu0.b32.cont [10/16] 0.0, 128
        %4273 = vxpose.xlu0.b32.cont [11/16] 0.0, 128
        %4274 = vxpose.xlu0.b32.cont [12/16] 0.0, 128
        %4275 = vxpose.xlu0.b32.cont [13/16] 0.0, 128
        %4276 = vxpose.xlu0.b32.cont [14/16] 0.0, 128
        %4277 = vxpose.xlu0.b32.cont [15/16] 0.0, 128
        %4278 = vxpose.xlu0.b32.end [16/16] 0.0, 128
        %v4279 = vpop.trf.xlu0
        %v4280 = vpop.trf.xlu0
        %v4281 = vpop.trf.xlu0
        %v4282 = vpop.trf.xlu0
        %v4283 = vpop.trf.xlu0
        %v4284 = vpop.trf.xlu0
        %v4285 = vpop.trf.xlu0
        %v4286 = vpop.trf.xlu0
        %v4287 = vpop.trf.xlu0
        %v4288 = vpop.trf.xlu0
        %v4289 = vpop.trf.xlu0
        %v4290 = vpop.trf.xlu0
        %v4291 = vpop.trf.xlu0
        %v4292 = vpop.trf.xlu0
        %v4293 = vpop.trf.xlu0
        %v4294 = vpop.trf.xlu0
        %4295 = vxpose.xlu0.b32.start [1/16] %v4133, 128
        %4296 = vxpose.xlu0.b32.cont [2/16] %v4136, 128
        %4297 = vxpose.xlu0.b32.cont [3/16] %v4141, 128
        %4298 = vxpose.xlu0.b32.cont [4/16] %v4144, 128
        %4299 = vxpose.xlu0.b32.cont [5/16] 0.0, 128
        %4300 = vxpose.xlu0.b32.cont [6/16] 0.0, 128
        %4301 = vxpose.xlu0.b32.cont [7/16] 0.0, 128
        %4302 = vxpose.xlu0.b32.cont [8/16] 0.0, 128
        %4303 = vxpose.xlu0.b32.cont [9/16] 0.0, 128
        %4304 = vxpose.xlu0.b32.cont [10/16] 0.0, 128
        %4305 = vxpose.xlu0.b32.cont [11/16] 0.0, 128
        %4306 = vxpose.xlu0.b32.cont [12/16] 0.0, 128
        %4307 = vxpose.xlu0.b32.cont [13/16] 0.0, 128
        %4308 = vxpose.xlu0.b32.cont [14/16] 0.0, 128
        %4309 = vxpose.xlu0.b32.cont [15/16] 0.0, 128
        %4310 = vxpose.xlu0.b32.end [16/16] 0.0, 128
        %v4311 = vpop.trf.xlu0
        %v4312 = vpop.trf.xlu0
        %v4313 = vpop.trf.xlu0
        %v4314 = vpop.trf.xlu0
        %v4315 = vpop.trf.xlu0
        %v4316 = vpop.trf.xlu0
        %v4317 = vpop.trf.xlu0
        %v4318 = vpop.trf.xlu0
        %v4319 = vpop.trf.xlu0
        %v4320 = vpop.trf.xlu0
        %v4321 = vpop.trf.xlu0
        %v4322 = vpop.trf.xlu0
        %v4323 = vpop.trf.xlu0
        %v4324 = vpop.trf.xlu0
        %v4325 = vpop.trf.xlu0
        %v4326 = vpop.trf.xlu0
        %4327 = vxpose.xlu0.b32.start [1/16] %v4191, 128
        %4328 = vxpose.xlu0.b32.cont [2/16] %v4194, 128
        %4329 = vxpose.xlu0.b32.cont [3/16] %v4199, 128
        %4330 = vxpose.xlu0.b32.cont [4/16] %v4202, 128
        %4331 = vxpose.xlu0.b32.cont [5/16] 0.0, 128
        %4332 = vxpose.xlu0.b32.cont [6/16] 0.0, 128
        %4333 = vxpose.xlu0.b32.cont [7/16] 0.0, 128
        %4334 = vxpose.xlu0.b32.cont [8/16] 0.0, 128
        %4335 = vxpose.xlu0.b32.cont [9/16] 0.0, 128
        %4336 = vxpose.xlu0.b32.cont [10/16] 0.0, 128
        %4337 = vxpose.xlu0.b32.cont [11/16] 0.0, 128
        %4338 = vxpose.xlu0.b32.cont [12/16] 0.0, 128
        %4339 = vxpose.xlu0.b32.cont [13/16] 0.0, 128
        %4340 = vxpose.xlu0.b32.cont [14/16] 0.0, 128
        %4341 = vxpose.xlu0.b32.cont [15/16] 0.0, 128
        %4342 = vxpose.xlu0.b32.end [16/16] 0.0, 128
        %v4343 = vpop.trf.xlu0
        %v4344 = vpop.trf.xlu0
        %v4345 = vpop.trf.xlu0
        %v4346 = vpop.trf.xlu0
        %v4347 = vpop.trf.xlu0
        %v4348 = vpop.trf.xlu0
        %v4349 = vpop.trf.xlu0
        %v4350 = vpop.trf.xlu0
        %v4351 = vpop.trf.xlu0
        %v4352 = vpop.trf.xlu0
        %v4353 = vpop.trf.xlu0
        %v4354 = vpop.trf.xlu0
        %v4355 = vpop.trf.xlu0
        %v4356 = vpop.trf.xlu0
        %v4357 = vpop.trf.xlu0
        %v4358 = vpop.trf.xlu0
        %4359 = vxpose.xlu0.b32.start [1/16] %v4249, 128
        %4360 = vxpose.xlu0.b32.cont [2/16] %v4252, 128
        %4361 = vxpose.xlu0.b32.cont [3/16] %v4257, 128
        %4362 = vxpose.xlu0.b32.cont [4/16] %v4260, 128
        %4363 = vxpose.xlu0.b32.cont [5/16] 0.0, 128
        %4364 = vxpose.xlu0.b32.cont [6/16] 0.0, 128
        %4365 = vxpose.xlu0.b32.cont [7/16] 0.0, 128
        %4366 = vxpose.xlu0.b32.cont [8/16] 0.0, 128
        %4367 = vxpose.xlu0.b32.cont [9/16] 0.0, 128
        %4368 = vxpose.xlu0.b32.cont [10/16] 0.0, 128
        %4369 = vxpose.xlu0.b32.cont [11/16] 0.0, 128
        %4370 = vxpose.xlu0.b32.cont [12/16] 0.0, 128
        %4371 = vxpose.xlu0.b32.cont [13/16] 0.0, 128
        %4372 = vxpose.xlu0.b32.cont [14/16] 0.0, 128
        %4373 = vxpose.xlu0.b32.cont [15/16] 0.0, 128
        %4374 = vxpose.xlu0.b32.end [16/16] 0.0, 128
        %v4375 = vpop.trf.xlu0
        %v4376 = vpop.trf.xlu0
        %v4377 = vpop.trf.xlu0
        %v4378 = vpop.trf.xlu0
        %v4379 = vpop.trf.xlu0
        %v4380 = vpop.trf.xlu0
        %v4381 = vpop.trf.xlu0
        %v4382 = vpop.trf.xlu0
        %v4383 = vpop.trf.xlu0
        %v4384 = vpop.trf.xlu0
        %v4385 = vpop.trf.xlu0
        %v4386 = vpop.trf.xlu0
        %v4387 = vpop.trf.xlu0
        %v4388 = vpop.trf.xlu0
        %v4389 = vpop.trf.xlu0
        %v4390 = vpop.trf.xlu0
        %v4391 = vcombine.low %v4279, %v4343
        %v4392 = vcombine.high %v4279, %v4343
        %v4394 = vunpack.c.l.s4 1983009808
        %v4395 = vunpack.c.0.s8 %v4394
        %v4396 = vlaneseq
        %v4397 = vshrl.u32 %v4396, 7
        %v4398 = vsub.s32 %v4395, %v4397
        %v4399 = vrot.slane %v4391, %v4398
        %v4401 = vunpack.c.l.s4 1983009808
        %v4402 = vunpack.c.0.s8 %v4401
        %v4403 = vlaneseq
        %v4404 = vshrl.u32 %v4403, 7
        %v4405 = vsub.s32 %v4402, %v4404
        %v4406 = vrot.slane %v4392, %v4405
        %v4407 = vcombine.low %v4311, %v4375
        %v4408 = vcombine.high %v4311, %v4375
        %v4410 = vunpack.c.l.s4 1983009808
        %v4411 = vunpack.c.0.s8 %v4410
        %v4412 = vlaneseq
        %v4413 = vshrl.u32 %v4412, 7
        %v4414 = vsub.s32 %v4411, %v4413
        %v4415 = vrot.slane %v4407, %v4414
        %v4417 = vunpack.c.l.s4 1983009808
        %v4418 = vunpack.c.0.s8 %v4417
        %v4419 = vlaneseq
        %v4420 = vshrl.u32 %v4419, 7
        %v4421 = vsub.s32 %v4418, %v4420
        %v4422 = vrot.slane %v4408, %v4421
        %v4423 = vcombine.low %v4399, %v4415
        %v4424 = vcombine.high %v4399, %v4415
        %v4426 = vunpack.c.l.s4 1934713408
        %v4427 = vunpack.c.0.s8 %v4426
        %v4428 = vlaneseq
        %v4429 = vshrl.u32 %v4428, 7
        %v4430 = vsub.s32 %v4427, %v4429
        %v4431 = vrot.slane %v4423, %v4430
        %v4433 = vunpack.c.l.s4 1934713408
        %v4434 = vunpack.c.0.s8 %v4433
        %v4435 = vlaneseq
        %v4436 = vshrl.u32 %v4435, 7
        %v4437 = vsub.s32 %v4434, %v4436
        %v4438 = vrot.slane %v4424, %v4437
        %v4439 = vcombine.low %v4406, %v4422
        %v4440 = vcombine.high %v4406, %v4422
        %v4442 = vunpack.c.l.s4 1934713408
        %v4443 = vunpack.c.0.s8 %v4442
        %v4444 = vlaneseq
        %v4445 = vshrl.u32 %v4444, 7
        %v4446 = vsub.s32 %v4443, %v4445
        %v4447 = vrot.slane %v4439, %v4446
        %v4449 = vunpack.c.l.s4 1934713408
        %v4450 = vunpack.c.0.s8 %v4449
        %v4451 = vlaneseq
        %v4452 = vshrl.u32 %v4451, 7
        %v4453 = vsub.s32 %v4450, %v4452
        %v4454 = vrot.slane %v4440, %v4453
        %v4455 = vcombine.high %v4431, 0.0
        %v4456 = vcombine.high %v4438, 0.0
        %v4457 = vcombine.high %v4447, 0.0
        %v4458 = vcombine.high %v4454, 0.0
        %v4459 = vcombine.low %v4431, %v4438
        %v4461 = vunpack.c.l.s4 1983009808
        %v4462 = vunpack.c.0.s8 %v4461
        %v4463 = vlaneseq
        %v4464 = vshrl.u32 %v4463, 7
        %v4465 = vsub.s32 %v4462, %v4464
        %v4466 = vrot.slane %v4459, %v4465
        %v4467 = vcombine.low %v4455, %v4456
        %v4469 = vunpack.c.l.s4 1983009808
        %v4470 = vunpack.c.0.s8 %v4469
        %v4471 = vlaneseq
        %v4472 = vshrl.u32 %v4471, 7
        %v4473 = vsub.s32 %v4470, %v4472
        %v4474 = vrot.slane %v4467, %v4473
        %v4475 = vcombine.low %v4447, %v4454
        %v4477 = vunpack.c.l.s4 1983009808
        %v4478 = vunpack.c.0.s8 %v4477
        %v4479 = vlaneseq
        %v4480 = vshrl.u32 %v4479, 7
        %v4481 = vsub.s32 %v4478, %v4480
        %v4482 = vrot.slane %v4475, %v4481
        %v4483 = vcombine.low %v4457, %v4458
        %v4485 = vunpack.c.l.s4 1983009808
        %v4486 = vunpack.c.0.s8 %v4485
        %v4487 = vlaneseq
        %v4488 = vshrl.u32 %v4487, 7
        %v4489 = vsub.s32 %v4486, %v4488
        %v4490 = vrot.slane %v4483, %v4489
        %v4491 = vcombine.low %v4466, %v4474
        %v4492 = vcombine.high %v4466, %v4474
        %v4494 = vunpack.c.l.s4 1934713408
        %v4495 = vunpack.c.0.s8 %v4494
        %v4496 = vlaneseq
        %v4497 = vshrl.u32 %v4496, 7
        %v4498 = vsub.s32 %v4495, %v4497
        %v4499 = vrot.slane %v4491, %v4498
        %v4501 = vunpack.c.l.s4 1934713408
        %v4502 = vunpack.c.0.s8 %v4501
        %v4503 = vlaneseq
        %v4504 = vshrl.u32 %v4503, 7
        %v4505 = vsub.s32 %v4502, %v4504
        %v4506 = vrot.slane %v4492, %v4505
        %v4507 = vcombine.low %v4482, %v4490
        %v4508 = vcombine.high %v4482, %v4490
        %v4510 = vunpack.c.l.s4 1934713408
        %v4511 = vunpack.c.0.s8 %v4510
        %v4512 = vlaneseq
        %v4513 = vshrl.u32 %v4512, 7
        %v4514 = vsub.s32 %v4511, %v4513
        %v4515 = vrot.slane %v4507, %v4514
        %v4517 = vunpack.c.l.s4 1934713408
        %v4518 = vunpack.c.0.s8 %v4517
        %v4519 = vlaneseq
        %v4520 = vshrl.u32 %v4519, 7
        %v4521 = vsub.s32 %v4518, %v4520
        %v4522 = vrot.slane %v4508, %v4521
        %v4523 = vcombine.low %v4499, %v4515
        %v4524 = vcombine.high %v4499, %v4515
        %v4525 = vcombine.low %v4506, %v4522
        %v4526 = vcombine.high %v4506, %v4522
        %4528 = vrot.lane.b32.xlu0 %v4524, 32
        %v4529 = vpop.permute.xlu0 %4528
        %4532 = vrot.lane.b32.xlu0 %v4525, 64
        %v4533 = vpop.permute.xlu0 %4532
        %4536 = vrot.lane.b32.xlu0 %v4526, 96
        %v4537 = vpop.permute.xlu0 %4536
        %v4539 = vsel %vm2601, %v4523, %v4529
        %vm4540 = vcmask 523264
        %v4541 = vsel %vm4540, %v4539, %v4533
        %vm4542 = vcmask 785408
        %v4543 = vsel %vm4542, %v4541, %v4537
        %v4544 = vpack.c.bf16 %v4543, %v4543
        %v4545 = vld [vmem:[%s671] sm:$0xf]
        %v4546 = vld [vmem:[%s671 + $0x4] sm:$0xf]
        %v4547 = vld [vmem:[%s671 + $0x8] sm:$0xf]
        %v4548 = vld [vmem:[%s671 + $0xc] sm:$0xf]
        %v4549 = vld [vmem:[%s671 + $0x10] sm:$0xf]
        %v4550 = vld [vmem:[%s671 + $0x14] sm:$0xf]
        %v4551 = vld [vmem:[%s671 + $0x18] sm:$0xf]
        %v4552 = vld [vmem:[%s671 + $0x1c] sm:$0xf]
        %v4553 = vld [vmem:[%s671 + $0x20] sm:$0xf]
        %v4554 = vld [vmem:[%s671 + $0x24] sm:$0xf]
        %v4555 = vld [vmem:[%s671 + $0x28] sm:$0xf]
        %v4556 = vld [vmem:[%s671 + $0x2c] sm:$0xf]
        %v4557 = vld [vmem:[%s671 + $0x30] sm:$0xf]
        %v4558 = vld [vmem:[%s671 + $0x34] sm:$0xf]
        %v4559 = vld [vmem:[%s671 + $0x38] sm:$0xf]
        %v4560 = vld [vmem:[%s671 + $0x3c] sm:$0xf]
        %v4561 = vld [vmem:[%s679] sm:$0x1]
        %v4563 = vlaneseq
        %v4564 = vshrl.u32 %v4563, 7
        %v4565 = vsub.s32 0, %v4564
        %v4566 = vrot.slane %v4561, %v4565
        %v4584 = vunpack.c.l.b16 %v4545
        %v4585 = vunpack.c.l.b16 %v4546
        %v4586 = vunpack.c.l.b16 %v4547
        %v4587 = vunpack.c.l.b16 %v4548
        %v4588 = vunpack.c.l.b16 %v4549
        %v4589 = vunpack.c.l.b16 %v4550
        %v4590 = vunpack.c.l.b16 %v4551
        %v4591 = vunpack.c.l.b16 %v4552
        %v4592 = vunpack.c.l.b16 %v4553
        %v4593 = vunpack.c.l.b16 %v4554
        %v4594 = vunpack.c.l.b16 %v4555
        %v4595 = vunpack.c.l.b16 %v4556
        %v4596 = vunpack.c.l.b16 %v4557
        %v4597 = vunpack.c.l.b16 %v4558
        %v4598 = vunpack.c.l.b16 %v4559
        %v4599 = vunpack.c.l.b16 %v4560
        %v4600 = vpack.c.b16 %v4585, %v4584
        %v4601 = vpack.c.b16 %v4587, %v4586
        %v4602 = vpack.c.b16 %v4589, %v4588
        %v4603 = vpack.c.b16 %v4591, %v4590
        %v4604 = vpack.c.b16 %v4593, %v4592
        %v4605 = vpack.c.b16 %v4595, %v4594
        %v4606 = vpack.c.b16 %v4597, %v4596
        %v4607 = vpack.c.b16 %v4599, %v4598
        %4616 = vmatprep.subr.bf16.mxu0 0
        %4617 = vmatpush1.bf16.msra.mxu0 %v4600
        %4618 = vmatprep.subr.bf16.mxu0 0
        %4619 = vmatpush1.bf16.msra.mxu0 %v4601
        %4620 = vmatprep.subr.bf16.mxu0 0
        %4621 = vmatpush1.bf16.msra.mxu0 %v4602
        %4622 = vmatprep.subr.bf16.mxu0 0
        %4623 = vmatpush1.bf16.msra.mxu0 %v4603
        %4624 = vmatprep.subr.bf16.mxu0 0
        %4625 = vmatpush1.bf16.msra.mxu0 %v4604
        %4626 = vmatprep.subr.bf16.mxu0 0
        %4627 = vmatpush1.bf16.msra.mxu0 %v4605
        %4628 = vmatprep.subr.bf16.mxu0 0
        %4629 = vmatpush1.bf16.msra.mxu0 %v4606
        %4630 = vmatprep.subr.bf16.mxu0 0
        %4631 = vmatpush1.bf16.msra.mxu0 %v4607
        %4632 = vmatprep.subr.bf16.mxu0 0
        %4633 = vmatpush1.bf16.msra.mxu0 0
        %4634 = vmatprep.subr.bf16.mxu0 0
        %4635 = vmatpush1.bf16.msra.mxu0 0
        %4636 = vmatprep.subr.bf16.mxu0 0
        %4637 = vmatpush1.bf16.msra.mxu0 0
        %4638 = vmatprep.subr.bf16.mxu0 0
        %4639 = vmatpush1.bf16.msra.mxu0 0
        %4640 = vmatprep.subr.bf16.mxu0 0
        %4641 = vmatpush1.bf16.msra.mxu0 0
        %4642 = vmatprep.subr.bf16.mxu0 0
        %4643 = vmatpush1.bf16.msra.mxu0 0
        %4644 = vmatprep.subr.bf16.mxu0 0
        %4645 = vmatpush1.bf16.msra.mxu0 0
        %4646 = vmatprep.subr.bf16.mxu0 0
        %4647 = vmatpush1.bf16.msra.mxu0 0
        %4648 = vmatprep.mubr.bf16.mxu0 0
        %4649 = vmatmul.mubr.bf16.gmra.mrb[0].mxu0 %v4544
        %v4650 = vpop.f32.mrb[0].mxu0
        %v4651 = vadd.f32 %v4566, %v4650
        %v4652 = vpop.f32.mrb[0].mxu0
        %v4653 = vpop.f32.mrb[0].mxu0
        %v4654 = vpop.f32.mrb[0].mxu0
        %4655 = vdwg.mxu0
        %v4656 = vadd.f32 %v821, %v4651
        %v4657 = vld [vmem:[%s797] sm:$0x1]
        %v4658 = vld [vmem:[%s800] sm:$0x1]
        %4659 = vadd.xlane.f32.xlu0 %v4656
        %v4660 = vpop.xlane.xlu0 %4659
        %v4661 = vrcp.pop 128.0
        %v4662 = vmul.f32 %v4660, %v4661
        %v4663 = vsub.f32 %v4656, %v4662
        %v4664 = vmul.f32 %v4663, %v4663
        %4665 = vadd.xlane.f32.xlu0 %v4664
        %v4666 = vpop.xlane.xlu0 %4665
        %v4667 = vmul.f32 %v4666, %v4661
        %v4668 = vadd.f32 %v4667, 1e-05
        %v4669 = vrsqrt.pop %v4668
        %v4670 = vmul.f32 %v4663, %v4669
        %v4672 = vlaneseq
        %v4673 = vshrl.u32 %v4672, 7
        %v4674 = vsub.s32 0, %v4673
        %v4675 = vrot.slane %v4657, %v4674
        %v4677 = vmul.f32 %v4670, %v4675
        %v4679 = vlaneseq
        %v4680 = vshrl.u32 %v4679, 7
        %v4681 = vsub.s32 0, %v4680
        %v4682 = vrot.slane %v4658, %v4681
        %v4684 = vadd.f32 %v4677, %v4682
        %v4685 = vpack.c.bf16 %v4684, %v4684
        %v4686 = vld [vmem:[%s688] sm:$0xff]
        %v4687 = vld [vmem:[%s688 + $0x8] sm:$0xff]
        %v4688 = vld [vmem:[%s688 + $0x10] sm:$0xff]
        %v4689 = vld [vmem:[%s688 + $0x18] sm:$0xff]
        %v4690 = vld [vmem:[%s688 + $0x20] sm:$0xff]
        %v4691 = vld [vmem:[%s688 + $0x28] sm:$0xff]
        %v4692 = vld [vmem:[%s688 + $0x30] sm:$0xff]
        %v4693 = vld [vmem:[%s688 + $0x38] sm:$0xff]
        %v4694 = vld [vmem:[%s688 + $0x40] sm:$0xff]
        %v4695 = vld [vmem:[%s688 + $0x48] sm:$0xff]
        %v4696 = vld [vmem:[%s688 + $0x50] sm:$0xff]
        %v4697 = vld [vmem:[%s688 + $0x58] sm:$0xff]
        %v4698 = vld [vmem:[%s688 + $0x60] sm:$0xff]
        %v4699 = vld [vmem:[%s688 + $0x68] sm:$0xff]
        %v4700 = vld [vmem:[%s688 + $0x70] sm:$0xff]
        %v4701 = vld [vmem:[%s688 + $0x78] sm:$0xff]
        %v4702 = vld [vmem:[%s688 + $0x80] sm:$0xff]
        %v4703 = vld [vmem:[%s688 + $0x88] sm:$0xff]
        %v4704 = vld [vmem:[%s688 + $0x90] sm:$0xff]
        %v4705 = vld [vmem:[%s688 + $0x98] sm:$0xff]
        %v4706 = vld [vmem:[%s688 + $0xa0] sm:$0xff]
        %v4707 = vld [vmem:[%s688 + $0xa8] sm:$0xff]
        %v4708 = vld [vmem:[%s688 + $0xb0] sm:$0xff]
        %v4709 = vld [vmem:[%s688 + $0xb8] sm:$0xff]
        %v4710 = vld [vmem:[%s688 + $0xc0] sm:$0xff]
        %v4711 = vld [vmem:[%s688 + $0xc8] sm:$0xff]
        %v4712 = vld [vmem:[%s688 + $0xd0] sm:$0xff]
        %v4713 = vld [vmem:[%s688 + $0xd8] sm:$0xff]
        %v4714 = vld [vmem:[%s688 + $0xe0] sm:$0xff]
        %v4715 = vld [vmem:[%s688 + $0xe8] sm:$0xff]
        %v4716 = vld [vmem:[%s688 + $0xf0] sm:$0xff]
        %v4717 = vld [vmem:[%s688 + $0xf8] sm:$0xff]
        %v4718 = vld [vmem:[%s804] sm:$0xf]
        %v4720 = vlaneseq
        %v4721 = vshrl.u32 %v4720, 7
        %v4722 = vsub.s32 0, %v4721
        %v4723 = vrot.slane %v4718, %v4722
        %v4724 = vlaneseq
        %v4725 = vshrl.u32 %v4724, 7
        %v4726 = vsub.s32 1, %v4725
        %v4727 = vrot.slane %v4718, %v4726
        %v4728 = vlaneseq
        %v4729 = vshrl.u32 %v4728, 7
        %v4730 = vsub.s32 2, %v4729
        %v4731 = vrot.slane %v4718, %v4730
        %v4732 = vlaneseq
        %v4733 = vshrl.u32 %v4732, 7
        %v4734 = vsub.s32 3, %v4733
        %v4735 = vrot.slane %v4718, %v4734
        %v4772 = vunpack.c.l.b16 %v4686
        %v4773 = vunpack.c.h.b16 %v4686
        %v4774 = vunpack.c.l.b16 %v4687
        %v4775 = vunpack.c.h.b16 %v4687
        %v4776 = vunpack.c.l.b16 %v4688
        %v4777 = vunpack.c.h.b16 %v4688
        %v4778 = vunpack.c.l.b16 %v4689
        %v4779 = vunpack.c.h.b16 %v4689
        %v4780 = vunpack.c.l.b16 %v4690
        %v4781 = vunpack.c.h.b16 %v4690
        %v4782 = vunpack.c.l.b16 %v4691
        %v4783 = vunpack.c.h.b16 %v4691
        %v4784 = vunpack.c.l.b16 %v4692
        %v4785 = vunpack.c.h.b16 %v4692
        %v4786 = vunpack.c.l.b16 %v4693
        %v4787 = vunpack.c.h.b16 %v4693
        %v4788 = vunpack.c.l.b16 %v4694
        %v4789 = vunpack.c.h.b16 %v4694
        %v4790 = vunpack.c.l.b16 %v4695
        %v4791 = vunpack.c.h.b16 %v4695
        %v4792 = vunpack.c.l.b16 %v4696
        %v4793 = vunpack.c.h.b16 %v4696
        %v4794 = vunpack.c.l.b16 %v4697
        %v4795 = vunpack.c.h.b16 %v4697
        %v4796 = vunpack.c.l.b16 %v4698
        %v4797 = vunpack.c.h.b16 %v4698
        %v4798 = vunpack.c.l.b16 %v4699
        %v4799 = vunpack.c.h.b16 %v4699
        %v4800 = vunpack.c.l.b16 %v4700
        %v4801 = vunpack.c.h.b16 %v4700
        %v4802 = vunpack.c.l.b16 %v4701
        %v4803 = vunpack.c.h.b16 %v4701
        %v4804 = vunpack.c.l.b16 %v4702
        %v4805 = vunpack.c.h.b16 %v4702
        %v4806 = vunpack.c.l.b16 %v4703
        %v4807 = vunpack.c.h.b16 %v4703
        %v4808 = vunpack.c.l.b16 %v4704
        %v4809 = vunpack.c.h.b16 %v4704
        %v4810 = vunpack.c.l.b16 %v4705
        %v4811 = vunpack.c.h.b16 %v4705
        %v4812 = vunpack.c.l.b16 %v4706
        %v4813 = vunpack.c.h.b16 %v4706
        %v4814 = vunpack.c.l.b16 %v4707
        %v4815 = vunpack.c.h.b16 %v4707
        %v4816 = vunpack.c.l.b16 %v4708
        %v4817 = vunpack.c.h.b16 %v4708
        %v4818 = vunpack.c.l.b16 %v4709
        %v4819 = vunpack.c.h.b16 %v4709
        %v4820 = vunpack.c.l.b16 %v4710
        %v4821 = vunpack.c.h.b16 %v4710
        %v4822 = vunpack.c.l.b16 %v4711
        %v4823 = vunpack.c.h.b16 %v4711
        %v4824 = vunpack.c.l.b16 %v4712
        %v4825 = vunpack.c.h.b16 %v4712
        %v4826 = vunpack.c.l.b16 %v4713
        %v4827 = vunpack.c.h.b16 %v4713
        %v4828 = vunpack.c.l.b16 %v4714
        %v4829 = vunpack.c.h.b16 %v4714
        %v4830 = vunpack.c.l.b16 %v4715
        %v4831 = vunpack.c.h.b16 %v4715
        %v4832 = vunpack.c.l.b16 %v4716
        %v4833 = vunpack.c.h.b16 %v4716
        %v4834 = vunpack.c.l.b16 %v4717
        %v4835 = vunpack.c.h.b16 %v4717
        %v4836 = vpack.c.b16 %v4776, %v4772
        %v4837 = vpack.c.b16 %v4777, %v4773
        %v4838 = vpack.c.b16 %v4778, %v4774
        %v4839 = vpack.c.b16 %v4779, %v4775
        %v4840 = vpack.c.b16 %v4784, %v4780
        %v4841 = vpack.c.b16 %v4785, %v4781
        %v4842 = vpack.c.b16 %v4786, %v4782
        %v4843 = vpack.c.b16 %v4787, %v4783
        %v4844 = vpack.c.b16 %v4792, %v4788
        %v4845 = vpack.c.b16 %v4793, %v4789
        %v4846 = vpack.c.b16 %v4794, %v4790
        %v4847 = vpack.c.b16 %v4795, %v4791
        %v4848 = vpack.c.b16 %v4800, %v4796
        %v4849 = vpack.c.b16 %v4801, %v4797
        %v4850 = vpack.c.b16 %v4802, %v4798
        %v4851 = vpack.c.b16 %v4803, %v4799
        %v4852 = vpack.c.b16 %v4808, %v4804
        %v4853 = vpack.c.b16 %v4809, %v4805
        %v4854 = vpack.c.b16 %v4810, %v4806
        %v4855 = vpack.c.b16 %v4811, %v4807
        %v4856 = vpack.c.b16 %v4816, %v4812
        %v4857 = vpack.c.b16 %v4817, %v4813
        %v4858 = vpack.c.b16 %v4818, %v4814
        %v4859 = vpack.c.b16 %v4819, %v4815
        %v4860 = vpack.c.b16 %v4824, %v4820
        %v4861 = vpack.c.b16 %v4825, %v4821
        %v4862 = vpack.c.b16 %v4826, %v4822
        %v4863 = vpack.c.b16 %v4827, %v4823
        %v4864 = vpack.c.b16 %v4832, %v4828
        %v4865 = vpack.c.b16 %v4833, %v4829
        %v4866 = vpack.c.b16 %v4834, %v4830
        %v4867 = vpack.c.b16 %v4835, %v4831
        %4900 = vmatprep.subr.bf16.mxu0 %v4837
        %4901 = vmatpush1.bf16.msra.mxu0 %v4836
        %4902 = vmatprep.subr.bf16.mxu0 %v4841
        %4903 = vmatpush1.bf16.msra.mxu0 %v4840
        %4904 = vmatprep.subr.bf16.mxu0 %v4845
        %4905 = vmatpush1.bf16.msra.mxu0 %v4844
        %4906 = vmatprep.subr.bf16.mxu0 %v4849
        %4907 = vmatpush1.bf16.msra.mxu0 %v4848
        %4908 = vmatprep.subr.bf16.mxu0 %v4853
        %4909 = vmatpush1.bf16.msra.mxu0 %v4852
        %4910 = vmatprep.subr.bf16.mxu0 %v4857
        %4911 = vmatpush1.bf16.msra.mxu0 %v4856
        %4912 = vmatprep.subr.bf16.mxu0 %v4861
        %4913 = vmatpush1.bf16.msra.mxu0 %v4860
        %4914 = vmatprep.subr.bf16.mxu0 %v4865
        %4915 = vmatpush1.bf16.msra.mxu0 %v4864
        %4916 = vmatprep.subr.bf16.mxu0 0
        %4917 = vmatpush1.bf16.msra.mxu0 0
        %4918 = vmatprep.subr.bf16.mxu0 0
        %4919 = vmatpush1.bf16.msra.mxu0 0
        %4920 = vmatprep.subr.bf16.mxu0 0
        %4921 = vmatpush1.bf16.msra.mxu0 0
        %4922 = vmatprep.subr.bf16.mxu0 0
        %4923 = vmatpush1.bf16.msra.mxu0 0
        %4924 = vmatprep.subr.bf16.mxu0 0
        %4925 = vmatpush1.bf16.msra.mxu0 0
        %4926 = vmatprep.subr.bf16.mxu0 0
        %4927 = vmatpush1.bf16.msra.mxu0 0
        %4928 = vmatprep.subr.bf16.mxu0 0
        %4929 = vmatpush1.bf16.msra.mxu0 0
        %4930 = vmatprep.subr.bf16.mxu0 0
        %4931 = vmatpush1.bf16.msra.mxu0 0
        %4932 = vmatprep.mubr.bf16.mxu0 0
        %4933 = vmatmul.mubr.bf16.gmra.mrb[0].mxu0 %v4685
        %v4934 = vpop.f32.mrb[0].mxu0
        %v4935 = vadd.f32 %v4723, %v4934
        %v4936 = vpop.f32.mrb[0].mxu0
        %v4937 = vadd.f32 %v4727, %v4936
        %v4938 = vpop.f32.mrb[0].mxu0
        %v4939 = vpop.f32.mrb[0].mxu0
        %4940 = vdwg.mxu0
        %4941 = vmatprep.subr.bf16.mxu0 %v4839
        %4942 = vmatpush1.bf16.msra.mxu0 %v4838
        %4943 = vmatprep.subr.bf16.mxu0 %v4843
        %4944 = vmatpush1.bf16.msra.mxu0 %v4842
        %4945 = vmatprep.subr.bf16.mxu0 %v4847
        %4946 = vmatpush1.bf16.msra.mxu0 %v4846
        %4947 = vmatprep.subr.bf16.mxu0 %v4851
        %4948 = vmatpush1.bf16.msra.mxu0 %v4850
        %4949 = vmatprep.subr.bf16.mxu0 %v4855
        %4950 = vmatpush1.bf16.msra.mxu0 %v4854
        %4951 = vmatprep.subr.bf16.mxu0 %v4859
        %4952 = vmatpush1.bf16.msra.mxu0 %v4858
        %4953 = vmatprep.subr.bf16.mxu0 %v4863
        %4954 = vmatpush1.bf16.msra.mxu0 %v4862
        %4955 = vmatprep.subr.bf16.mxu0 %v4867
        %4956 = vmatpush1.bf16.msra.mxu0 %v4866
        %4957 = vmatprep.subr.bf16.mxu0 0
        %4958 = vmatpush1.bf16.msra.mxu0 0
        %4959 = vmatprep.subr.bf16.mxu0 0
        %4960 = vmatpush1.bf16.msra.mxu0 0
        %4961 = vmatprep.subr.bf16.mxu0 0
        %4962 = vmatpush1.bf16.msra.mxu0 0
        %4963 = vmatprep.subr.bf16.mxu0 0
        %4964 = vmatpush1.bf16.msra.mxu0 0
        %4965 = vmatprep.subr.bf16.mxu0 0
        %4966 = vmatpush1.bf16.msra.mxu0 0
        %4967 = vmatprep.subr.bf16.mxu0 0
        %4968 = vmatpush1.bf16.msra.mxu0 0
        %4969 = vmatprep.subr.bf16.mxu0 0
        %4970 = vmatpush1.bf16.msra.mxu0 0
        %4971 = vmatprep.subr.bf16.mxu0 0
        %4972 = vmatpush1.bf16.msra.mxu0 0
        %4973 = vmatprep.mubr.bf16.mxu0 0
        %4974 = vmatmul.mubr.bf16.gmra.mrb[0].mxu0 %v4685
        %v4975 = vpop.f32.mrb[0].mxu0
        %v4976 = vadd.f32 %v4731, %v4975
        %v4977 = vpop.f32.mrb[0].mxu0
        %v4978 = vadd.f32 %v4735, %v4977
        %v4979 = vpop.f32.mrb[0].mxu0
        %v4980 = vpop.f32.mrb[0].mxu0
        %4981 = vdwg.mxu0
        %v4982 = vmul.f32 %v4935, 0.5
        %v4983 = vmul.f32 %v4937, 0.5
        %v4984 = vmul.f32 %v4976, 0.5
        %v4985 = vmul.f32 %v4978, 0.5
        %v4986 = vmul.f32 %v4935, 0.70710677
        %v4987 = vmul.f32 %v4937, 0.70710677
        %v4988 = vmul.f32 %v4976, 0.70710677
        %v4989 = vmul.f32 %v4978, 0.70710677
        %v4990 = verf.f32.pop %v4986
        %v4991 = verf.f32.pop %v4987
        %v4992 = verf.f32.pop %v4988
        %v4993 = verf.f32.pop %v4989
        %v4994 = vadd.f32 %v4990, 1.0
        %v4995 = vadd.f32 %v4991, 1.0
        %v4996 = vadd.f32 %v4992, 1.0
        %v4997 = vadd.f32 %v4993, 1.0
        %v4998 = vmul.f32 %v4982, %v4994
        %v4999 = vmul.f32 %v4983, %v4995
        %v5000 = vmul.f32 %v4984, %v4996
        %v5001 = vmul.f32 %v4985, %v4997
        %v5002 = vpack.c.bf16 %v4998, %v4998
        %v5003 = vpack.c.bf16 %v4999, %v4999
        %v5004 = vpack.c.bf16 %v5000, %v5000
        %v5005 = vpack.c.bf16 %v5001, %v5001
        %v5006 = vld [vmem:[%s697] sm:$0xf]
        %v5007 = vld [vmem:[%s697 + $0x4] sm:$0xf]
        %v5008 = vld [vmem:[%s697 + $0x8] sm:$0xf]
        %v5009 = vld [vmem:[%s697 + $0xc] sm:$0xf]
        %v5010 = vld [vmem:[%s697 + $0x10] sm:$0xf]
        %v5011 = vld [vmem:[%s697 + $0x14] sm:$0xf]
        %v5012 = vld [vmem:[%s697 + $0x18] sm:$0xf]
        %v5013 = vld [vmem:[%s697 + $0x1c] sm:$0xf]
        %v5014 = vld [vmem:[%s697 + $0x20] sm:$0xf]
        %v5015 = vld [vmem:[%s697 + $0x24] sm:$0xf]
        %v5016 = vld [vmem:[%s697 + $0x28] sm:$0xf]
        %v5017 = vld [vmem:[%s697 + $0x2c] sm:$0xf]
        %v5018 = vld [vmem:[%s697 + $0x30] sm:$0xf]
        %v5019 = vld [vmem:[%s697 + $0x34] sm:$0xf]
        %v5020 = vld [vmem:[%s697 + $0x38] sm:$0xf]
        %v5021 = vld [vmem:[%s697 + $0x3c] sm:$0xf]
        %v5022 = vld [vmem:[%s697 + $0x40] sm:$0xf]
        %v5023 = vld [vmem:[%s697 + $0x44] sm:$0xf]
        %v5024 = vld [vmem:[%s697 + $0x48] sm:$0xf]
        %v5025 = vld [vmem:[%s697 + $0x4c] sm:$0xf]
        %v5026 = vld [vmem:[%s697 + $0x50] sm:$0xf]
        %v5027 = vld [vmem:[%s697 + $0x54] sm:$0xf]
        %v5028 = vld [vmem:[%s697 + $0x58] sm:$0xf]
        %v5029 = vld [vmem:[%s697 + $0x5c] sm:$0xf]
        %v5030 = vld [vmem:[%s697 + $0x60] sm:$0xf]
        %v5031 = vld [vmem:[%s697 + $0x64] sm:$0xf]
        %v5032 = vld [vmem:[%s697 + $0x68] sm:$0xf]
        %v5033 = vld [vmem:[%s697 + $0x6c] sm:$0xf]
        %v5034 = vld [vmem:[%s697 + $0x70] sm:$0xf]
        %v5035 = vld [vmem:[%s697 + $0x74] sm:$0xf]
        %v5036 = vld [vmem:[%s697 + $0x78] sm:$0xf]
        %v5037 = vld [vmem:[%s697 + $0x7c] sm:$0xf]
        %v5038 = vld [vmem:[%s697 + $0x80] sm:$0xf]
        %v5039 = vld [vmem:[%s697 + $0x84] sm:$0xf]
        %v5040 = vld [vmem:[%s697 + $0x88] sm:$0xf]
        %v5041 = vld [vmem:[%s697 + $0x8c] sm:$0xf]
        %v5042 = vld [vmem:[%s697 + $0x90] sm:$0xf]
        %v5043 = vld [vmem:[%s697 + $0x94] sm:$0xf]
        %v5044 = vld [vmem:[%s697 + $0x98] sm:$0xf]
        %v5045 = vld [vmem:[%s697 + $0x9c] sm:$0xf]
        %v5046 = vld [vmem:[%s697 + $0xa0] sm:$0xf]
        %v5047 = vld [vmem:[%s697 + $0xa4] sm:$0xf]
        %v5048 = vld [vmem:[%s697 + $0xa8] sm:$0xf]
        %v5049 = vld [vmem:[%s697 + $0xac] sm:$0xf]
        %v5050 = vld [vmem:[%s697 + $0xb0] sm:$0xf]
        %v5051 = vld [vmem:[%s697 + $0xb4] sm:$0xf]
        %v5052 = vld [vmem:[%s697 + $0xb8] sm:$0xf]
        %v5053 = vld [vmem:[%s697 + $0xbc] sm:$0xf]
        %v5054 = vld [vmem:[%s697 + $0xc0] sm:$0xf]
        %v5055 = vld [vmem:[%s697 + $0xc4] sm:$0xf]
        %v5056 = vld [vmem:[%s697 + $0xc8] sm:$0xf]
        %v5057 = vld [vmem:[%s697 + $0xcc] sm:$0xf]
        %v5058 = vld [vmem:[%s697 + $0xd0] sm:$0xf]
        %v5059 = vld [vmem:[%s697 + $0xd4] sm:$0xf]
        %v5060 = vld [vmem:[%s697 + $0xd8] sm:$0xf]
        %v5061 = vld [vmem:[%s697 + $0xdc] sm:$0xf]
        %v5062 = vld [vmem:[%s697 + $0xe0] sm:$0xf]
        %v5063 = vld [vmem:[%s697 + $0xe4] sm:$0xf]
        %v5064 = vld [vmem:[%s697 + $0xe8] sm:$0xf]
        %v5065 = vld [vmem:[%s697 + $0xec] sm:$0xf]
        %v5066 = vld [vmem:[%s697 + $0xf0] sm:$0xf]
        %v5067 = vld [vmem:[%s697 + $0xf4] sm:$0xf]
        %v5068 = vld [vmem:[%s697 + $0xf8] sm:$0xf]
        %v5069 = vld [vmem:[%s697 + $0xfc] sm:$0xf]
        %v5070 = vld [vmem:[%s807] sm:$0x1]
        %v5072 = vlaneseq
        %v5073 = vshrl.u32 %v5072, 7
        %v5074 = vsub.s32 0, %v5073
        %v5075 = vrot.slane %v5070, %v5074
        %v5141 = vunpack.c.l.b16 %v5006
        %v5142 = vunpack.c.l.b16 %v5007
        %v5143 = vunpack.c.l.b16 %v5008
        %v5144 = vunpack.c.l.b16 %v5009
        %v5145 = vunpack.c.l.b16 %v5010
        %v5146 = vunpack.c.l.b16 %v5011
        %v5147 = vunpack.c.l.b16 %v5012
        %v5148 = vunpack.c.l.b16 %v5013
        %v5149 = vunpack.c.l.b16 %v5014
        %v5150 = vunpack.c.l.b16 %v5015
        %v5151 = vunpack.c.l.b16 %v5016
        %v5152 = vunpack.c.l.b16 %v5017
        %v5153 = vunpack.c.l.b16 %v5018
        %v5154 = vunpack.c.l.b16 %v5019
        %v5155 = vunpack.c.l.b16 %v5020
        %v5156 = vunpack.c.l.b16 %v5021
        %v5157 = vunpack.c.l.b16 %v5022
        %v5158 = vunpack.c.l.b16 %v5023
        %v5159 = vunpack.c.l.b16 %v5024
        %v5160 = vunpack.c.l.b16 %v5025
        %v5161 = vunpack.c.l.b16 %v5026
        %v5162 = vunpack.c.l.b16 %v5027
        %v5163 = vunpack.c.l.b16 %v5028
        %v5164 = vunpack.c.l.b16 %v5029
        %v5165 = vunpack.c.l.b16 %v5030
        %v5166 = vunpack.c.l.b16 %v5031
        %v5167 = vunpack.c.l.b16 %v5032
        %v5168 = vunpack.c.l.b16 %v5033
        %v5169 = vunpack.c.l.b16 %v5034
        %v5170 = vunpack.c.l.b16 %v5035
        %v5171 = vunpack.c.l.b16 %v5036
        %v5172 = vunpack.c.l.b16 %v5037
        %v5173 = vunpack.c.l.b16 %v5038
        %v5174 = vunpack.c.l.b16 %v5039
        %v5175 = vunpack.c.l.b16 %v5040
        %v5176 = vunpack.c.l.b16 %v5041
        %v5177 = vunpack.c.l.b16 %v5042
        %v5178 = vunpack.c.l.b16 %v5043
        %v5179 = vunpack.c.l.b16 %v5044
        %v5180 = vunpack.c.l.b16 %v5045
        %v5181 = vunpack.c.l.b16 %v5046
        %v5182 = vunpack.c.l.b16 %v5047
        %v5183 = vunpack.c.l.b16 %v5048
        %v5184 = vunpack.c.l.b16 %v5049
        %v5185 = vunpack.c.l.b16 %v5050
        %v5186 = vunpack.c.l.b16 %v5051
        %v5187 = vunpack.c.l.b16 %v5052
        %v5188 = vunpack.c.l.b16 %v5053
        %v5189 = vunpack.c.l.b16 %v5054
        %v5190 = vunpack.c.l.b16 %v5055
        %v5191 = vunpack.c.l.b16 %v5056
        %v5192 = vunpack.c.l.b16 %v5057
        %v5193 = vunpack.c.l.b16 %v5058
        %v5194 = vunpack.c.l.b16 %v5059
        %v5195 = vunpack.c.l.b16 %v5060
        %v5196 = vunpack.c.l.b16 %v5061
        %v5197 = vunpack.c.l.b16 %v5062
        %v5198 = vunpack.c.l.b16 %v5063
        %v5199 = vunpack.c.l.b16 %v5064
        %v5200 = vunpack.c.l.b16 %v5065
        %v5201 = vunpack.c.l.b16 %v5066
        %v5202 = vunpack.c.l.b16 %v5067
        %v5203 = vunpack.c.l.b16 %v5068
        %v5204 = vunpack.c.l.b16 %v5069
        %v5205 = vpack.c.b16 %v5142, %v5141
        %v5206 = vpack.c.b16 %v5144, %v5143
        %v5207 = vpack.c.b16 %v5146, %v5145
        %v5208 = vpack.c.b16 %v5148, %v5147
        %v5209 = vpack.c.b16 %v5150, %v5149
        %v5210 = vpack.c.b16 %v5152, %v5151
        %v5211 = vpack.c.b16 %v5154, %v5153
        %v5212 = vpack.c.b16 %v5156, %v5155
        %v5213 = vpack.c.b16 %v5158, %v5157
        %v5214 = vpack.c.b16 %v5160, %v5159
        %v5215 = vpack.c.b16 %v5162, %v5161
        %v5216 = vpack.c.b16 %v5164, %v5163
        %v5217 = vpack.c.b16 %v5166, %v5165
        %v5218 = vpack.c.b16 %v5168, %v5167
        %v5219 = vpack.c.b16 %v5170, %v5169
        %v5220 = vpack.c.b16 %v5172, %v5171
        %v5221 = vpack.c.b16 %v5174, %v5173
        %v5222 = vpack.c.b16 %v5176, %v5175
        %v5223 = vpack.c.b16 %v5178, %v5177
        %v5224 = vpack.c.b16 %v5180, %v5179
        %v5225 = vpack.c.b16 %v5182, %v5181
        %v5226 = vpack.c.b16 %v5184, %v5183
        %v5227 = vpack.c.b16 %v5186, %v5185
        %v5228 = vpack.c.b16 %v5188, %v5187
        %v5229 = vpack.c.b16 %v5190, %v5189
        %v5230 = vpack.c.b16 %v5192, %v5191
        %v5231 = vpack.c.b16 %v5194, %v5193
        %v5232 = vpack.c.b16 %v5196, %v5195
        %v5233 = vpack.c.b16 %v5198, %v5197
        %v5234 = vpack.c.b16 %v5200, %v5199
        %v5235 = vpack.c.b16 %v5202, %v5201
        %v5236 = vpack.c.b16 %v5204, %v5203
        %5269 = vmatprep.subr.bf16.mxu0 0
        %5270 = vmatpush1.bf16.msra.mxu0 %v5205
        %5271 = vmatprep.subr.bf16.mxu0 0
        %5272 = vmatpush1.bf16.msra.mxu0 %v5206
        %5273 = vmatprep.subr.bf16.mxu0 0
        %5274 = vmatpush1.bf16.msra.mxu0 %v5207
        %5275 = vmatprep.subr.bf16.mxu0 0
        %5276 = vmatpush1.bf16.msra.mxu0 %v5208
        %5277 = vmatprep.subr.bf16.mxu0 0
        %5278 = vmatpush1.bf16.msra.mxu0 %v5209
        %5279 = vmatprep.subr.bf16.mxu0 0
        %5280 = vmatpush1.bf16.msra.mxu0 %v5210
        %5281 = vmatprep.subr.bf16.mxu0 0
        %5282 = vmatpush1.bf16.msra.mxu0 %v5211
        %5283 = vmatprep.subr.bf16.mxu0 0
        %5284 = vmatpush1.bf16.msra.mxu0 %v5212
        %5285 = vmatprep.subr.bf16.mxu0 0
        %5286 = vmatpush1.bf16.msra.mxu0 %v5213
        %5287 = vmatprep.subr.bf16.mxu0 0
        %5288 = vmatpush1.bf16.msra.mxu0 %v5214
        %5289 = vmatprep.subr.bf16.mxu0 0
        %5290 = vmatpush1.bf16.msra.mxu0 %v5215
        %5291 = vmatprep.subr.bf16.mxu0 0
        %5292 = vmatpush1.bf16.msra.mxu0 %v5216
        %5293 = vmatprep.subr.bf16.mxu0 0
        %5294 = vmatpush1.bf16.msra.mxu0 %v5217
        %5295 = vmatprep.subr.bf16.mxu0 0
        %5296 = vmatpush1.bf16.msra.mxu0 %v5218
        %5297 = vmatprep.subr.bf16.mxu0 0
        %5298 = vmatpush1.bf16.msra.mxu0 %v5219
        %5299 = vmatprep.subr.bf16.mxu0 0
        %5300 = vmatpush1.bf16.msra.mxu0 %v5220
        %5301 = vmatprep.mubr.bf16.mxu0 %v5003
        %5302 = vmatmul.mubr.bf16.gmra.mrb[0].mxu0 %v5002
        %v5303 = vpop.f32.mrb[0].mxu0
        %v5304 = vadd.f32 %v5075, %v5303
        %v5305 = vpop.f32.mrb[0].mxu0
        %v5306 = vpop.f32.mrb[0].mxu0
        %v5307 = vpop.f32.mrb[0].mxu0
        %5308 = vdwg.mxu0
        %5309 = vmatprep.subr.bf16.mxu0 0
        %5310 = vmatpush1.bf16.msra.mxu0 %v5221
        %5311 = vmatprep.subr.bf16.mxu0 0
        %5312 = vmatpush1.bf16.msra.mxu0 %v5222
        %5313 = vmatprep.subr.bf16.mxu0 0
        %5314 = vmatpush1.bf16.msra.mxu0 %v5223
        %5315 = vmatprep.subr.bf16.mxu0 0
        %5316 = vmatpush1.bf16.msra.mxu0 %v5224
        %5317 = vmatprep.subr.bf16.mxu0 0
        %5318 = vmatpush1.bf16.msra.mxu0 %v5225
        %5319 = vmatprep.subr.bf16.mxu0 0
        %5320 = vmatpush1.bf16.msra.mxu0 %v5226
        %5321 = vmatprep.subr.bf16.mxu0 0
        %5322 = vmatpush1.bf16.msra.mxu0 %v5227
        %5323 = vmatprep.subr.bf16.mxu0 0
        %5324 = vmatpush1.bf16.msra.mxu0 %v5228
        %5325 = vmatprep.subr.bf16.mxu0 0
        %5326 = vmatpush1.bf16.msra.mxu0 %v5229
        %5327 = vmatprep.subr.bf16.mxu0 0
        %5328 = vmatpush1.bf16.msra.mxu0 %v5230
        %5329 = vmatprep.subr.bf16.mxu0 0
        %5330 = vmatpush1.bf16.msra.mxu0 %v5231
        %5331 = vmatprep.subr.bf16.mxu0 0
        %5332 = vmatpush1.bf16.msra.mxu0 %v5232
        %5333 = vmatprep.subr.bf16.mxu0 0
        %5334 = vmatpush1.bf16.msra.mxu0 %v5233
        %5335 = vmatprep.subr.bf16.mxu0 0
        %5336 = vmatpush1.bf16.msra.mxu0 %v5234
        %5337 = vmatprep.subr.bf16.mxu0 0
        %5338 = vmatpush1.bf16.msra.mxu0 %v5235
        %5339 = vmatprep.subr.bf16.mxu0 0
        %5340 = vmatpush1.bf16.msra.mxu0 %v5236
        %5341 = vmatprep.mubr.bf16.mxu0 %v5005
        %5342 = vmatmul.mubr.bf16.gmra.mrb[0].mxu0 %v5004
        %v5343 = vpop.f32.mrb[0].mxu0
        %v5344 = vadd.f32 %v5304, %v5343
        %v5345 = vpop.f32.mrb[0].mxu0
        %v5346 = vpop.f32.mrb[0].mxu0
        %v5347 = vpop.f32.mrb[0].mxu0
        %5348 = vdwg.mxu0
        %v5349 = vadd.f32 %v4684, %v5344
        %v5350 = vld [vmem:[%s810] sm:$0x1]
        %v5351 = vld [vmem:[%s813] sm:$0x1]
        %5352 = vadd.xlane.f32.xlu0 %v5349
        %v5353 = vpop.xlane.xlu0 %5352
        %v5354 = vmul.f32 %v5353, %v4661
        %v5355 = vsub.f32 %v5349, %v5354
        %v5356 = vmul.f32 %v5355, %v5355
        %5357 = vadd.xlane.f32.xlu0 %v5356
        %v5358 = vpop.xlane.xlu0 %5357
        %v5359 = vmul.f32 %v5358, %v4661
        %v5360 = vadd.f32 %v5359, 1e-05
        %v5361 = vrsqrt.pop %v5360
        %v5362 = vmul.f32 %v5355, %v5361
        %v5364 = vlaneseq
        %v5365 = vshrl.u32 %v5364, 7
        %v5366 = vsub.s32 0, %v5365
        %v5367 = vrot.slane %v5350, %v5366
        %v5369 = vmul.f32 %v5362, %v5367
        %v5371 = vlaneseq
        %v5372 = vshrl.u32 %v5371, 7
        %v5373 = vsub.s32 0, %v5372
        %v5374 = vrot.slane %v5351, %v5373
        %v5376 = vadd.f32 %v5369, %v5374
        %5377 = vst [vmem:[#allocation2] sm:$0xff] %v5376
        %p5378 = scmp.eq.s32.totalorder %s46, 1
        // Predicated region
        $region109: #{tpu_custom_call.1} parent=79 // pred_check
          %p5379 = pneg %p5378
        $region110: #{tpu_custom_call.1} parent=79 // pred_check_branch
          %5381 = sbr.rel (%p5379) target = $region112
        $region111: #{tpu_custom_call.1} parent=79 // pred_region
          %v5382 = vld [vmem:[%s13] sm:$0x1]
          %v5383 = vld [vmem:[%s14] sm:$0x1]
          %5384 = vadd.xlane.f32.xlu0 %v5376
          %v5385 = vpop.xlane.xlu0 %5384
          %v5386 = vmul.f32 %v5385, %v4661
          %v5387 = vsub.f32 %v5376, %v5386
          %v5388 = vmul.f32 %v5387, %v5387
          %5389 = vadd.xlane.f32.xlu0 %v5388
          %v5390 = vpop.xlane.xlu0 %5389
          %v5391 = vmul.f32 %v5390, %v4661
          %v5392 = vadd.f32 %v5391, 1e-05
          %v5393 = vrsqrt.pop %v5392
          %v5394 = vmul.f32 %v5387, %v5393
          %v5396 = vlaneseq
          %v5397 = vshrl.u32 %v5396, 7
          %v5398 = vsub.s32 0, %v5397
          %v5399 = vrot.slane %v5382, %v5398
          %v5401 = vmul.f32 %v5394, %v5399
          %v5403 = vlaneseq
          %v5404 = vshrl.u32 %v5403, 7
          %v5405 = vsub.s32 0, %v5404
          %v5406 = vrot.slane %v5383, %v5405
          %v5408 = vadd.f32 %v5401, %v5406
          %5409 = vst [vmem:[%s790] sm:$0xff] %v5408
        $region112: #{tpu_custom_call.1} parent=79 // pred_fallthru
          _
        %s5410 = sand.u32 %s441, 1
        %s5411 = scalar_lea.sflag [#allocation5], %s5410
        %s5412 = sand.u32 %s441, 1
        %s5413 = smul.addr %s5412, 8
        %s5414 = scalar_lea.vmem [#allocation14], %s5413
        // Predicated region
        $region113: #{tpu_custom_call.1} parent=79 // pred_check
          %p5415 = pneg %p451
        $region114: #{tpu_custom_call.1} parent=79 // pred_check_branch
          %5417 = sbr.rel (%p5415) target = $region116
        $region115: #{tpu_custom_call.1} parent=79 // pred_region
          %s5419 = ssub.s32 128, 128
          %5420 = vsyncadd %s5411, %s5419
          %s5421 = smul.addr %s45, 128
          %s5422 = scalar_lea.hbm %s15, %s5421
          %s5424 = sshll.u32 %s5414, 4
          %s5425 = int_to_ptr.vmem [resolvable:$true] %s5424
          %5427 = dma.vmem_to_hbm [thread:$0]  %s5425, 128, %s5422, %s5411
        $region116: #{tpu_custom_call.1} parent=79 // pred_fallthru
          _
      $region80: #{tpu_custom_call.1} parent=5 // pred_fallthru
        _
      %p5428 = scmp.le.s32.totalorder 2, %s36
      // Predicated region
      $region117: #{tpu_custom_call.1} parent=5 // pred_check
        %p5429 = pneg %p5428
      $region118: #{tpu_custom_call.1} parent=5 // pred_check_branch
        %5431 = sbr.rel (%p5429) target = $region120
      $region119: #{tpu_custom_call.1} parent=5 // pred_region
        %s5432 = ssub.s32 %s36, 2
        // Predicated region
        $region121: #{tpu_custom_call.1} parent=119 // pred_check
          %p5433 = pneg %p457
        $region122: #{tpu_custom_call.1} parent=119 // pred_check_branch
          %5435 = sbr.rel (%p5433) target = $region124
        $region123: #{tpu_custom_call.1} parent=119 // pred_region
          %s5436 = sand.u32 %s442, 1
          %s5437 = scalar_lea.sflag [#allocation5], %s5436
          %s5438 = sand.u32 %s442, 1
          %s5439 = smul.addr %s5438, 8
          %s5440 = scalar_lea.vmem [#allocation14], %s5439
          %5441 = dma.done %s5437, 128
        $region124: #{tpu_custom_call.1} parent=119 // pred_fallthru
          _
      $region120: #{tpu_custom_call.1} parent=5 // pred_fallthru
        _
    $region6: #{tpu_custom_call.1} parent=1 // loop_footer
      %s40 = sadd.s32 1, %s36
    $region7: #{tpu_custom_call.1} parent=1 // loop_footer_branch
      %35 = sbr.rel target = $region3
    $region8: #{tpu_custom_call.1} parent=1 // loop_exit
      _
    %5442 = vsyncpa [#allocation4], 1
    %s5443 = scalar_lea.sflag [#allocation4], 1
    %5444 = vsyncpa %s5443, 1
    %5445 = vsyncpa [#allocation7], 1
    %s5446 = scalar_lea.sflag [#allocation7], 1
    %5447 = vsyncpa %s5446, 1
    %5448 = vsyncpa [#allocation10], 1
    %s5449 = scalar_lea.sflag [#allocation10], 1
    %5450 = vsyncpa %s5449, 1
    %5451 = vsyncpa [#allocation13], 1
    %s5452 = scalar_lea.sflag [#allocation13], 1
    %5453 = vsyncpa %s5452, 1
    %5454 = vsyncpa [#allocation5], 1
    %s5455 = scalar_lea.sflag [#allocation5], 1
    %5456 = vsyncpa %s5455, 1

</llo_original>
